<compile_context>
chip_gen: v6e
topology: v6e:2x2x1
jax: 0.10.0
libtpu: 0.0.40
codegen_flags: <defaults>
</compile_context>

<pallas_src>
import functools

import jax
import jax.numpy as jnp
from jax.experimental import pallas as pl
from jax.experimental.pallas import tpu as pltpu

EPS = 1e-5
_LANE = 128
_PAD_L = 8   # sublane-aligned left offset of the 3x3 pad-scratch interior


def _round_up(x, m):
    return ((x + m - 1) // m) * m


# ----------------------------- kernel helpers ------------------------------

def _partial_stats(vals, *, rows_total, ragged):
    """Per-tile [sum; sum-of-squares] over rows, masking a ragged tail."""
    if ragged:
        tm = vals.shape[0]
        row = (pl.program_id(0) * tm
               + jax.lax.broadcasted_iota(jnp.int32, (tm, 1), 0))
        vals = jnp.where(row < rows_total, vals, 0.0)
    s = jnp.sum(vals, axis=0, keepdims=True)
    ss = jnp.sum(vals * vals, axis=0, keepdims=True)
    return jnp.concatenate([s, ss], axis=0)[None]           # (1, 2, C)


# ----------------------------- kernels --------------------------------------

def _conv1x1_stats_kernel(x_ref, w_ref, h_ref, st_ref, *, rows_total, ragged):
    """1x1 conv (bf16 MXU matmul, f32 acc) + per-tile sum / sum-of-squares."""
    h = jnp.dot(x_ref[...].astype(jnp.bfloat16), w_ref[...],
                preferred_element_type=jnp.float32)
    h_ref[...] = h.astype(h_ref.dtype)                       # bf16 store
    st_ref[...] = _partial_stats(h, rows_total=rows_total, ragged=ragged)


def _bn_conv1x1_stats_kernel(h_ref, a_ref, c_ref, w_ref, o_ref, st_ref, *,
                             rows_total, ragged):
    """Fold previous BN (x*a + c) + ReLU, then 1x1 conv + per-tile stats."""
    hn = jnp.maximum(h_ref[...].astype(jnp.float32) * a_ref[...] + c_ref[...],
                     0.0)
    o = jnp.dot(hn.astype(jnp.bfloat16), w_ref[...],
                preferred_element_type=jnp.float32)
    o_ref[...] = o.astype(o_ref.dtype)                       # bf16 store
    st_ref[...] = _partial_stats(o, rows_total=rows_total, ragged=ragged)


def _bn_conv3x3_stats_kernel(h1_ref, a_ref, c_ref, w_ref, o_ref, st_ref,
                             pad_ref, acc_ref, *, dilation):
    """bn1-fold + ReLU, 3x3 dilated conv as 9 accumulated MXU matmuls, + stats."""
    d = dilation
    _, H, W, C = h1_ref.shape
    HW = H * W
    WP = pad_ref.shape[1]                                    # W + 2 * _PAD_L

    h1 = jnp.maximum(h1_ref[0].astype(jnp.float32) * a_ref[...] + c_ref[...],
                     0.0)                                    # (H, W, C) f32

    # Fill the padded scratch.  The interior starts at column _PAD_L so its
    # store is sublane-aligned; the left/right zero stripes are 8 columns wide
    # (unmasked stores).  The halo is re-zeroed every step so the kernel stays
    # correct even if this grid axis is sharded across TensorCores (scratch is
    # per-core); the cost is negligible next to the 9 matmuls.
    zrow = jnp.zeros((d, WP, C), jnp.bfloat16)
    pad_ref[0:d] = zrow
    pad_ref[H + d:H + 2 * d] = zrow
    zcol = jnp.zeros((H, _PAD_L, C), jnp.bfloat16)
    pad_ref[d:H + d, 0:_PAD_L] = zcol
    pad_ref[d:H + d, _PAD_L + W:WP] = zcol
    pad_ref[d:H + d, _PAD_L:_PAD_L + W] = h1.astype(jnp.bfloat16)

    # 3x3 dilated conv: 9 shifted views, each an (HW, C) x (C, C) MXU matmul,
    # accumulated into one f32 VMEM accumulator (no materialized im2col).
    for k in range(9):
        ky, kx = divmod(k, 3)
        x0 = _PAD_L - d + kx * d
        patch = pad_ref[ky * d:ky * d + H, x0:x0 + W, :].reshape(HW, C)
        contrib = jnp.dot(patch, w_ref[k * C:(k + 1) * C, :],
                          preferred_element_type=jnp.float32)
        if k == 0:
            acc_ref[...] = contrib
        else:
            acc_ref[...] += contrib

    h2 = acc_ref[...]                                        # (HW, C) f32
    o_ref[...] = h2.reshape(1, H, W, C).astype(o_ref.dtype)  # bf16 store
    s = jnp.sum(h2, axis=0, keepdims=True)
    ss = jnp.sum(h2 * h2, axis=0, keepdims=True)
    st_ref[...] = jnp.concatenate([s, ss], axis=0)[None]


def _bn_residual_relu_kernel(h_ref, x_ref, a_ref, c_ref, o_ref):
    o_ref[...] = jnp.maximum(
        h_ref[...].astype(jnp.float32) * a_ref[...] + c_ref[...] + x_ref[...],
        0.0)


# ----------------------------- wrapper ------------------------------------

def _bn_fold(st_partial, gamma_p, beta_p, count):
    """Combine per-tile (sum, sumsq) into BN scale/shift: y = x*a + c."""
    # TODO(synk): E[x^2]-E[x]^2 in f32 can cancel for very large activations;
    #             move to a compensated / two-pass variance if that bites.
    tot = jnp.sum(st_partial, axis=0)                 # (2, C)
    mean = tot[0] / count
    var = jnp.maximum(tot[1] / count - mean * mean, 0.0)    # biased (training)
    a = gamma_p[0] * jax.lax.rsqrt(var + EPS)
    c = beta_p[0] - mean * a
    return a[None], c[None]


def bottleneck_forward(x_nchw, params, *, dilation=1, max_tile=512):
    # TODO(synk): if the surrounding model can consume NHWC, drop the
    #             NCHW<->NHWC transposes here (one extra HBM pass each).
    (w1, g1, b1, w2, g2, b2, w3, g3, b3) = params
    N, Cin, H, W = x_nchw.shape
    P = w1.shape[1]
    Cout = w3.shape[1]
    assert Cin == Cout, "downsample=None requires inplanes == planes * 4"
    assert 1 <= dilation <= _PAD_L
    assert max_tile % 8 == 0
    M = N * H * W
    d = dilation

    Cp = _round_up(P, _LANE)       # padded bottleneck width ("planes")
    Co = _round_up(Cin, _LANE)     # padded in/out channels
    # TODO(synk): on v6e/v7x (256-wide MXU) genuinely tiny channel counts are
    #             mostly zero-padding; a VPU fallback for such layers would help.

    # ---- zero-pad channels to lane-dense widths (padded BN params are 0) ----
    x_nhwc = jnp.transpose(x_nchw, (0, 2, 3, 1)).astype(jnp.float32)
    x2d = jnp.pad(x_nhwc, ((0, 0), (0, 0), (0, 0), (0, Co - Cin))).reshape(M, Co)

    w1p = jnp.pad(w1, ((0, Co - Cin), (0, Cp - P))).astype(jnp.bfloat16)
    w2p = jnp.pad(w2, ((0, 0), (0, Cp - P), (0, Cp - P)))
    w2col = w2p.reshape(9 * Cp, Cp).astype(jnp.bfloat16)
    w3p = jnp.pad(w3, ((0, Cp - P), (0, Co - Cout))).astype(jnp.bfloat16)

    g1p = jnp.pad(g1, ((0, 0), (0, Cp - P)))
    b1p = jnp.pad(b1, ((0, 0), (0, Cp - P)))
    g2p = jnp.pad(g2, ((0, 0), (0, Cp - P)))
    b2p = jnp.pad(b2, ((0, 0), (0, Cp - P)))
    g3p = jnp.pad(g3, ((0, 0), (0, Co - Cout)))
    b3p = jnp.pad(b3, ((0, 0), (0, Co - Cout)))

    # Row tiling for the 1x1 / elementwise stages: cdiv grid with a masked
    # ragged tail (never degrades to one giant block).  TM<=512 / 32 MiB is
    # v7x-safe; on v5e/v6e (128 MiB VMEM) max_tile and vmem_limit_bytes can be
    # raised for slightly better HBM-roofline utilization.
    TM = M if M <= max_tile else max_tile
    nt = (M + TM - 1) // TM
    ragged = (M % TM) != 0

    cparams = pltpu.CompilerParams(
        dimension_semantics=("parallel",),
        vmem_limit_bytes=32 * 1024 * 1024)

    # ---- stage 1: conv1 (1x1) + bn1 partial stats ---------------------------
    conv1 = functools.partial(_conv1x1_stats_kernel, rows_total=M, ragged=ragged)
    h1_raw, st1 = pl.pallas_call(
        conv1,
        out_shape=(jax.ShapeDtypeStruct((M, Cp), jnp.bfloat16),
                   jax.ShapeDtypeStruct((nt, 2, Cp), jnp.float32)),
        grid=(nt,),
        in_specs=[pl.BlockSpec((TM, Co), lambda i: (i, 0)),
                  pl.BlockSpec((Co, Cp), lambda i: (0, 0))],
        out_specs=(pl.BlockSpec((TM, Cp), lambda i: (i, 0)),
                   pl.BlockSpec((1, 2, Cp), lambda i: (i, 0, 0))),
        compiler_params=cparams,
    )(x2d, w1p)
    a1, c1 = _bn_fold(st1, g1p, b1p, M)

    # ---- stage 2: bn1+relu fold, 3x3 dilated conv (9 taps) + bn2 stats ------
    # TODO(synk): for very large H*W, additionally row-tile each image with a
    #             `dilation`-row halo (v7x VMEM headroom / megacore sharding).
    h1_4d = h1_raw.reshape(N, H, W, Cp)
    conv2 = functools.partial(_bn_conv3x3_stats_kernel, dilation=d)
    h2_raw, st2 = pl.pallas_call(
        conv2,
        out_shape=(jax.ShapeDtypeStruct((N, H, W, Cp), jnp.bfloat16),
                   jax.ShapeDtypeStruct((N, 2, Cp), jnp.float32)),
        grid=(N,),
        in_specs=[pl.BlockSpec((1, H, W, Cp), lambda n: (n, 0, 0, 0)),
                  pl.BlockSpec((1, Cp), lambda n: (0, 0)),
                  pl.BlockSpec((1, Cp), lambda n: (0, 0)),
                  pl.BlockSpec((9 * Cp, Cp), lambda n: (0, 0))],
        out_specs=(pl.BlockSpec((1, H, W, Cp), lambda n: (n, 0, 0, 0)),
                   pl.BlockSpec((1, 2, Cp), lambda n: (n, 0, 0))),
        scratch_shapes=[
            pltpu.VMEM((H + 2 * d, W + 2 * _PAD_L, Cp), jnp.bfloat16),
            pltpu.VMEM((H * W, Cp), jnp.float32),
        ],
        compiler_params=cparams,
    )(h1_4d, a1, c1, w2col)
    a2, c2 = _bn_fold(st2, g2p, b2p, M)

    # ---- stage 3: bn2+relu fold, conv3 (1x1) + bn3 partial stats ------------
    conv3 = functools.partial(_bn_conv1x1_stats_kernel, rows_total=M,
                              ragged=ragged)
    h3_raw, st3 = pl.pallas_call(
        conv3,
        out_shape=(jax.ShapeDtypeStruct((M, Co), jnp.bfloat16),
                   jax.ShapeDtypeStruct((nt, 2, Co), jnp.float32)),
        grid=(nt,),
        in_specs=[pl.BlockSpec((TM, Cp), lambda i: (i, 0)),
                  pl.BlockSpec((1, Cp), lambda i: (0, 0)),
                  pl.BlockSpec((1, Cp), lambda i: (0, 0)),
                  pl.BlockSpec((Cp, Co), lambda i: (0, 0))],
        out_specs=(pl.BlockSpec((TM, Co), lambda i: (i, 0)),
                   pl.BlockSpec((1, 2, Co), lambda i: (i, 0, 0))),
        compiler_params=cparams,
    )(h2_raw.reshape(M, Cp), a2, c2, w3p)
    a3, c3 = _bn_fold(st3, g3p, b3p, M)

    # ---- stage 4: bn3 fold + residual add + relu ----------------------------
    out2d = pl.pallas_call(
        _bn_residual_relu_kernel,
        out_shape=jax.ShapeDtypeStruct((M, Co), jnp.float32),
        grid=(nt,),
        in_specs=[pl.BlockSpec((TM, Co), lambda i: (i, 0)),
                  pl.BlockSpec((TM, Co), lambda i: (i, 0)),
                  pl.BlockSpec((1, Co), lambda i: (0, 0)),
                  pl.BlockSpec((1, Co), lambda i: (0, 0))],
        out_specs=pl.BlockSpec((TM, Co), lambda i: (i, 0)),
        compiler_params=cparams,
    )(h3_raw, x2d, a3, c3)

    out = out2d.reshape(N, H, W, Co)[..., :Cout]
    return jnp.transpose(out, (0, 3, 1, 2))


# -------------------------- pure-JAX reference -----------------------------

def _bn_ref(x_nhwc, g, b):
    mean = x_nhwc.mean(axis=(0, 1, 2), keepdims=True)
    var = ((x_nhwc - mean) ** 2).mean(axis=(0, 1, 2), keepdims=True)
    return (x_nhwc - mean) / jnp.sqrt(var + EPS) * g.reshape(1, 1, 1, -1) \
        + b.reshape(1, 1, 1, -1)


def bottleneck_reference(x_nchw, params, *, dilation=1):
    (w1, g1, b1, w2, g2, b2, w3, g3, b3) = params
    P = w1.shape[1]
    d = dilation
    x = jnp.transpose(x_nchw, (0, 2, 3, 1)).astype(jnp.float32)
    h = jnp.einsum('nhwc,cp->nhwp', x, w1)
    h = jax.nn.relu(_bn_ref(h, g1[0], b1[0]))
    w2_hwio = w2.reshape(3, 3, P, P)
    h = jax.lax.conv_general_dilated(
        h, w2_hwio, window_strides=(1, 1), padding=[(d, d), (d, d)],
        rhs_dilation=(d, d), dimension_numbers=('NHWC', 'HWIO', 'NHWC'))
    h = jax.nn.relu(_bn_ref(h, g2[0], b2[0]))
    h = jnp.einsum('nhwc,cp->nhwp', h, w3)
    h = _bn_ref(h, g3[0], b3[0])
    out = jax.nn.relu(h + x)
    return jnp.transpose(out, (0, 3, 1, 2))


if __name__ == "__main__":
    # Bottleneck(inplanes=32, planes=8): inplanes == planes*4 so the residual
    # add is valid with downsample=None.
    planes = 8
    inplanes = planes * 4            # 32
    cout = planes * 4                # 32

    key = jax.random.PRNGKey(0)
    kp, kx1, kx2 = jax.random.split(key, 3)
    k = jax.random.split(kp, 9)
    w1 = 0.1 * jax.random.normal(k[0], (inplanes, planes), jnp.float32)
    w2 = 0.1 * jax.random.normal(k[1], (9, planes, planes), jnp.float32)
    w3 = 0.1 * jax.random.normal(k[2], (planes, cout), jnp.float32)
    g1 = 1.0 + 0.1 * jax.random.normal(k[3], (1, planes), jnp.float32)
    b1 = 0.1 * jax.random.normal(k[4], (1, planes), jnp.float32)
    g2 = 1.0 + 0.1 * jax.random.normal(k[5], (1, planes), jnp.float32)
    b2 = 0.1 * jax.random.normal(k[6], (1, planes), jnp.float32)
    g3 = 1.0 + 0.1 * jax.random.normal(k[7], (1, cout), jnp.float32)
    b3 = 0.1 * jax.random.normal(k[8], (1, cout), jnp.float32)
    params = (w1, g1, b1, w2, g2, b2, w3, g3, b3)

    # Case A: N=2, 8x8, dilations 1 and 2 (even tiling).
    x_a = jax.random.normal(kx1, (2, inplanes, 8, 8), jnp.float32)
    for dilation in (1, 2):
        fwd = jax.jit(functools.partial(bottleneck_forward, dilation=dilation))
        out = jax.block_until_ready(fwd(x_a, params))
        ref = bottleneck_reference(x_a, params, dilation=dilation)
        assert out.shape == (2, cout, 8, 8)
        assert bool(jnp.all(jnp.isfinite(out)))
        err = float(jnp.max(jnp.abs(out - ref)))
        assert jnp.allclose(out, ref, rtol=3e-2, atol=3e-2), \
            f"case A dilation={dilation}: max abs err {err}"

    # Case B: N=3 with a small max_tile so the row grid has a ragged tail
    # (M = 192, TM = 128 -> 2 grid steps, last one partially valid).
    x_b = jax.random.normal(kx2, (3, inplanes, 8, 8), jnp.float32)
    fwd_b = jax.jit(functools.partial(bottleneck_forward, dilation=1,
                                      max_tile=128))
    out_b = jax.block_until_ready(fwd_b(x_b, params))
    ref_b = bottleneck_reference(x_b, params, dilation=1)
    assert out_b.shape == (3, cout, 8, 8)
    assert bool(jnp.all(jnp.isfinite(out_b)))
    err_b = float(jnp.max(jnp.abs(out_b - ref_b)))
    assert jnp.allclose(out_b, ref_b, rtol=3e-2, atol=3e-2), \
        f"case B (ragged tail): max abs err {err_b}"

    print("KERNEL_OK")
</pallas_src>

<mosaic_0001>
module attributes {stable_mosaic.version = 11 : i64} {
  func.func @_bn_residual_relu_kernel(%arg0: i32, %arg1: memref<128x128xbf16, #tpu.memory_space<vmem>>, %arg2: memref<128x128xf32, #tpu.memory_space<vmem>>, %arg3: memref<1x128xf32, #tpu.memory_space<vmem>>, %arg4: memref<1x128xf32, #tpu.memory_space<vmem>>, %arg5: memref<128x128xf32, #tpu.memory_space<vmem>>) attributes {dimension_semantics = [#tpu.dimension_semantics<parallel>], iteration_bounds = array<i64: 1>, scalar_prefetch = 0 : i64, scratch_operands = 0 : i64, tpu.core_type = #tpu.core_type<tc>, window_params = [{transform_indices = @transform_0, window_bounds = array<i64: 128, 128>}, {transform_indices = @transform_1, window_bounds = array<i64: 128, 128>}, {pipeline_mode = #tpu.pipeline_mode<synchronous>, transform_indices = @transform_2, window_bounds = array<i64: 1, 128>}, {pipeline_mode = #tpu.pipeline_mode<synchronous>, transform_indices = @transform_3, window_bounds = array<i64: 1, 128>}, {transform_indices = @transform_4, window_bounds = array<i64: 128, 128>}]} {
    %c0 = arith.constant 0 : index
    %c0_0 = arith.constant 0 : index
    %0 = vector.load %arg1[%c0, %c0_0] : memref<128x128xbf16, #tpu.memory_space<vmem>>, vector<128x128xbf16>
    %1 = arith.extf %0 : vector<128x128xbf16> to vector<128x128xf32>
    %c0_1 = arith.constant 0 : index
    %c0_2 = arith.constant 0 : index
    %2 = vector.load %arg3[%c0_1, %c0_2] : memref<1x128xf32, #tpu.memory_space<vmem>>, vector<1x128xf32>
    %3 = vector.broadcast %2 : vector<1x128xf32> to vector<128x128xf32>
    %4 = arith.mulf %1, %3 : vector<128x128xf32>
    %c0_3 = arith.constant 0 : index
    %c0_4 = arith.constant 0 : index
    %5 = vector.load %arg4[%c0_3, %c0_4] : memref<1x128xf32, #tpu.memory_space<vmem>>, vector<1x128xf32>
    %6 = vector.broadcast %5 : vector<1x128xf32> to vector<128x128xf32>
    %7 = arith.addf %4, %6 : vector<128x128xf32>
    %c0_5 = arith.constant 0 : index
    %c0_6 = arith.constant 0 : index
    %8 = vector.load %arg2[%c0_5, %c0_6] : memref<128x128xf32, #tpu.memory_space<vmem>>, vector<128x128xf32>
    %9 = arith.addf %7, %8 : vector<128x128xf32>
    %cst = arith.constant 0.000000e+00 : f32
    %10 = vector.broadcast %cst : f32 to vector<128x128xf32>
    %11 = arith.maximumf %9, %10 : vector<128x128xf32>
    %c0_7 = arith.constant 0 : index
    %c0_8 = arith.constant 0 : index
    %12 = vector.load %arg5[%c0_7, %c0_8] : memref<128x128xf32, #tpu.memory_space<vmem>>, vector<128x128xf32>
    tpu.vector_store %arg5[%c0_7, %c0_8], %11 {strides = array<i32>} : memref<128x128xf32, #tpu.memory_space<vmem>>, vector<128x128xf32>,
    return
  }
  func.func @transform_0(%arg0: i32) -> (i32, i32) {
    %c0_i32 = arith.constant 0 : i32
    %c0_i32_0 = arith.constant 0 : i32
    return %arg0, %c0_i32 : i32, i32
  }
  func.func @transform_1(%arg0: i32) -> (i32, i32) {
    %c0_i32 = arith.constant 0 : i32
    %c0_i32_0 = arith.constant 0 : i32
    return %arg0, %c0_i32 : i32, i32
  }
  func.func @transform_2(%arg0: i32) -> (i32, i32) {
    %c0_i32 = arith.constant 0 : i32
    %c0_i32_0 = arith.constant 0 : i32
    %c0_i32_1 = arith.constant 0 : i32
    return %c0_i32, %c0_i32_0 : i32, i32
  }
  func.func @transform_3(%arg0: i32) -> (i32, i32) {
    %c0_i32 = arith.constant 0 : i32
    %c0_i32_0 = arith.constant 0 : i32
    %c0_i32_1 = arith.constant 0 : i32
    return %c0_i32, %c0_i32_0 : i32, i32
  }
  func.func @transform_4(%arg0: i32) -> (i32, i32) {
    %c0_i32 = arith.constant 0 : i32
    %c0_i32_0 = arith.constant 0 : i32
    return %arg0, %c0_i32 : i32, i32
  }
}

module attributes {stable_mosaic.version = 11 : i64} {
  func.func @_conv1x1_stats_kernel(%arg0: i32, %arg1: memref<128x128xf32, #tpu.memory_space<vmem>>, %arg2: memref<128x128xbf16, #tpu.memory_space<vmem>>, %arg3: memref<128x128xbf16, #tpu.memory_space<vmem>>, %arg4: memref<1x2x128xf32, #tpu.memory_space<vmem>>) attributes {dimension_semantics = [#tpu.dimension_semantics<parallel>], iteration_bounds = array<i64: 1>, scalar_prefetch = 0 : i64, scratch_operands = 0 : i64, tpu.core_type = #tpu.core_type<tc>, window_params = [{transform_indices = @transform_0, window_bounds = array<i64: 128, 128>}, {pipeline_mode = #tpu.pipeline_mode<synchronous>, transform_indices = @transform_1, window_bounds = array<i64: 128, 128>}, {transform_indices = @transform_2, window_bounds = array<i64: 128, 128>}, {transform_indices = @transform_3, window_bounds = array<i64: 1, 2, 128>}]} {
    %c0 = arith.constant 0 : index
    %c0_0 = arith.constant 0 : index
    %0 = vector.load %arg1[%c0, %c0_0] : memref<128x128xf32, #tpu.memory_space<vmem>>, vector<128x128xf32>
    %1 = arith.truncf %0 : vector<128x128xf32> to vector<128x128xbf16>
    %c0_1 = arith.constant 0 : index
    %c0_2 = arith.constant 0 : index
    %2 = vector.load %arg2[%c0_1, %c0_2] : memref<128x128xbf16, #tpu.memory_space<vmem>>, vector<128x128xbf16>
    %cst = arith.constant dense<0.000000e+00> : vector<128x128xf32>
    %3 = tpu.matmul %1, %2, %cst {dimension_numbers = #tpu.dot_dimension_numbers<[1], [0], [0], [1], [0, 0, 1, 1], [], []>} : vector<128x128xbf16>, vector<128x128xbf16>, vector<128x128xf32> -> vector<128x128xf32>
    %4 = arith.truncf %3 : vector<128x128xf32> to vector<128x128xbf16>
    %c0_3 = arith.constant 0 : index
    %c0_4 = arith.constant 0 : index
    %5 = vector.load %arg3[%c0_3, %c0_4] : memref<128x128xbf16, #tpu.memory_space<vmem>>, vector<128x128xbf16>
    tpu.vector_store %arg3[%c0_3, %c0_4], %4 {strides = array<i32>} : memref<128x128xbf16, #tpu.memory_space<vmem>>, vector<128x128xbf16>,
    %cst_5 = arith.constant dense<0.000000e+00> : vector<128xf32>
    %6 = vector.multi_reduction <add>, %3, %cst_5 [0] : vector<128x128xf32> to vector<128xf32>
    %7 = vector.shape_cast %6 : vector<128xf32> to vector<1x128xf32>
    %8 = arith.mulf %3, %3 : vector<128x128xf32>
    %cst_6 = arith.constant dense<0.000000e+00> : vector<128xf32>
    %9 = vector.multi_reduction <add>, %8, %cst_6 [0] : vector<128x128xf32> to vector<128xf32>
    %10 = vector.shape_cast %9 : vector<128xf32> to vector<1x128xf32>
    %11 = tpu.concatenate %7, %10 in 0 : vector<1x128xf32>, vector<1x128xf32> -> vector<2x128xf32>
    %12 = vector.shape_cast %11 : vector<2x128xf32> to vector<1x2x128xf32>
    %c0_7 = arith.constant 0 : index
    %c0_8 = arith.constant 0 : index
    %c0_9 = arith.constant 0 : index
    %13 = vector.load %arg4[%c0_7, %c0_8, %c0_9] : memref<1x2x128xf32, #tpu.memory_space<vmem>>, vector<1x2x128xf32>
    tpu.vector_store %arg4[%c0_7, %c0_8, %c0_9], %12 {strides = array<i32>} : memref<1x2x128xf32, #tpu.memory_space<vmem>>, vector<1x2x128xf32>,
    return
  }
  func.func @transform_0(%arg0: i32) -> (i32, i32) {
    %c0_i32 = arith.constant 0 : i32
    %c0_i32_0 = arith.constant 0 : i32
    return %arg0, %c0_i32 : i32, i32
  }
  func.func @transform_1(%arg0: i32) -> (i32, i32) {
    %c0_i32 = arith.constant 0 : i32
    %c0_i32_0 = arith.constant 0 : i32
    %c0_i32_1 = arith.constant 0 : i32
    return %c0_i32, %c0_i32_0 : i32, i32
  }
  func.func @transform_2(%arg0: i32) -> (i32, i32) {
    %c0_i32 = arith.constant 0 : i32
    %c0_i32_0 = arith.constant 0 : i32
    return %arg0, %c0_i32 : i32, i32
  }
  func.func @transform_3(%arg0: i32) -> (i32, i32, i32) {
    %c0_i32 = arith.constant 0 : i32
    %c0_i32_0 = arith.constant 0 : i32
    %c0_i32_1 = arith.constant 0 : i32
    return %arg0, %c0_i32, %c0_i32_0 : i32, i32, i32
  }
}

module attributes {stable_mosaic.version = 11 : i64} {
  func.func @_bn_conv3x3_stats_kernel(%arg0: i32, %arg1: memref<1x8x8x128xbf16, #tpu.memory_space<vmem>>, %arg2: memref<1x128xf32, #tpu.memory_space<vmem>>, %arg3: memref<1x128xf32, #tpu.memory_space<vmem>>, %arg4: memref<1152x128xbf16, #tpu.memory_space<vmem>>, %arg5: memref<1x8x8x128xbf16, #tpu.memory_space<vmem>>, %arg6: memref<1x2x128xf32, #tpu.memory_space<vmem>>, %arg7: memref<10x24x128xbf16, #tpu.memory_space<vmem>>, %arg8: memref<64x128xf32, #tpu.memory_space<vmem>>) attributes {dimension_semantics = [#tpu.dimension_semantics<parallel>], iteration_bounds = array<i64: 2>, scalar_prefetch = 0 : i64, scratch_operands = 2 : i64, tpu.core_type = #tpu.core_type<tc>, window_params = [{transform_indices = @transform_0, window_bounds = array<i64: 1, 8, 8, 128>}, {pipeline_mode = #tpu.pipeline_mode<synchronous>, transform_indices = @transform_1, window_bounds = array<i64: 1, 128>}, {pipeline_mode = #tpu.pipeline_mode<synchronous>, transform_indices = @transform_2, window_bounds = array<i64: 1, 128>}, {pipeline_mode = #tpu.pipeline_mode<synchronous>, transform_indices = @transform_3, window_bounds = array<i64: 1152, 128>}, {transform_indices = @transform_4, window_bounds = array<i64: 1, 8, 8, 128>}, {transform_indices = @transform_5, window_bounds = array<i64: 1, 2, 128>}]} {
    %c0 = arith.constant 0 : index
    %c0_0 = arith.constant 0 : index
    %c0_1 = arith.constant 0 : index
    %c0_2 = arith.constant 0 : index
    %0 = vector.load %arg1[%c0, %c0_0, %c0_1, %c0_2] : memref<1x8x8x128xbf16, #tpu.memory_space<vmem>>, vector<1x8x8x128xbf16>
    %1 = vector.shape_cast %0 : vector<1x8x8x128xbf16> to vector<8x8x128xbf16>
    %2 = arith.extf %1 : vector<8x8x128xbf16> to vector<8x8x128xf32>
    %c0_3 = arith.constant 0 : index
    %c0_4 = arith.constant 0 : index
    %3 = vector.load %arg2[%c0_3, %c0_4] : memref<1x128xf32, #tpu.memory_space<vmem>>, vector<1x128xf32>
    %4 = vector.shape_cast %3 : vector<1x128xf32> to vector<1x1x128xf32>
    %5 = vector.broadcast %4 : vector<1x1x128xf32> to vector<8x8x128xf32>
    %6 = arith.mulf %2, %5 : vector<8x8x128xf32>
    %c0_5 = arith.constant 0 : index
    %c0_6 = arith.constant 0 : index
    %7 = vector.load %arg3[%c0_5, %c0_6] : memref<1x128xf32, #tpu.memory_space<vmem>>, vector<1x128xf32>
    %8 = vector.shape_cast %7 : vector<1x128xf32> to vector<1x1x128xf32>
    %9 = vector.broadcast %8 : vector<1x1x128xf32> to vector<8x8x128xf32>
    %10 = arith.addf %6, %9 : vector<8x8x128xf32>
    %cst = arith.constant 0.000000e+00 : f32
    %11 = vector.broadcast %cst : f32 to vector<8x8x128xf32>
    %12 = arith.maximumf %10, %11 : vector<8x8x128xf32>
    %cst_7 = arith.constant 0.000000e+00 : bf16
    %13 = vector.broadcast %cst_7 : bf16 to vector<1x24x128xbf16>
    %c0_8 = arith.constant 0 : index
    %c0_9 = arith.constant 0 : index
    %c0_10 = arith.constant 0 : index
    %14 = vector.load %arg7[%c0_8, %c0_9, %c0_10] : memref<10x24x128xbf16, #tpu.memory_space<vmem>>, vector<1x24x128xbf16>
    tpu.vector_store %arg7[%c0_8, %c0_9, %c0_10], %13 {strides = array<i32>} : memref<10x24x128xbf16, #tpu.memory_space<vmem>>, vector<1x24x128xbf16>,
    %c9 = arith.constant 9 : index
    %c0_11 = arith.constant 0 : index
    %c0_12 = arith.constant 0 : index
    %15 = vector.load %arg7[%c9, %c0_11, %c0_12] : memref<10x24x128xbf16, #tpu.memory_space<vmem>>, vector<1x24x128xbf16>
    tpu.vector_store %arg7[%c9, %c0_11, %c0_12], %13 {strides = array<i32>} : memref<10x24x128xbf16, #tpu.memory_space<vmem>>, vector<1x24x128xbf16>,
    %cst_13 = arith.constant 0.000000e+00 : bf16
    %16 = vector.broadcast %cst_13 : bf16 to vector<8x8x128xbf16>
    %c1 = arith.constant 1 : index
    %c0_14 = arith.constant 0 : index
    %c0_15 = arith.constant 0 : index
    %17 = vector.load %arg7[%c1, %c0_14, %c0_15] : memref<10x24x128xbf16, #tpu.memory_space<vmem>>, vector<8x8x128xbf16>
    tpu.vector_store %arg7[%c1, %c0_14, %c0_15], %16 {strides = array<i32>} : memref<10x24x128xbf16, #tpu.memory_space<vmem>>, vector<8x8x128xbf16>,
    %c1_16 = arith.constant 1 : index
    %c16 = arith.constant 16 : index
    %c0_17 = arith.constant 0 : index
    %18 = vector.load %arg7[%c1_16, %c16, %c0_17] : memref<10x24x128xbf16, #tpu.memory_space<vmem>>, vector<8x8x128xbf16>
    tpu.vector_store %arg7[%c1_16, %c16, %c0_17], %16 {strides = array<i32>} : memref<10x24x128xbf16, #tpu.memory_space<vmem>>, vector<8x8x128xbf16>,
    %19 = arith.truncf %12 : vector<8x8x128xf32> to vector<8x8x128xbf16>
    %c1_18 = arith.constant 1 : index
    %c8 = arith.constant 8 : index
    %c0_19 = arith.constant 0 : index
    %20 = vector.load %arg7[%c1_18, %c8, %c0_19] : memref<10x24x128xbf16, #tpu.memory_space<vmem>>, vector<8x8x128xbf16>
    tpu.vector_store %arg7[%c1_18, %c8, %c0_19], %19 {strides = array<i32>} : memref<10x24x128xbf16, #tpu.memory_space<vmem>>, vector<8x8x128xbf16>,
    %c0_20 = arith.constant 0 : index
    %c7 = arith.constant 7 : index
    %c0_21 = arith.constant 0 : index
    %21 = vector.load %arg7[%c0_20, %c7, %c0_21] : memref<10x24x128xbf16, #tpu.memory_space<vmem>>, vector<8x8x128xbf16>
    %22 = vector.shape_cast %21 : vector<8x8x128xbf16> to vector<64x128xbf16>
    %c0_22 = arith.constant 0 : index
    %c0_23 = arith.constant 0 : index
    %23 = vector.load %arg4[%c0_22, %c0_23] : memref<1152x128xbf16, #tpu.memory_space<vmem>>, vector<128x128xbf16>
    %cst_24 = arith.constant dense<0.000000e+00> : vector<64x128xf32>
    %24 = tpu.matmul %22, %23, %cst_24 {dimension_numbers = #tpu.dot_dimension_numbers<[1], [0], [0], [1], [0, 0, 1, 1], [], []>} : vector<64x128xbf16>, vector<128x128xbf16>, vector<64x128xf32> -> vector<64x128xf32>
    %c0_25 = arith.constant 0 : index
    %c0_26 = arith.constant 0 : index
    %25 = vector.load %arg8[%c0_25, %c0_26] : memref<64x128xf32, #tpu.memory_space<vmem>>, vector<64x128xf32>
    tpu.vector_store %arg8[%c0_25, %c0_26], %24 {strides = array<i32>} : memref<64x128xf32, #tpu.memory_space<vmem>>, vector<64x128xf32>,
    %c0_27 = arith.constant 0 : index
    %c8_28 = arith.constant 8 : index
    %c0_29 = arith.constant 0 : index
    %26 = vector.load %arg7[%c0_27, %c8_28, %c0_29] : memref<10x24x128xbf16, #tpu.memory_space<vmem>>, vector<8x8x128xbf16>
    %27 = vector.shape_cast %26 : vector<8x8x128xbf16> to vector<64x128xbf16>
    %c128 = arith.constant 128 : index
    %c0_30 = arith.constant 0 : index
    %28 = vector.load %arg4[%c128, %c0_30] : memref<1152x128xbf16, #tpu.memory_space<vmem>>, vector<128x128xbf16>
    %cst_31 = arith.constant dense<0.000000e+00> : vector<64x128xf32>
    %29 = tpu.matmul %27, %28, %cst_31 {dimension_numbers = #tpu.dot_dimension_numbers<[1], [0], [0], [1], [0, 0, 1, 1], [], []>} : vector<64x128xbf16>, vector<128x128xbf16>, vector<64x128xf32> -> vector<64x128xf32>
    %c0_32 = arith.constant 0 : index
    %c0_33 = arith.constant 0 : index
    %30 = vector.load %arg8[%c0_32, %c0_33] : memref<64x128xf32, #tpu.memory_space<vmem>>, vector<64x128xf32>
    %31 = arith.addf %30, %29 : vector<64x128xf32>
    %c0_34 = arith.constant 0 : index
    %c0_35 = arith.constant 0 : index
    %32 = vector.load %arg8[%c0_34, %c0_35] : memref<64x128xf32, #tpu.memory_space<vmem>>, vector<64x128xf32>
    tpu.vector_store %arg8[%c0_34, %c0_35], %31 {strides = array<i32>} : memref<64x128xf32, #tpu.memory_space<vmem>>, vector<64x128xf32>,
    %c0_36 = arith.constant 0 : index
    %c9_37 = arith.constant 9 : index
    %c0_38 = arith.constant 0 : index
    %33 = vector.load %arg7[%c0_36, %c9_37, %c0_38] : memref<10x24x128xbf16, #tpu.memory_space<vmem>>, vector<8x8x128xbf16>
    %34 = vector.shape_cast %33 : vector<8x8x128xbf16> to vector<64x128xbf16>
    %c256 = arith.constant 256 : index
    %c0_39 = arith.constant 0 : index
    %35 = vector.load %arg4[%c256, %c0_39] : memref<1152x128xbf16, #tpu.memory_space<vmem>>, vector<128x128xbf16>
    %cst_40 = arith.constant dense<0.000000e+00> : vector<64x128xf32>
    %36 = tpu.matmul %34, %35, %cst_40 {dimension_numbers = #tpu.dot_dimension_numbers<[1], [0], [0], [1], [0, 0, 1, 1], [], []>} : vector<64x128xbf16>, vector<128x128xbf16>, vector<64x128xf32> -> vector<64x128xf32>
    %c0_41 = arith.constant 0 : index
    %c0_42 = arith.constant 0 : index
    %37 = vector.load %arg8[%c0_41, %c0_42] : memref<64x128xf32, #tpu.memory_space<vmem>>, vector<64x128xf32>
    %38 = arith.addf %37, %36 : vector<64x128xf32>
    %c0_43 = arith.constant 0 : index
    %c0_44 = arith.constant 0 : index
    %39 = vector.load %arg8[%c0_43, %c0_44] : memref<64x128xf32, #tpu.memory_space<vmem>>, vector<64x128xf32>
    tpu.vector_store %arg8[%c0_43, %c0_44], %38 {strides = array<i32>} : memref<64x128xf32, #tpu.memory_space<vmem>>, vector<64x128xf32>,
    %c1_45 = arith.constant 1 : index
    %c7_46 = arith.constant 7 : index
    %c0_47 = arith.constant 0 : index
    %40 = vector.load %arg7[%c1_45, %c7_46, %c0_47] : memref<10x24x128xbf16, #tpu.memory_space<vmem>>, vector<8x8x128xbf16>
    %41 = vector.shape_cast %40 : vector<8x8x128xbf16> to vector<64x128xbf16>
    %c384 = arith.constant 384 : index
    %c0_48 = arith.constant 0 : index
    %42 = vector.load %arg4[%c384, %c0_48] : memref<1152x128xbf16, #tpu.memory_space<vmem>>, vector<128x128xbf16>
    %cst_49 = arith.constant dense<0.000000e+00> : vector<64x128xf32>
    %43 = tpu.matmul %41, %42, %cst_49 {dimension_numbers = #tpu.dot_dimension_numbers<[1], [0], [0], [1], [0, 0, 1, 1], [], []>} : vector<64x128xbf16>, vector<128x128xbf16>, vector<64x128xf32> -> vector<64x128xf32>
    %c0_50 = arith.constant 0 : index
    %c0_51 = arith.constant 0 : index
    %44 = vector.load %arg8[%c0_50, %c0_51] : memref<64x128xf32, #tpu.memory_space<vmem>>, vector<64x128xf32>
    %45 = arith.addf %44, %43 : vector<64x128xf32>
    %c0_52 = arith.constant 0 : index
    %c0_53 = arith.constant 0 : index
    %46 = vector.load %arg8[%c0_52, %c0_53] : memref<64x128xf32, #tpu.memory_space<vmem>>, vector<64x128xf32>
    tpu.vector_store %arg8[%c0_52, %c0_53], %45 {strides = array<i32>} : memref<64x128xf32, #tpu.memory_space<vmem>>, vector<64x128xf32>,
    %c1_54 = arith.constant 1 : index
    %c8_55 = arith.constant 8 : index
    %c0_56 = arith.constant 0 : index
    %47 = vector.load %arg7[%c1_54, %c8_55, %c0_56] : memref<10x24x128xbf16, #tpu.memory_space<vmem>>, vector<8x8x128xbf16>
    %48 = vector.shape_cast %47 : vector<8x8x128xbf16> to vector<64x128xbf16>
    %c512 = arith.constant 512 : index
    %c0_57 = arith.constant 0 : index
    %49 = vector.load %arg4[%c512, %c0_57] : memref<1152x128xbf16, #tpu.memory_space<vmem>>, vector<128x128xbf16>
    %cst_58 = arith.constant dense<0.000000e+00> : vector<64x128xf32>
    %50 = tpu.matmul %48, %49, %cst_58 {dimension_numbers = #tpu.dot_dimension_numbers<[1], [0], [0], [1], [0, 0, 1, 1], [], []>} : vector<64x128xbf16>, vector<128x128xbf16>, vector<64x128xf32> -> vector<64x128xf32>
    %c0_59 = arith.constant 0 : index
    %c0_60 = arith.constant 0 : index
    %51 = vector.load %arg8[%c0_59, %c0_60] : memref<64x128xf32, #tpu.memory_space<vmem>>, vector<64x128xf32>
    %52 = arith.addf %51, %50 : vector<64x128xf32>
    %c0_61 = arith.constant 0 : index
    %c0_62 = arith.constant 0 : index
    %53 = vector.load %arg8[%c0_61, %c0_62] : memref<64x128xf32, #tpu.memory_space<vmem>>, vector<64x128xf32>
    tpu.vector_store %arg8[%c0_61, %c0_62], %52 {strides = array<i32>} : memref<64x128xf32, #tpu.memory_space<vmem>>, vector<64x128xf32>,
    %c1_63 = arith.constant 1 : index
    %c9_64 = arith.constant 9 : index
    %c0_65 = arith.constant 0 : index
    %54 = vector.load %arg7[%c1_63, %c9_64, %c0_65] : memref<10x24x128xbf16, #tpu.memory_space<vmem>>, vector<8x8x128xbf16>
    %55 = vector.shape_cast %54 : vector<8x8x128xbf16> to vector<64x128xbf16>
    %c640 = arith.constant 640 : index
    %c0_66 = arith.constant 0 : index
    %56 = vector.load %arg4[%c640, %c0_66] : memref<1152x128xbf16, #tpu.memory_space<vmem>>, vector<128x128xbf16>
    %cst_67 = arith.constant dense<0.000000e+00> : vector<64x128xf32>
    %57 = tpu.matmul %55, %56, %cst_67 {dimension_numbers = #tpu.dot_dimension_numbers<[1], [0], [0], [1], [0, 0, 1, 1], [], []>} : vector<64x128xbf16>, vector<128x128xbf16>, vector<64x128xf32> -> vector<64x128xf32>
    %c0_68 = arith.constant 0 : index
    %c0_69 = arith.constant 0 : index
    %58 = vector.load %arg8[%c0_68, %c0_69] : memref<64x128xf32, #tpu.memory_space<vmem>>, vector<64x128xf32>
    %59 = arith.addf %58, %57 : vector<64x128xf32>
    %c0_70 = arith.constant 0 : index
    %c0_71 = arith.constant 0 : index
    %60 = vector.load %arg8[%c0_70, %c0_71] : memref<64x128xf32, #tpu.memory_space<vmem>>, vector<64x128xf32>
    tpu.vector_store %arg8[%c0_70, %c0_71], %59 {strides = array<i32>} : memref<64x128xf32, #tpu.memory_space<vmem>>, vector<64x128xf32>,
    %c2 = arith.constant 2 : index
    %c7_72 = arith.constant 7 : index
    %c0_73 = arith.constant 0 : index
    %61 = vector.load %arg7[%c2, %c7_72, %c0_73] : memref<10x24x128xbf16, #tpu.memory_space<vmem>>, vector<8x8x128xbf16>
    %62 = vector.shape_cast %61 : vector<8x8x128xbf16> to vector<64x128xbf16>
    %c768 = arith.constant 768 : index
    %c0_74 = arith.constant 0 : index
    %63 = vector.load %arg4[%c768, %c0_74] : memref<1152x128xbf16, #tpu.memory_space<vmem>>, vector<128x128xbf16>
    %cst_75 = arith.constant dense<0.000000e+00> : vector<64x128xf32>
    %64 = tpu.matmul %62, %63, %cst_75 {dimension_numbers = #tpu.dot_dimension_numbers<[1], [0], [0], [1], [0, 0, 1, 1], [], []>} : vector<64x128xbf16>, vector<128x128xbf16>, vector<64x128xf32> -> vector<64x128xf32>
    %c0_76 = arith.constant 0 : index
    %c0_77 = arith.constant 0 : index
    %65 = vector.load %arg8[%c0_76, %c0_77] : memref<64x128xf32, #tpu.memory_space<vmem>>, vector<64x128xf32>
    %66 = arith.addf %65, %64 : vector<64x128xf32>
    %c0_78 = arith.constant 0 : index
    %c0_79 = arith.constant 0 : index
    %67 = vector.load %arg8[%c0_78, %c0_79] : memref<64x128xf32, #tpu.memory_space<vmem>>, vector<64x128xf32>
    tpu.vector_store %arg8[%c0_78, %c0_79], %66 {strides = array<i32>} : memref<64x128xf32, #tpu.memory_space<vmem>>, vector<64x128xf32>,
    %c2_80 = arith.constant 2 : index
    %c8_81 = arith.constant 8 : index
    %c0_82 = arith.constant 0 : index
    %68 = vector.load %arg7[%c2_80, %c8_81, %c0_82] : memref<10x24x128xbf16, #tpu.memory_space<vmem>>, vector<8x8x128xbf16>
    %69 = vector.shape_cast %68 : vector<8x8x128xbf16> to vector<64x128xbf16>
    %c896 = arith.constant 896 : index
    %c0_83 = arith.constant 0 : index
    %70 = vector.load %arg4[%c896, %c0_83] : memref<1152x128xbf16, #tpu.memory_space<vmem>>, vector<128x128xbf16>
    %cst_84 = arith.constant dense<0.000000e+00> : vector<64x128xf32>
    %71 = tpu.matmul %69, %70, %cst_84 {dimension_numbers = #tpu.dot_dimension_numbers<[1], [0], [0], [1], [0, 0, 1, 1], [], []>} : vector<64x128xbf16>, vector<128x128xbf16>, vector<64x128xf32> -> vector<64x128xf32>
    %c0_85 = arith.constant 0 : index
    %c0_86 = arith.constant 0 : index
    %72 = vector.load %arg8[%c0_85, %c0_86] : memref<64x128xf32, #tpu.memory_space<vmem>>, vector<64x128xf32>
    %73 = arith.addf %72, %71 : vector<64x128xf32>
    %c0_87 = arith.constant 0 : index
    %c0_88 = arith.constant 0 : index
    %74 = vector.load %arg8[%c0_87, %c0_88] : memref<64x128xf32, #tpu.memory_space<vmem>>, vector<64x128xf32>
    tpu.vector_store %arg8[%c0_87, %c0_88], %73 {strides = array<i32>} : memref<64x128xf32, #tpu.memory_space<vmem>>, vector<64x128xf32>,
    %c2_89 = arith.constant 2 : index
    %c9_90 = arith.constant 9 : index
    %c0_91 = arith.constant 0 : index
    %75 = vector.load %arg7[%c2_89, %c9_90, %c0_91] : memref<10x24x128xbf16, #tpu.memory_space<vmem>>, vector<8x8x128xbf16>
    %76 = vector.shape_cast %75 : vector<8x8x128xbf16> to vector<64x128xbf16>
    %c1024 = arith.constant 1024 : index
    %c0_92 = arith.constant 0 : index
    %77 = vector.load %arg4[%c1024, %c0_92] : memref<1152x128xbf16, #tpu.memory_space<vmem>>, vector<128x128xbf16>
    %cst_93 = arith.constant dense<0.000000e+00> : vector<64x128xf32>
    %78 = tpu.matmul %76, %77, %cst_93 {dimension_numbers = #tpu.dot_dimension_numbers<[1], [0], [0], [1], [0, 0, 1, 1], [], []>} : vector<64x128xbf16>, vector<128x128xbf16>, vector<64x128xf32> -> vector<64x128xf32>
    %c0_94 = arith.constant 0 : index
    %c0_95 = arith.constant 0 : index
    %79 = vector.load %arg8[%c0_94, %c0_95] : memref<64x128xf32, #tpu.memory_space<vmem>>, vector<64x128xf32>
    %80 = arith.addf %79, %78 : vector<64x128xf32>
    %c0_96 = arith.constant 0 : index
    %c0_97 = arith.constant 0 : index
    %81 = vector.load %arg8[%c0_96, %c0_97] : memref<64x128xf32, #tpu.memory_space<vmem>>, vector<64x128xf32>
    tpu.vector_store %arg8[%c0_96, %c0_97], %80 {strides = array<i32>} : memref<64x128xf32, #tpu.memory_space<vmem>>, vector<64x128xf32>,
    %c0_98 = arith.constant 0 : index
    %c0_99 = arith.constant 0 : index
    %82 = vector.load %arg8[%c0_98, %c0_99] : memref<64x128xf32, #tpu.memory_space<vmem>>, vector<64x128xf32>
    %83 = vector.shape_cast %82 : vector<64x128xf32> to vector<1x8x8x128xf32>
    %84 = arith.truncf %83 : vector<1x8x8x128xf32> to vector<1x8x8x128xbf16>
    %c0_100 = arith.constant 0 : index
    %c0_101 = arith.constant 0 : index
    %c0_102 = arith.constant 0 : index
    %c0_103 = arith.constant 0 : index
    %85 = vector.load %arg5[%c0_100, %c0_101, %c0_102, %c0_103] : memref<1x8x8x128xbf16, #tpu.memory_space<vmem>>, vector<1x8x8x128xbf16>
    tpu.vector_store %arg5[%c0_100, %c0_101, %c0_102, %c0_103], %84 {strides = array<i32>} : memref<1x8x8x128xbf16, #tpu.memory_space<vmem>>, vector<1x8x8x128xbf16>,
    %cst_104 = arith.constant dense<0.000000e+00> : vector<128xf32>
    %86 = vector.multi_reduction <add>, %82, %cst_104 [0] : vector<64x128xf32> to vector<128xf32>
    %87 = vector.shape_cast %86 : vector<128xf32> to vector<1x128xf32>
    %88 = arith.mulf %82, %82 : vector<64x128xf32>
    %cst_105 = arith.constant dense<0.000000e+00> : vector<128xf32>
    %89 = vector.multi_reduction <add>, %88, %cst_105 [0] : vector<64x128xf32> to vector<128xf32>
    %90 = vector.shape_cast %89 : vector<128xf32> to vector<1x128xf32>
    %91 = tpu.concatenate %87, %90 in 0 : vector<1x128xf32>, vector<1x128xf32> -> vector<2x128xf32>
    %92 = vector.shape_cast %91 : vector<2x128xf32> to vector<1x2x128xf32>
    %c0_106 = arith.constant 0 : index
    %c0_107 = arith.constant 0 : index
    %c0_108 = arith.constant 0 : index
    %93 = vector.load %arg6[%c0_106, %c0_107, %c0_108] : memref<1x2x128xf32, #tpu.memory_space<vmem>>, vector<1x2x128xf32>
    tpu.vector_store %arg6[%c0_106, %c0_107, %c0_108], %92 {strides = array<i32>} : memref<1x2x128xf32, #tpu.memory_space<vmem>>, vector<1x2x128xf32>,
    return
  }
  func.func @transform_0(%arg0: i32) -> (i32, i32, i32, i32) {
    %c0_i32 = arith.constant 0 : i32
    %c0_i32_0 = arith.constant 0 : i32
    %c0_i32_1 = arith.constant 0 : i32
    %c0_i32_2 = arith.constant 0 : i32
    return %arg0, %c0_i32, %c0_i32_0, %c0_i32_1 : i32, i32, i32, i32
  }
  func.func @transform_1(%arg0: i32) -> (i32, i32) {
    %c0_i32 = arith.constant 0 : i32
    %c0_i32_0 = arith.constant 0 : i32
    %c0_i32_1 = arith.constant 0 : i32
    return %c0_i32, %c0_i32_0 : i32, i32
  }
  func.func @transform_2(%arg0: i32) -> (i32, i32) {
    %c0_i32 = arith.constant 0 : i32
    %c0_i32_0 = arith.constant 0 : i32
    %c0_i32_1 = arith.constant 0 : i32
    return %c0_i32, %c0_i32_0 : i32, i32
  }
  func.func @transform_3(%arg0: i32) -> (i32, i32) {
    %c0_i32 = arith.constant 0 : i32
    %c0_i32_0 = arith.constant 0 : i32
    %c0_i32_1 = arith.constant 0 : i32
    return %c0_i32, %c0_i32_0 : i32, i32
  }
  func.func @transform_4(%arg0: i32) -> (i32, i32, i32, i32) {
    %c0_i32 = arith.constant 0 : i32
    %c0_i32_0 = arith.constant 0 : i32
    %c0_i32_1 = arith.constant 0 : i32
    %c0_i32_2 = arith.constant 0 : i32
    return %arg0, %c0_i32, %c0_i32_0, %c0_i32_1 : i32, i32, i32, i32
  }
  func.func @transform_5(%arg0: i32) -> (i32, i32, i32) {
    %c0_i32 = arith.constant 0 : i32
    %c0_i32_0 = arith.constant 0 : i32
    %c0_i32_1 = arith.constant 0 : i32
    return %arg0, %c0_i32, %c0_i32_0 : i32, i32, i32
  }
}

module attributes {stable_mosaic.version = 11 : i64} {
  func.func @_bn_conv1x1_stats_kernel(%arg0: i32, %arg1: memref<128x128xbf16, #tpu.memory_space<vmem>>, %arg2: memref<1x128xf32, #tpu.memory_space<vmem>>, %arg3: memref<1x128xf32, #tpu.memory_space<vmem>>, %arg4: memref<128x128xbf16, #tpu.memory_space<vmem>>, %arg5: memref<128x128xbf16, #tpu.memory_space<vmem>>, %arg6: memref<1x2x128xf32, #tpu.memory_space<vmem>>) attributes {dimension_semantics = [#tpu.dimension_semantics<parallel>], iteration_bounds = array<i64: 1>, scalar_prefetch = 0 : i64, scratch_operands = 0 : i64, tpu.core_type = #tpu.core_type<tc>, window_params = [{transform_indices = @transform_0, window_bounds = array<i64: 128, 128>}, {pipeline_mode = #tpu.pipeline_mode<synchronous>, transform_indices = @transform_1, window_bounds = array<i64: 1, 128>}, {pipeline_mode = #tpu.pipeline_mode<synchronous>, transform_indices = @transform_2, window_bounds = array<i64: 1, 128>}, {pipeline_mode = #tpu.pipeline_mode<synchronous>, transform_indices = @transform_3, window_bounds = array<i64: 128, 128>}, {transform_indices = @transform_4, window_bounds = array<i64: 128, 128>}, {transform_indices = @transform_5, window_bounds = array<i64: 1, 2, 128>}]} {
    %c0 = arith.constant 0 : index
    %c0_0 = arith.constant 0 : index
    %0 = vector.load %arg1[%c0, %c0_0] : memref<128x128xbf16, #tpu.memory_space<vmem>>, vector<128x128xbf16>
    %1 = arith.extf %0 : vector<128x128xbf16> to vector<128x128xf32>
    %c0_1 = arith.constant 0 : index
    %c0_2 = arith.constant 0 : index
    %2 = vector.load %arg2[%c0_1, %c0_2] : memref<1x128xf32, #tpu.memory_space<vmem>>, vector<1x128xf32>
    %3 = vector.broadcast %2 : vector<1x128xf32> to vector<128x128xf32>
    %4 = arith.mulf %1, %3 : vector<128x128xf32>
    %c0_3 = arith.constant 0 : index
    %c0_4 = arith.constant 0 : index
    %5 = vector.load %arg3[%c0_3, %c0_4] : memref<1x128xf32, #tpu.memory_space<vmem>>, vector<1x128xf32>
    %6 = vector.broadcast %5 : vector<1x128xf32> to vector<128x128xf32>
    %7 = arith.addf %4, %6 : vector<128x128xf32>
    %cst = arith.constant 0.000000e+00 : f32
    %8 = vector.broadcast %cst : f32 to vector<128x128xf32>
    %9 = arith.maximumf %7, %8 : vector<128x128xf32>
    %10 = arith.truncf %9 : vector<128x128xf32> to vector<128x128xbf16>
    %c0_5 = arith.constant 0 : index
    %c0_6 = arith.constant 0 : index
    %11 = vector.load %arg4[%c0_5, %c0_6] : memref<128x128xbf16, #tpu.memory_space<vmem>>, vector<128x128xbf16>
    %cst_7 = arith.constant dense<0.000000e+00> : vector<128x128xf32>
    %12 = tpu.matmul %10, %11, %cst_7 {dimension_numbers = #tpu.dot_dimension_numbers<[1], [0], [0], [1], [0, 0, 1, 1], [], []>} : vector<128x128xbf16>, vector<128x128xbf16>, vector<128x128xf32> -> vector<128x128xf32>
    %13 = arith.truncf %12 : vector<128x128xf32> to vector<128x128xbf16>
    %c0_8 = arith.constant 0 : index
    %c0_9 = arith.constant 0 : index
    %14 = vector.load %arg5[%c0_8, %c0_9] : memref<128x128xbf16, #tpu.memory_space<vmem>>, vector<128x128xbf16>
    tpu.vector_store %arg5[%c0_8, %c0_9], %13 {strides = array<i32>} : memref<128x128xbf16, #tpu.memory_space<vmem>>, vector<128x128xbf16>,
    %cst_10 = arith.constant dense<0.000000e+00> : vector<128xf32>
    %15 = vector.multi_reduction <add>, %12, %cst_10 [0] : vector<128x128xf32> to vector<128xf32>
    %16 = vector.shape_cast %15 : vector<128xf32> to vector<1x128xf32>
    %17 = arith.mulf %12, %12 : vector<128x128xf32>
    %cst_11 = arith.constant dense<0.000000e+00> : vector<128xf32>
    %18 = vector.multi_reduction <add>, %17, %cst_11 [0] : vector<128x128xf32> to vector<128xf32>
    %19 = vector.shape_cast %18 : vector<128xf32> to vector<1x128xf32>
    %20 = tpu.concatenate %16, %19 in 0 : vector<1x128xf32>, vector<1x128xf32> -> vector<2x128xf32>
    %21 = vector.shape_cast %20 : vector<2x128xf32> to vector<1x2x128xf32>
    %c0_12 = arith.constant 0 : index
    %c0_13 = arith.constant 0 : index
    %c0_14 = arith.constant 0 : index
    %22 = vector.load %arg6[%c0_12, %c0_13, %c0_14] : memref<1x2x128xf32, #tpu.memory_space<vmem>>, vector<1x2x128xf32>
    tpu.vector_store %arg6[%c0_12, %c0_13, %c0_14], %21 {strides = array<i32>} : memref<1x2x128xf32, #tpu.memory_space<vmem>>, vector<1x2x128xf32>,
    return
  }
  func.func @transform_0(%arg0: i32) -> (i32, i32) {
    %c0_i32 = arith.constant 0 : i32
    %c0_i32_0 = arith.constant 0 : i32
    return %arg0, %c0_i32 : i32, i32
  }
  func.func @transform_1(%arg0: i32) -> (i32, i32) {
    %c0_i32 = arith.constant 0 : i32
    %c0_i32_0 = arith.constant 0 : i32
    %c0_i32_1 = arith.constant 0 : i32
    return %c0_i32, %c0_i32_0 : i32, i32
  }
  func.func @transform_2(%arg0: i32) -> (i32, i32) {
    %c0_i32 = arith.constant 0 : i32
    %c0_i32_0 = arith.constant 0 : i32
    %c0_i32_1 = arith.constant 0 : i32
    return %c0_i32, %c0_i32_0 : i32, i32
  }
  func.func @transform_3(%arg0: i32) -> (i32, i32) {
    %c0_i32 = arith.constant 0 : i32
    %c0_i32_0 = arith.constant 0 : i32
    %c0_i32_1 = arith.constant 0 : i32
    return %c0_i32, %c0_i32_0 : i32, i32
  }
  func.func @transform_4(%arg0: i32) -> (i32, i32) {
    %c0_i32 = arith.constant 0 : i32
    %c0_i32_0 = arith.constant 0 : i32
    return %arg0, %c0_i32 : i32, i32
  }
  func.func @transform_5(%arg0: i32) -> (i32, i32, i32) {
    %c0_i32 = arith.constant 0 : i32
    %c0_i32_0 = arith.constant 0 : i32
    %c0_i32_1 = arith.constant 0 : i32
    return %arg0, %c0_i32, %c0_i32_0 : i32, i32, i32
  }
}

</mosaic_0001>

<llo_original>
// kernel: bottleneck_forward.7
$region0: #{bottleneck_forward.7}
  #allocation0 [shape = 'u32[]', space=smem, size = 0x4, offset = 0x4, fixed_abs, tag = 'smem constant byte address 0x4 - core index']
  #allocation1 [shape = 'u32[144,128]{1,0:T(1,128)}', space=vmem, size = 0x12000, scoped, tag = 'internal scratch']
  %s0 = inlined_call_operand.vmem [shape: bf16[128,128], index: 0, kind: input, shape index: {}]
  %s1 = inlined_call_operand.vmem [shape: f32[128,128], index: 1, kind: input, shape index: {}]
  %s2 = inlined_call_operand.vmem [shape: f32[1,128], index: 2, kind: input, shape index: {}]
  %s3 = inlined_call_operand.vmem [shape: f32[1,128], index: 3, kind: input, shape index: {}]
  %s4 = inlined_call_operand.vmem [shape: f32[128,128], index: 4, kind: output, shape index: {}]
  %s5 = sld [smem:[#allocation0]]
  $region26: #{bottleneck_forward.7} parent=0
    _
  %s7 = ssub.s32 1, %s5
  %s8 = scalar_select 0, %s7, %s5
  // Predicated region
  $region2: #{bottleneck_forward.7} parent=0 // pred_check
    _
  $region3: #{bottleneck_forward.7} parent=0 // pred_check_branch
    %10 = sbr.rel (0) target = $region5
  $region4: #{bottleneck_forward.7} parent=0 // pred_region
    _
  $region5: #{bottleneck_forward.7} parent=0 // pred_fallthru
    _
  // Predicated region
  $region6: #{bottleneck_forward.7} parent=0 // pred_check
    _
  $region7: #{bottleneck_forward.7} parent=0 // pred_check_branch
    %12 = sbr.rel (0) target = $region9
  $region8: #{bottleneck_forward.7} parent=0 // pred_region
    _
  $region9: #{bottleneck_forward.7} parent=0 // pred_fallthru
    _
  // Predicated region
  $region10: #{bottleneck_forward.7} parent=0 // pred_check
    _
  $region11: #{bottleneck_forward.7} parent=0 // pred_check_branch
    %14 = sbr.rel (0) target = $region13
  $region12: #{bottleneck_forward.7} parent=0 // pred_region
    _
  $region13: #{bottleneck_forward.7} parent=0 // pred_fallthru
    _
  // Predicated region
  $region14: #{bottleneck_forward.7} parent=0 // pred_check
    _
  $region15: #{bottleneck_forward.7} parent=0 // pred_check_branch
    %16 = sbr.rel (0) target = $region17
  $region16: #{bottleneck_forward.7} parent=0 // pred_region
    _
  $region17: #{bottleneck_forward.7} parent=0 // pred_fallthru
    _
  %v17 = vld [vmem:[%s0] sm:$0xf]
  %v18 = vld [vmem:[%s0 + $0x4] sm:$0xf]
  %v19 = vld [vmem:[%s0 + $0x8] sm:$0xf]
  %v20 = vld [vmem:[%s0 + $0xc] sm:$0xf]
  %v21 = vld [vmem:[%s0 + $0x10] sm:$0xf]
  %v22 = vld [vmem:[%s0 + $0x14] sm:$0xf]
  %v23 = vld [vmem:[%s0 + $0x18] sm:$0xf]
  %v24 = vld [vmem:[%s0 + $0x1c] sm:$0xf]
  %v25 = vld [vmem:[%s0 + $0x20] sm:$0xf]
  %v26 = vld [vmem:[%s0 + $0x24] sm:$0xf]
  %v27 = vld [vmem:[%s0 + $0x28] sm:$0xf]
  %v28 = vld [vmem:[%s0 + $0x2c] sm:$0xf]
  %v29 = vld [vmem:[%s0 + $0x30] sm:$0xf]
  %v30 = vld [vmem:[%s0 + $0x34] sm:$0xf]
  %v31 = vld [vmem:[%s0 + $0x38] sm:$0xf]
  %v32 = vld [vmem:[%s0 + $0x3c] sm:$0xf]
  %v33 = vunpack.c.l.bf16 %v17
  %v34 = vunpack.c.l.bf16 %v18
  %v35 = vunpack.c.l.bf16 %v19
  %v36 = vunpack.c.l.bf16 %v20
  %v37 = vunpack.c.l.bf16 %v21
  %v38 = vunpack.c.l.bf16 %v22
  %v39 = vunpack.c.l.bf16 %v23
  %v40 = vunpack.c.l.bf16 %v24
  %v41 = vunpack.c.l.bf16 %v25
  %v42 = vunpack.c.l.bf16 %v26
  %v43 = vunpack.c.l.bf16 %v27
  %v44 = vunpack.c.l.bf16 %v28
  %v45 = vunpack.c.l.bf16 %v29
  %v46 = vunpack.c.l.bf16 %v30
  %v47 = vunpack.c.l.bf16 %v31
  %v48 = vunpack.c.l.bf16 %v32
  %v49 = vld [vmem:[%s2] sm:$0x1]
  %v51 = vlaneseq
  %v52 = vshrl.u32 %v51, 7
  %v53 = vsub.s32 0, %v52
  %v54 = vrot.slane %v49, %v53
  %v56 = vmul.f32 %v33, %v54
  %v57 = vmul.f32 %v34, %v54
  %v58 = vmul.f32 %v35, %v54
  %v59 = vmul.f32 %v36, %v54
  %v60 = vmul.f32 %v37, %v54
  %v61 = vmul.f32 %v38, %v54
  %v62 = vmul.f32 %v39, %v54
  %v63 = vmul.f32 %v40, %v54
  %v64 = vmul.f32 %v41, %v54
  %v65 = vmul.f32 %v42, %v54
  %v66 = vmul.f32 %v43, %v54
  %v67 = vmul.f32 %v44, %v54
  %v68 = vmul.f32 %v45, %v54
  %v69 = vmul.f32 %v46, %v54
  %v70 = vmul.f32 %v47, %v54
  %v71 = vmul.f32 %v48, %v54
  %v72 = vld [vmem:[%s3] sm:$0x1]
  %v74 = vlaneseq
  %v75 = vshrl.u32 %v74, 7
  %v76 = vsub.s32 0, %v75
  %v77 = vrot.slane %v72, %v76
  %v79 = vadd.f32 %v56, %v77
  %v80 = vadd.f32 %v57, %v77
  %v81 = vadd.f32 %v58, %v77
  %v82 = vadd.f32 %v59, %v77
  %v83 = vadd.f32 %v60, %v77
  %v84 = vadd.f32 %v61, %v77
  %v85 = vadd.f32 %v62, %v77
  %v86 = vadd.f32 %v63, %v77
  %v87 = vadd.f32 %v64, %v77
  %v88 = vadd.f32 %v65, %v77
  %v89 = vadd.f32 %v66, %v77
  %v90 = vadd.f32 %v67, %v77
  %v91 = vadd.f32 %v68, %v77
  %v92 = vadd.f32 %v69, %v77
  %v93 = vadd.f32 %v70, %v77
  %v94 = vadd.f32 %v71, %v77
  %v95 = vld [vmem:[%s1] sm:$0xff]
  %v96 = vld [vmem:[%s1 + $0x8] sm:$0xff]
  %v97 = vld [vmem:[%s1 + $0x10] sm:$0xff]
  %v98 = vld [vmem:[%s1 + $0x18] sm:$0xff]
  %v99 = vld [vmem:[%s1 + $0x20] sm:$0xff]
  %v100 = vld [vmem:[%s1 + $0x28] sm:$0xff]
  %v101 = vld [vmem:[%s1 + $0x30] sm:$0xff]
  %v102 = vld [vmem:[%s1 + $0x38] sm:$0xff]
  %v103 = vld [vmem:[%s1 + $0x40] sm:$0xff]
  %v104 = vld [vmem:[%s1 + $0x48] sm:$0xff]
  %v105 = vld [vmem:[%s1 + $0x50] sm:$0xff]
  %v106 = vld [vmem:[%s1 + $0x58] sm:$0xff]
  %v107 = vld [vmem:[%s1 + $0x60] sm:$0xff]
  %v108 = vld [vmem:[%s1 + $0x68] sm:$0xff]
  %v109 = vld [vmem:[%s1 + $0x70] sm:$0xff]
  %v110 = vld [vmem:[%s1 + $0x78] sm:$0xff]
  %v111 = vadd.f32 %v79, %v95
  %v112 = vadd.f32 %v80, %v96
  %v113 = vadd.f32 %v81, %v97
  %v114 = vadd.f32 %v82, %v98
  %v115 = vadd.f32 %v83, %v99
  %v116 = vadd.f32 %v84, %v100
  %v117 = vadd.f32 %v85, %v101
  %v118 = vadd.f32 %v86, %v102
  %v119 = vadd.f32 %v87, %v103
  %v120 = vadd.f32 %v88, %v104
  %v121 = vadd.f32 %v89, %v105
  %v122 = vadd.f32 %v90, %v106
  %v123 = vadd.f32 %v91, %v107
  %v124 = vadd.f32 %v92, %v108
  %v125 = vadd.f32 %v93, %v109
  %v126 = vadd.f32 %v94, %v110
  %v127 = vmax.f32 %v111, 0.0
  %v128 = vmax.f32 %v112, 0.0
  %v129 = vmax.f32 %v113, 0.0
  %v130 = vmax.f32 %v114, 0.0
  %v131 = vmax.f32 %v115, 0.0
  %v132 = vmax.f32 %v116, 0.0
  %v133 = vmax.f32 %v117, 0.0
  %v134 = vmax.f32 %v118, 0.0
  %v135 = vmax.f32 %v119, 0.0
  %v136 = vmax.f32 %v120, 0.0
  %v137 = vmax.f32 %v121, 0.0
  %v138 = vmax.f32 %v122, 0.0
  %v139 = vmax.f32 %v123, 0.0
  %v140 = vmax.f32 %v124, 0.0
  %v141 = vmax.f32 %v125, 0.0
  %v142 = vmax.f32 %v126, 0.0
  %143 = vst [vmem:[%s4] sm:$0xff] %v127
  %144 = vst [vmem:[%s4 + $0x8] sm:$0xff] %v128
  %145 = vst [vmem:[%s4 + $0x10] sm:$0xff] %v129
  %146 = vst [vmem:[%s4 + $0x18] sm:$0xff] %v130
  %147 = vst [vmem:[%s4 + $0x20] sm:$0xff] %v131
  %148 = vst [vmem:[%s4 + $0x28] sm:$0xff] %v132
  %149 = vst [vmem:[%s4 + $0x30] sm:$0xff] %v133
  %150 = vst [vmem:[%s4 + $0x38] sm:$0xff] %v134
  %151 = vst [vmem:[%s4 + $0x40] sm:$0xff] %v135
  %152 = vst [vmem:[%s4 + $0x48] sm:$0xff] %v136
  %153 = vst [vmem:[%s4 + $0x50] sm:$0xff] %v137
  %154 = vst [vmem:[%s4 + $0x58] sm:$0xff] %v138
  %155 = vst [vmem:[%s4 + $0x60] sm:$0xff] %v139
  %156 = vst [vmem:[%s4 + $0x68] sm:$0xff] %v140
  %157 = vst [vmem:[%s4 + $0x70] sm:$0xff] %v141
  %158 = vst [vmem:[%s4 + $0x78] sm:$0xff] %v142
  // Predicated region
  $region18: #{bottleneck_forward.7} parent=0 // pred_check
    _
  $region19: #{bottleneck_forward.7} parent=0 // pred_check_branch
    %160 = sbr.rel (0) target = $region21
  $region20: #{bottleneck_forward.7} parent=0 // pred_region
    _
  $region21: #{bottleneck_forward.7} parent=0 // pred_fallthru
    _
  // Predicated region
  $region22: #{bottleneck_forward.7} parent=0 // pred_check
    _
  $region23: #{bottleneck_forward.7} parent=0 // pred_check_branch
    %162 = sbr.rel (0) target = $region25
  $region24: #{bottleneck_forward.7} parent=0 // pred_region
    _
  $region25: #{bottleneck_forward.7} parent=0 // pred_fallthru
    _

// kernel: bottleneck_forward.4
$region0: #{bottleneck_forward.4}
  #allocation0 [shape = 'u32[]', space=smem, size = 0x4, offset = 0x4, fixed_abs, tag = 'smem constant byte address 0x4 - core index']
  #allocation1 [shape = 'u32[144,128]{1,0:T(1,128)}', space=vmem, size = 0x12000, scoped, tag = 'internal scratch']
  %s0 = inlined_call_operand.vmem [shape: f32[128,128], index: 0, kind: input, shape index: {}]
  %s1 = inlined_call_operand.vmem [shape: bf16[128,128], index: 1, kind: input, shape index: {}]
  %s2 = inlined_call_operand.vmem [shape: bf16[128,128], index: 2, kind: output, shape index: {0}]
  %s3 = inlined_call_operand.vmem [shape: f32[1,2,128], index: 3, kind: output, shape index: {1}]
  %4 = xla_tuple %s2, %s3
  %s5 = sld [smem:[#allocation0]]
  $region26: #{bottleneck_forward.4} parent=0
    _
  %s7 = ssub.s32 1, %s5
  %s8 = scalar_select 0, %s7, %s5
  // Predicated region
  $region2: #{bottleneck_forward.4} parent=0 // pred_check
    _
  $region3: #{bottleneck_forward.4} parent=0 // pred_check_branch
    %10 = sbr.rel (0) target = $region5
  $region4: #{bottleneck_forward.4} parent=0 // pred_region
    _
  $region5: #{bottleneck_forward.4} parent=0 // pred_fallthru
    _
  // Predicated region
  $region6: #{bottleneck_forward.4} parent=0 // pred_check
    _
  $region7: #{bottleneck_forward.4} parent=0 // pred_check_branch
    %12 = sbr.rel (0) target = $region9
  $region8: #{bottleneck_forward.4} parent=0 // pred_region
    _
  $region9: #{bottleneck_forward.4} parent=0 // pred_fallthru
    _
  %v14 = vld [vmem:[%s0] sm:$0xff]
  %v15 = vld [vmem:[%s0 + $0x8] sm:$0xff]
  %v16 = vld [vmem:[%s0 + $0x10] sm:$0xff]
  %v17 = vld [vmem:[%s0 + $0x18] sm:$0xff]
  %v18 = vld [vmem:[%s0 + $0x20] sm:$0xff]
  %v19 = vld [vmem:[%s0 + $0x28] sm:$0xff]
  %v20 = vld [vmem:[%s0 + $0x30] sm:$0xff]
  %v21 = vld [vmem:[%s0 + $0x38] sm:$0xff]
  %v22 = vld [vmem:[%s0 + $0x40] sm:$0xff]
  %v23 = vld [vmem:[%s0 + $0x48] sm:$0xff]
  %v24 = vld [vmem:[%s0 + $0x50] sm:$0xff]
  %v25 = vld [vmem:[%s0 + $0x58] sm:$0xff]
  %v26 = vld [vmem:[%s0 + $0x60] sm:$0xff]
  %v27 = vld [vmem:[%s0 + $0x68] sm:$0xff]
  %v28 = vld [vmem:[%s0 + $0x70] sm:$0xff]
  %v29 = vld [vmem:[%s0 + $0x78] sm:$0xff]
  %v30 = vpack.c.bf16 %v15, %v14
  %v31 = vpack.c.bf16 %v17, %v16
  %v32 = vpack.c.bf16 %v19, %v18
  %v33 = vpack.c.bf16 %v21, %v20
  %v34 = vpack.c.bf16 %v23, %v22
  %v35 = vpack.c.bf16 %v25, %v24
  %v36 = vpack.c.bf16 %v27, %v26
  %v37 = vpack.c.bf16 %v29, %v28
  %v38 = vld [vmem:[%s1] sm:$0xf]
  %v39 = vld [vmem:[%s1 + $0x4] sm:$0xf]
  %v40 = vld [vmem:[%s1 + $0x8] sm:$0xf]
  %v41 = vld [vmem:[%s1 + $0xc] sm:$0xf]
  %v42 = vld [vmem:[%s1 + $0x10] sm:$0xf]
  %v43 = vld [vmem:[%s1 + $0x14] sm:$0xf]
  %v44 = vld [vmem:[%s1 + $0x18] sm:$0xf]
  %v45 = vld [vmem:[%s1 + $0x1c] sm:$0xf]
  %v46 = vld [vmem:[%s1 + $0x20] sm:$0xf]
  %v47 = vld [vmem:[%s1 + $0x24] sm:$0xf]
  %v48 = vld [vmem:[%s1 + $0x28] sm:$0xf]
  %v49 = vld [vmem:[%s1 + $0x2c] sm:$0xf]
  %v50 = vld [vmem:[%s1 + $0x30] sm:$0xf]
  %v51 = vld [vmem:[%s1 + $0x34] sm:$0xf]
  %v52 = vld [vmem:[%s1 + $0x38] sm:$0xf]
  %v53 = vld [vmem:[%s1 + $0x3c] sm:$0xf]
  %v70 = vunpack.c.l.b16 %v38
  %v71 = vunpack.c.l.b16 %v39
  %v72 = vunpack.c.l.b16 %v40
  %v73 = vunpack.c.l.b16 %v41
  %v74 = vunpack.c.l.b16 %v42
  %v75 = vunpack.c.l.b16 %v43
  %v76 = vunpack.c.l.b16 %v44
  %v77 = vunpack.c.l.b16 %v45
  %v78 = vunpack.c.l.b16 %v46
  %v79 = vunpack.c.l.b16 %v47
  %v80 = vunpack.c.l.b16 %v48
  %v81 = vunpack.c.l.b16 %v49
  %v82 = vunpack.c.l.b16 %v50
  %v83 = vunpack.c.l.b16 %v51
  %v84 = vunpack.c.l.b16 %v52
  %v85 = vunpack.c.l.b16 %v53
  %v86 = vpack.c.b16 %v71, %v70
  %v87 = vpack.c.b16 %v73, %v72
  %v88 = vpack.c.b16 %v75, %v74
  %v89 = vpack.c.b16 %v77, %v76
  %v90 = vpack.c.b16 %v79, %v78
  %v91 = vpack.c.b16 %v81, %v80
  %v92 = vpack.c.b16 %v83, %v82
  %v93 = vpack.c.b16 %v85, %v84
  %102 = vmatprep.subr.bf16.mxu0 0
  %103 = vmatpush1.bf16.msra.mxu0 %v93
  %104 = vmatprep.subr.bf16.mxu0 0
  %105 = vmatpush1.bf16.msra.mxu0 %v92
  %106 = vmatprep.subr.bf16.mxu0 0
  %107 = vmatpush1.bf16.msra.mxu0 %v91
  %108 = vmatprep.subr.bf16.mxu0 0
  %109 = vmatpush1.bf16.msra.mxu0 %v90
  %110 = vmatprep.subr.bf16.mxu0 0
  %111 = vmatpush1.bf16.msra.mxu0 %v89
  %112 = vmatprep.subr.bf16.mxu0 0
  %113 = vmatpush1.bf16.msra.mxu0 %v88
  %114 = vmatprep.subr.bf16.mxu0 0
  %115 = vmatpush1.bf16.msra.mxu0 %v87
  %116 = vmatprep.subr.bf16.mxu0 0
  %117 = vmatpush1.bf16.msra.mxu0 %v86
  %118 = vmatprep.subr.bf16.mxu0 0
  %119 = vmatpush2.bf16.msra.mxu0 0
  %120 = vmatprep.subr.bf16.mxu0 0
  %121 = vmatpush2.bf16.msra.mxu0 0
  %122 = vmatprep.subr.bf16.mxu0 0
  %123 = vmatpush2.bf16.msra.mxu0 0
  %124 = vmatprep.subr.bf16.mxu0 0
  %125 = vmatpush2.bf16.msra.mxu0 0
  %126 = vmatprep.subr.bf16.mxu0 0
  %127 = vmatpush2.bf16.msra.mxu0 0
  %128 = vmatprep.subr.bf16.mxu0 0
  %129 = vmatpush2.bf16.msra.mxu0 0
  %130 = vmatprep.subr.bf16.mxu0 0
  %131 = vmatpush2.bf16.msra.mxu0 0
  %132 = vmatprep.subr.bf16.mxu0 0
  %133 = vmatpush2.bf16.msra.mxu0 0
  %134 = vmatprep.mubr.bf16.mxu0 0
  %135 = vmatmul.mubr.bf16.gmra.mxu0 %v30
  %v136 = vpop.f32.mrf.mxu0
  %v137 = vadd.f32 0.0, %v136
  %v138 = vpop.f32.mrf.mxu0
  %v139 = vpop.f32.mrf.mxu0
  %v140 = vadd.f32 0.0, %v139
  %v141 = vpop.f32.mrf.mxu0
  %142 = vmatprep.mubr.bf16.mxu0 0
  %143 = vmatmul.mubr.bf16.gmra.mxu0 %v31
  %v144 = vpop.f32.mrf.mxu0
  %v145 = vadd.f32 0.0, %v144
  %v146 = vpop.f32.mrf.mxu0
  %v147 = vpop.f32.mrf.mxu0
  %v148 = vadd.f32 0.0, %v147
  %v149 = vpop.f32.mrf.mxu0
  %150 = vmatprep.mubr.bf16.mxu0 0
  %151 = vmatmul.mubr.bf16.gmra.mxu0 %v32
  %v152 = vpop.f32.mrf.mxu0
  %v153 = vadd.f32 0.0, %v152
  %v154 = vpop.f32.mrf.mxu0
  %v155 = vpop.f32.mrf.mxu0
  %v156 = vadd.f32 0.0, %v155
  %v157 = vpop.f32.mrf.mxu0
  %158 = vmatprep.mubr.bf16.mxu0 0
  %159 = vmatmul.mubr.bf16.gmra.mxu0 %v33
  %v160 = vpop.f32.mrf.mxu0
  %v161 = vadd.f32 0.0, %v160
  %v162 = vpop.f32.mrf.mxu0
  %v163 = vpop.f32.mrf.mxu0
  %v164 = vadd.f32 0.0, %v163
  %v165 = vpop.f32.mrf.mxu0
  %166 = vmatprep.mubr.bf16.mxu0 0
  %167 = vmatmul.mubr.bf16.gmra.mxu0 %v34
  %v168 = vpop.f32.mrf.mxu0
  %v169 = vadd.f32 0.0, %v168
  %v170 = vpop.f32.mrf.mxu0
  %v171 = vpop.f32.mrf.mxu0
  %v172 = vadd.f32 0.0, %v171
  %v173 = vpop.f32.mrf.mxu0
  %174 = vmatprep.mubr.bf16.mxu0 0
  %175 = vmatmul.mubr.bf16.gmra.mxu0 %v35
  %v176 = vpop.f32.mrf.mxu0
  %v177 = vadd.f32 0.0, %v176
  %v178 = vpop.f32.mrf.mxu0
  %v179 = vpop.f32.mrf.mxu0
  %v180 = vadd.f32 0.0, %v179
  %v181 = vpop.f32.mrf.mxu0
  %182 = vmatprep.mubr.bf16.mxu0 0
  %183 = vmatmul.mubr.bf16.gmra.mxu0 %v36
  %v184 = vpop.f32.mrf.mxu0
  %v185 = vadd.f32 0.0, %v184
  %v186 = vpop.f32.mrf.mxu0
  %v187 = vpop.f32.mrf.mxu0
  %v188 = vadd.f32 0.0, %v187
  %v189 = vpop.f32.mrf.mxu0
  %190 = vmatprep.mubr.bf16.mxu0 0
  %191 = vmatmul.mubr.bf16.gmra.mxu0 %v37
  %v192 = vpop.f32.mrf.mxu0
  %v193 = vadd.f32 0.0, %v192
  %v194 = vpop.f32.mrf.mxu0
  %v195 = vpop.f32.mrf.mxu0
  %v196 = vadd.f32 0.0, %v195
  %v197 = vpop.f32.mrf.mxu0
  %198 = vdwg.mxu0
  %v199 = vpack.c.bf16 %v140, %v137
  %v200 = vpack.c.bf16 %v148, %v145
  %v201 = vpack.c.bf16 %v156, %v153
  %v202 = vpack.c.bf16 %v164, %v161
  %v203 = vpack.c.bf16 %v172, %v169
  %v204 = vpack.c.bf16 %v180, %v177
  %v205 = vpack.c.bf16 %v188, %v185
  %v206 = vpack.c.bf16 %v196, %v193
  %v215 = vunpack.c.l.b16 %v199
  %v216 = vunpack.c.h.b16 %v199
  %v217 = vunpack.c.l.b16 %v200
  %v218 = vunpack.c.h.b16 %v200
  %v219 = vunpack.c.l.b16 %v201
  %v220 = vunpack.c.h.b16 %v201
  %v221 = vunpack.c.l.b16 %v202
  %v222 = vunpack.c.h.b16 %v202
  %v223 = vunpack.c.l.b16 %v203
  %v224 = vunpack.c.h.b16 %v203
  %v225 = vunpack.c.l.b16 %v204
  %v226 = vunpack.c.h.b16 %v204
  %v227 = vunpack.c.l.b16 %v205
  %v228 = vunpack.c.h.b16 %v205
  %v229 = vunpack.c.l.b16 %v206
  %v230 = vunpack.c.h.b16 %v206
  %v231 = vpack.c.b16 %v215, %v215
  %v232 = vpack.c.b16 %v216, %v216
  %v233 = vpack.c.b16 %v217, %v217
  %v234 = vpack.c.b16 %v218, %v218
  %v235 = vpack.c.b16 %v219, %v219
  %v236 = vpack.c.b16 %v220, %v220
  %v237 = vpack.c.b16 %v221, %v221
  %v238 = vpack.c.b16 %v222, %v222
  %v239 = vpack.c.b16 %v223, %v223
  %v240 = vpack.c.b16 %v224, %v224
  %v241 = vpack.c.b16 %v225, %v225
  %v242 = vpack.c.b16 %v226, %v226
  %v243 = vpack.c.b16 %v227, %v227
  %v244 = vpack.c.b16 %v228, %v228
  %v245 = vpack.c.b16 %v229, %v229
  %v246 = vpack.c.b16 %v230, %v230
  %263 = vst [vmem:[%s2] sm:$0xf] %v231
  %264 = vst [vmem:[%s2 + $0x4] sm:$0xf] %v232
  %265 = vst [vmem:[%s2 + $0x8] sm:$0xf] %v233
  %266 = vst [vmem:[%s2 + $0xc] sm:$0xf] %v234
  %267 = vst [vmem:[%s2 + $0x10] sm:$0xf] %v235
  %268 = vst [vmem:[%s2 + $0x14] sm:$0xf] %v236
  %269 = vst [vmem:[%s2 + $0x18] sm:$0xf] %v237
  %270 = vst [vmem:[%s2 + $0x1c] sm:$0xf] %v238
  %271 = vst [vmem:[%s2 + $0x20] sm:$0xf] %v239
  %272 = vst [vmem:[%s2 + $0x24] sm:$0xf] %v240
  %273 = vst [vmem:[%s2 + $0x28] sm:$0xf] %v241
  %274 = vst [vmem:[%s2 + $0x2c] sm:$0xf] %v242
  %275 = vst [vmem:[%s2 + $0x30] sm:$0xf] %v243
  %276 = vst [vmem:[%s2 + $0x34] sm:$0xf] %v244
  %277 = vst [vmem:[%s2 + $0x38] sm:$0xf] %v245
  %278 = vst [vmem:[%s2 + $0x3c] sm:$0xf] %v246
  %v279 = vadd.f32 %v137, %v140
  %v280 = vadd.f32 %v279, %v145
  %v281 = vadd.f32 %v280, %v148
  %v282 = vadd.f32 %v281, %v153
  %v283 = vadd.f32 %v282, %v156
  %v284 = vadd.f32 %v283, %v161
  %v285 = vadd.f32 %v284, %v164
  %v286 = vadd.f32 %v285, %v169
  %v287 = vadd.f32 %v286, %v172
  %v288 = vadd.f32 %v287, %v177
  %v289 = vadd.f32 %v288, %v180
  %v290 = vadd.f32 %v289, %v185
  %v291 = vadd.f32 %v290, %v188
  %v292 = vadd.f32 %v291, %v193
  %v293 = vadd.f32 %v292, %v196
  %v294 = vrot.slane %v293, 4
  %v295 = vadd.f32 %v293, %v294
  %v296 = vrot.slane %v295, 2
  %v297 = vadd.f32 %v295, %v296
  %v298 = vrot.slane %v297, 1
  %v299 = vadd.f32 %v297, %v298
  %v300 = vmul.f32 %v137, %v137
  %v301 = vmul.f32 %v140, %v140
  %v302 = vmul.f32 %v145, %v145
  %v303 = vmul.f32 %v148, %v148
  %v304 = vmul.f32 %v153, %v153
  %v305 = vmul.f32 %v156, %v156
  %v306 = vmul.f32 %v161, %v161
  %v307 = vmul.f32 %v164, %v164
  %v308 = vmul.f32 %v169, %v169
  %v309 = vmul.f32 %v172, %v172
  %v310 = vmul.f32 %v177, %v177
  %v311 = vmul.f32 %v180, %v180
  %v312 = vmul.f32 %v185, %v185
  %v313 = vmul.f32 %v188, %v188
  %v314 = vmul.f32 %v193, %v193
  %v315 = vmul.f32 %v196, %v196
  %v316 = vadd.f32 %v300, %v301
  %v317 = vadd.f32 %v316, %v302
  %v318 = vadd.f32 %v317, %v303
  %v319 = vadd.f32 %v318, %v304
  %v320 = vadd.f32 %v319, %v305
  %v321 = vadd.f32 %v320, %v306
  %v322 = vadd.f32 %v321, %v307
  %v323 = vadd.f32 %v322, %v308
  %v324 = vadd.f32 %v323, %v309
  %v325 = vadd.f32 %v324, %v310
  %v326 = vadd.f32 %v325, %v311
  %v327 = vadd.f32 %v326, %v312
  %v328 = vadd.f32 %v327, %v313
  %v329 = vadd.f32 %v328, %v314
  %v330 = vadd.f32 %v329, %v315
  %v331 = vrot.slane %v330, 4
  %v332 = vadd.f32 %v330, %v331
  %v333 = vrot.slane %v332, 2
  %v334 = vadd.f32 %v332, %v333
  %v335 = vrot.slane %v334, 1
  %v336 = vadd.f32 %v334, %v335
  %vm337 = vcmask 1040384
  %v338 = vsel %vm337, %v299, %v336
  %339 = vst [vmem:[%s3] sm:$0x3] %v338
  // Predicated region
  $region10: #{bottleneck_forward.4} parent=0 // pred_check
    _
  $region11: #{bottleneck_forward.4} parent=0 // pred_check_branch
    %341 = sbr.rel (0) target = $region13
  $region12: #{bottleneck_forward.4} parent=0 // pred_region
    _
  $region13: #{bottleneck_forward.4} parent=0 // pred_fallthru
    _
  // Predicated region
  $region14: #{bottleneck_forward.4} parent=0 // pred_check
    _
  $region15: #{bottleneck_forward.4} parent=0 // pred_check_branch
    %343 = sbr.rel (0) target = $region17
  $region16: #{bottleneck_forward.4} parent=0 // pred_region
    _
  $region17: #{bottleneck_forward.4} parent=0 // pred_fallthru
    _
  // Predicated region
  $region18: #{bottleneck_forward.4} parent=0 // pred_check
    _
  $region19: #{bottleneck_forward.4} parent=0 // pred_check_branch
    %345 = sbr.rel (0) target = $region21
  $region20: #{bottleneck_forward.4} parent=0 // pred_region
    _
  $region21: #{bottleneck_forward.4} parent=0 // pred_fallthru
    _
  // Predicated region
  $region22: #{bottleneck_forward.4} parent=0 // pred_check
    _
  $region23: #{bottleneck_forward.4} parent=0 // pred_check_branch
    %347 = sbr.rel (0) target = $region25
  $region24: #{bottleneck_forward.4} parent=0 // pred_region
    _
  $region25: #{bottleneck_forward.4} parent=0 // pred_fallthru
    _

// kernel: bottleneck_forward.6
$region0: #{bottleneck_forward.6}
  #allocation0 [shape = 'u32[]', space=smem, size = 0x4, offset = 0x4, fixed_abs, tag = 'smem constant byte address 0x4 - core index']
  #allocation1 [shape = 'u32[144,128]{1,0:T(1,128)}', space=vmem, size = 0x12000, scoped, tag = 'internal scratch']
  %s0 = inlined_call_operand.vmem [shape: bf16[128,128], index: 0, kind: input, shape index: {}]
  %s1 = inlined_call_operand.vmem [shape: f32[1,128], index: 1, kind: input, shape index: {}]
  %s2 = inlined_call_operand.vmem [shape: f32[1,128], index: 2, kind: input, shape index: {}]
  %s3 = inlined_call_operand.vmem [shape: bf16[128,128], index: 3, kind: input, shape index: {}]
  %s4 = inlined_call_operand.vmem [shape: bf16[128,128], index: 4, kind: output, shape index: {0}]
  %s5 = inlined_call_operand.vmem [shape: f32[1,2,128], index: 5, kind: output, shape index: {1}]
  %6 = xla_tuple %s4, %s5
  %s7 = sld [smem:[#allocation0]]
  $region34: #{bottleneck_forward.6} parent=0
    _
  %s9 = ssub.s32 1, %s7
  %s10 = scalar_select 0, %s9, %s7
  // Predicated region
  $region2: #{bottleneck_forward.6} parent=0 // pred_check
    _
  $region3: #{bottleneck_forward.6} parent=0 // pred_check_branch
    %12 = sbr.rel (0) target = $region5
  $region4: #{bottleneck_forward.6} parent=0 // pred_region
    _
  $region5: #{bottleneck_forward.6} parent=0 // pred_fallthru
    _
  // Predicated region
  $region6: #{bottleneck_forward.6} parent=0 // pred_check
    _
  $region7: #{bottleneck_forward.6} parent=0 // pred_check_branch
    %14 = sbr.rel (0) target = $region9
  $region8: #{bottleneck_forward.6} parent=0 // pred_region
    _
  $region9: #{bottleneck_forward.6} parent=0 // pred_fallthru
    _
  // Predicated region
  $region10: #{bottleneck_forward.6} parent=0 // pred_check
    _
  $region11: #{bottleneck_forward.6} parent=0 // pred_check_branch
    %16 = sbr.rel (0) target = $region13
  $region12: #{bottleneck_forward.6} parent=0 // pred_region
    _
  $region13: #{bottleneck_forward.6} parent=0 // pred_fallthru
    _
  // Predicated region
  $region14: #{bottleneck_forward.6} parent=0 // pred_check
    _
  $region15: #{bottleneck_forward.6} parent=0 // pred_check_branch
    %18 = sbr.rel (0) target = $region17
  $region16: #{bottleneck_forward.6} parent=0 // pred_region
    _
  $region17: #{bottleneck_forward.6} parent=0 // pred_fallthru
    _
  %v20 = vld [vmem:[%s0] sm:$0xf]
  %v21 = vld [vmem:[%s0 + $0x4] sm:$0xf]
  %v22 = vld [vmem:[%s0 + $0x8] sm:$0xf]
  %v23 = vld [vmem:[%s0 + $0xc] sm:$0xf]
  %v24 = vld [vmem:[%s0 + $0x10] sm:$0xf]
  %v25 = vld [vmem:[%s0 + $0x14] sm:$0xf]
  %v26 = vld [vmem:[%s0 + $0x18] sm:$0xf]
  %v27 = vld [vmem:[%s0 + $0x1c] sm:$0xf]
  %v28 = vld [vmem:[%s0 + $0x20] sm:$0xf]
  %v29 = vld [vmem:[%s0 + $0x24] sm:$0xf]
  %v30 = vld [vmem:[%s0 + $0x28] sm:$0xf]
  %v31 = vld [vmem:[%s0 + $0x2c] sm:$0xf]
  %v32 = vld [vmem:[%s0 + $0x30] sm:$0xf]
  %v33 = vld [vmem:[%s0 + $0x34] sm:$0xf]
  %v34 = vld [vmem:[%s0 + $0x38] sm:$0xf]
  %v35 = vld [vmem:[%s0 + $0x3c] sm:$0xf]
  %v36 = vunpack.c.l.bf16 %v20
  %v37 = vunpack.c.l.bf16 %v21
  %v38 = vunpack.c.l.bf16 %v22
  %v39 = vunpack.c.l.bf16 %v23
  %v40 = vunpack.c.l.bf16 %v24
  %v41 = vunpack.c.l.bf16 %v25
  %v42 = vunpack.c.l.bf16 %v26
  %v43 = vunpack.c.l.bf16 %v27
  %v44 = vunpack.c.l.bf16 %v28
  %v45 = vunpack.c.l.bf16 %v29
  %v46 = vunpack.c.l.bf16 %v30
  %v47 = vunpack.c.l.bf16 %v31
  %v48 = vunpack.c.l.bf16 %v32
  %v49 = vunpack.c.l.bf16 %v33
  %v50 = vunpack.c.l.bf16 %v34
  %v51 = vunpack.c.l.bf16 %v35
  %v52 = vld [vmem:[%s1] sm:$0x1]
  %v54 = vlaneseq
  %v55 = vshrl.u32 %v54, 7
  %v56 = vsub.s32 0, %v55
  %v57 = vrot.slane %v52, %v56
  %v59 = vmul.f32 %v36, %v57
  %v60 = vmul.f32 %v37, %v57
  %v61 = vmul.f32 %v38, %v57
  %v62 = vmul.f32 %v39, %v57
  %v63 = vmul.f32 %v40, %v57
  %v64 = vmul.f32 %v41, %v57
  %v65 = vmul.f32 %v42, %v57
  %v66 = vmul.f32 %v43, %v57
  %v67 = vmul.f32 %v44, %v57
  %v68 = vmul.f32 %v45, %v57
  %v69 = vmul.f32 %v46, %v57
  %v70 = vmul.f32 %v47, %v57
  %v71 = vmul.f32 %v48, %v57
  %v72 = vmul.f32 %v49, %v57
  %v73 = vmul.f32 %v50, %v57
  %v74 = vmul.f32 %v51, %v57
  %v75 = vld [vmem:[%s2] sm:$0x1]
  %v77 = vlaneseq
  %v78 = vshrl.u32 %v77, 7
  %v79 = vsub.s32 0, %v78
  %v80 = vrot.slane %v75, %v79
  %v82 = vadd.f32 %v59, %v80
  %v83 = vadd.f32 %v60, %v80
  %v84 = vadd.f32 %v61, %v80
  %v85 = vadd.f32 %v62, %v80
  %v86 = vadd.f32 %v63, %v80
  %v87 = vadd.f32 %v64, %v80
  %v88 = vadd.f32 %v65, %v80
  %v89 = vadd.f32 %v66, %v80
  %v90 = vadd.f32 %v67, %v80
  %v91 = vadd.f32 %v68, %v80
  %v92 = vadd.f32 %v69, %v80
  %v93 = vadd.f32 %v70, %v80
  %v94 = vadd.f32 %v71, %v80
  %v95 = vadd.f32 %v72, %v80
  %v96 = vadd.f32 %v73, %v80
  %v97 = vadd.f32 %v74, %v80
  %v98 = vmax.f32 %v82, 0.0
  %v99 = vmax.f32 %v83, 0.0
  %v100 = vmax.f32 %v84, 0.0
  %v101 = vmax.f32 %v85, 0.0
  %v102 = vmax.f32 %v86, 0.0
  %v103 = vmax.f32 %v87, 0.0
  %v104 = vmax.f32 %v88, 0.0
  %v105 = vmax.f32 %v89, 0.0
  %v106 = vmax.f32 %v90, 0.0
  %v107 = vmax.f32 %v91, 0.0
  %v108 = vmax.f32 %v92, 0.0
  %v109 = vmax.f32 %v93, 0.0
  %v110 = vmax.f32 %v94, 0.0
  %v111 = vmax.f32 %v95, 0.0
  %v112 = vmax.f32 %v96, 0.0
  %v113 = vmax.f32 %v97, 0.0
  %v114 = vpack.c.bf16 %v99, %v98
  %v115 = vpack.c.bf16 %v101, %v100
  %v116 = vpack.c.bf16 %v103, %v102
  %v117 = vpack.c.bf16 %v105, %v104
  %v118 = vpack.c.bf16 %v107, %v106
  %v119 = vpack.c.bf16 %v109, %v108
  %v120 = vpack.c.bf16 %v111, %v110
  %v121 = vpack.c.bf16 %v113, %v112
  %v122 = vld [vmem:[%s3] sm:$0xf]
  %v123 = vld [vmem:[%s3 + $0x4] sm:$0xf]
  %v124 = vld [vmem:[%s3 + $0x8] sm:$0xf]
  %v125 = vld [vmem:[%s3 + $0xc] sm:$0xf]
  %v126 = vld [vmem:[%s3 + $0x10] sm:$0xf]
  %v127 = vld [vmem:[%s3 + $0x14] sm:$0xf]
  %v128 = vld [vmem:[%s3 + $0x18] sm:$0xf]
  %v129 = vld [vmem:[%s3 + $0x1c] sm:$0xf]
  %v130 = vld [vmem:[%s3 + $0x20] sm:$0xf]
  %v131 = vld [vmem:[%s3 + $0x24] sm:$0xf]
  %v132 = vld [vmem:[%s3 + $0x28] sm:$0xf]
  %v133 = vld [vmem:[%s3 + $0x2c] sm:$0xf]
  %v134 = vld [vmem:[%s3 + $0x30] sm:$0xf]
  %v135 = vld [vmem:[%s3 + $0x34] sm:$0xf]
  %v136 = vld [vmem:[%s3 + $0x38] sm:$0xf]
  %v137 = vld [vmem:[%s3 + $0x3c] sm:$0xf]
  %v154 = vunpack.c.l.b16 %v122
  %v155 = vunpack.c.l.b16 %v123
  %v156 = vunpack.c.l.b16 %v124
  %v157 = vunpack.c.l.b16 %v125
  %v158 = vunpack.c.l.b16 %v126
  %v159 = vunpack.c.l.b16 %v127
  %v160 = vunpack.c.l.b16 %v128
  %v161 = vunpack.c.l.b16 %v129
  %v162 = vunpack.c.l.b16 %v130
  %v163 = vunpack.c.l.b16 %v131
  %v164 = vunpack.c.l.b16 %v132
  %v165 = vunpack.c.l.b16 %v133
  %v166 = vunpack.c.l.b16 %v134
  %v167 = vunpack.c.l.b16 %v135
  %v168 = vunpack.c.l.b16 %v136
  %v169 = vunpack.c.l.b16 %v137
  %v170 = vpack.c.b16 %v155, %v154
  %v171 = vpack.c.b16 %v157, %v156
  %v172 = vpack.c.b16 %v159, %v158
  %v173 = vpack.c.b16 %v161, %v160
  %v174 = vpack.c.b16 %v163, %v162
  %v175 = vpack.c.b16 %v165, %v164
  %v176 = vpack.c.b16 %v167, %v166
  %v177 = vpack.c.b16 %v169, %v168
  %186 = vmatprep.subr.bf16.mxu0 0
  %187 = vmatpush1.bf16.msra.mxu0 %v177
  %188 = vmatprep.subr.bf16.mxu0 0
  %189 = vmatpush1.bf16.msra.mxu0 %v176
  %190 = vmatprep.subr.bf16.mxu0 0
  %191 = vmatpush1.bf16.msra.mxu0 %v175
  %192 = vmatprep.subr.bf16.mxu0 0
  %193 = vmatpush1.bf16.msra.mxu0 %v174
  %194 = vmatprep.subr.bf16.mxu0 0
  %195 = vmatpush1.bf16.msra.mxu0 %v173
  %196 = vmatprep.subr.bf16.mxu0 0
  %197 = vmatpush1.bf16.msra.mxu0 %v172
  %198 = vmatprep.subr.bf16.mxu0 0
  %199 = vmatpush1.bf16.msra.mxu0 %v171
  %200 = vmatprep.subr.bf16.mxu0 0
  %201 = vmatpush1.bf16.msra.mxu0 %v170
  %202 = vmatprep.subr.bf16.mxu0 0
  %203 = vmatpush2.bf16.msra.mxu0 0
  %204 = vmatprep.subr.bf16.mxu0 0
  %205 = vmatpush2.bf16.msra.mxu0 0
  %206 = vmatprep.subr.bf16.mxu0 0
  %207 = vmatpush2.bf16.msra.mxu0 0
  %208 = vmatprep.subr.bf16.mxu0 0
  %209 = vmatpush2.bf16.msra.mxu0 0
  %210 = vmatprep.subr.bf16.mxu0 0
  %211 = vmatpush2.bf16.msra.mxu0 0
  %212 = vmatprep.subr.bf16.mxu0 0
  %213 = vmatpush2.bf16.msra.mxu0 0
  %214 = vmatprep.subr.bf16.mxu0 0
  %215 = vmatpush2.bf16.msra.mxu0 0
  %216 = vmatprep.subr.bf16.mxu0 0
  %217 = vmatpush2.bf16.msra.mxu0 0
  %218 = vmatprep.mubr.bf16.mxu0 0
  %219 = vmatmul.mubr.bf16.gmra.mxu0 %v114
  %v220 = vpop.f32.mrf.mxu0
  %v221 = vadd.f32 0.0, %v220
  %v222 = vpop.f32.mrf.mxu0
  %v223 = vpop.f32.mrf.mxu0
  %v224 = vadd.f32 0.0, %v223
  %v225 = vpop.f32.mrf.mxu0
  %226 = vmatprep.mubr.bf16.mxu0 0
  %227 = vmatmul.mubr.bf16.gmra.mxu0 %v115
  %v228 = vpop.f32.mrf.mxu0
  %v229 = vadd.f32 0.0, %v228
  %v230 = vpop.f32.mrf.mxu0
  %v231 = vpop.f32.mrf.mxu0
  %v232 = vadd.f32 0.0, %v231
  %v233 = vpop.f32.mrf.mxu0
  %234 = vmatprep.mubr.bf16.mxu0 0
  %235 = vmatmul.mubr.bf16.gmra.mxu0 %v116
  %v236 = vpop.f32.mrf.mxu0
  %v237 = vadd.f32 0.0, %v236
  %v238 = vpop.f32.mrf.mxu0
  %v239 = vpop.f32.mrf.mxu0
  %v240 = vadd.f32 0.0, %v239
  %v241 = vpop.f32.mrf.mxu0
  %242 = vmatprep.mubr.bf16.mxu0 0
  %243 = vmatmul.mubr.bf16.gmra.mxu0 %v117
  %v244 = vpop.f32.mrf.mxu0
  %v245 = vadd.f32 0.0, %v244
  %v246 = vpop.f32.mrf.mxu0
  %v247 = vpop.f32.mrf.mxu0
  %v248 = vadd.f32 0.0, %v247
  %v249 = vpop.f32.mrf.mxu0
  %250 = vmatprep.mubr.bf16.mxu0 0
  %251 = vmatmul.mubr.bf16.gmra.mxu0 %v118
  %v252 = vpop.f32.mrf.mxu0
  %v253 = vadd.f32 0.0, %v252
  %v254 = vpop.f32.mrf.mxu0
  %v255 = vpop.f32.mrf.mxu0
  %v256 = vadd.f32 0.0, %v255
  %v257 = vpop.f32.mrf.mxu0
  %258 = vmatprep.mubr.bf16.mxu0 0
  %259 = vmatmul.mubr.bf16.gmra.mxu0 %v119
  %v260 = vpop.f32.mrf.mxu0
  %v261 = vadd.f32 0.0, %v260
  %v262 = vpop.f32.mrf.mxu0
  %v263 = vpop.f32.mrf.mxu0
  %v264 = vadd.f32 0.0, %v263
  %v265 = vpop.f32.mrf.mxu0
  %266 = vmatprep.mubr.bf16.mxu0 0
  %267 = vmatmul.mubr.bf16.gmra.mxu0 %v120
  %v268 = vpop.f32.mrf.mxu0
  %v269 = vadd.f32 0.0, %v268
  %v270 = vpop.f32.mrf.mxu0
  %v271 = vpop.f32.mrf.mxu0
  %v272 = vadd.f32 0.0, %v271
  %v273 = vpop.f32.mrf.mxu0
  %274 = vmatprep.mubr.bf16.mxu0 0
  %275 = vmatmul.mubr.bf16.gmra.mxu0 %v121
  %v276 = vpop.f32.mrf.mxu0
  %v277 = vadd.f32 0.0, %v276
  %v278 = vpop.f32.mrf.mxu0
  %v279 = vpop.f32.mrf.mxu0
  %v280 = vadd.f32 0.0, %v279
  %v281 = vpop.f32.mrf.mxu0
  %282 = vdwg.mxu0
  %v283 = vpack.c.bf16 %v224, %v221
  %v284 = vpack.c.bf16 %v232, %v229
  %v285 = vpack.c.bf16 %v240, %v237
  %v286 = vpack.c.bf16 %v248, %v245
  %v287 = vpack.c.bf16 %v256, %v253
  %v288 = vpack.c.bf16 %v264, %v261
  %v289 = vpack.c.bf16 %v272, %v269
  %v290 = vpack.c.bf16 %v280, %v277
  %v299 = vunpack.c.l.b16 %v283
  %v300 = vunpack.c.h.b16 %v283
  %v301 = vunpack.c.l.b16 %v284
  %v302 = vunpack.c.h.b16 %v284
  %v303 = vunpack.c.l.b16 %v285
  %v304 = vunpack.c.h.b16 %v285
  %v305 = vunpack.c.l.b16 %v286
  %v306 = vunpack.c.h.b16 %v286
  %v307 = vunpack.c.l.b16 %v287
  %v308 = vunpack.c.h.b16 %v287
  %v309 = vunpack.c.l.b16 %v288
  %v310 = vunpack.c.h.b16 %v288
  %v311 = vunpack.c.l.b16 %v289
  %v312 = vunpack.c.h.b16 %v289
  %v313 = vunpack.c.l.b16 %v290
  %v314 = vunpack.c.h.b16 %v290
  %v315 = vpack.c.b16 %v299, %v299
  %v316 = vpack.c.b16 %v300, %v300
  %v317 = vpack.c.b16 %v301, %v301
  %v318 = vpack.c.b16 %v302, %v302
  %v319 = vpack.c.b16 %v303, %v303
  %v320 = vpack.c.b16 %v304, %v304
  %v321 = vpack.c.b16 %v305, %v305
  %v322 = vpack.c.b16 %v306, %v306
  %v323 = vpack.c.b16 %v307, %v307
  %v324 = vpack.c.b16 %v308, %v308
  %v325 = vpack.c.b16 %v309, %v309
  %v326 = vpack.c.b16 %v310, %v310
  %v327 = vpack.c.b16 %v311, %v311
  %v328 = vpack.c.b16 %v312, %v312
  %v329 = vpack.c.b16 %v313, %v313
  %v330 = vpack.c.b16 %v314, %v314
  %347 = vst [vmem:[%s4] sm:$0xf] %v315
  %348 = vst [vmem:[%s4 + $0x4] sm:$0xf] %v316
  %349 = vst [vmem:[%s4 + $0x8] sm:$0xf] %v317
  %350 = vst [vmem:[%s4 + $0xc] sm:$0xf] %v318
  %351 = vst [vmem:[%s4 + $0x10] sm:$0xf] %v319
  %352 = vst [vmem:[%s4 + $0x14] sm:$0xf] %v320
  %353 = vst [vmem:[%s4 + $0x18] sm:$0xf] %v321
  %354 = vst [vmem:[%s4 + $0x1c] sm:$0xf] %v322
  %355 = vst [vmem:[%s4 + $0x20] sm:$0xf] %v323
  %356 = vst [vmem:[%s4 + $0x24] sm:$0xf] %v324
  %357 = vst [vmem:[%s4 + $0x28] sm:$0xf] %v325
  %358 = vst [vmem:[%s4 + $0x2c] sm:$0xf] %v326
  %359 = vst [vmem:[%s4 + $0x30] sm:$0xf] %v327
  %360 = vst [vmem:[%s4 + $0x34] sm:$0xf] %v328
  %361 = vst [vmem:[%s4 + $0x38] sm:$0xf] %v329
  %362 = vst [vmem:[%s4 + $0x3c] sm:$0xf] %v330
  %v363 = vadd.f32 %v221, %v224
  %v364 = vadd.f32 %v363, %v229
  %v365 = vadd.f32 %v364, %v232
  %v366 = vadd.f32 %v365, %v237
  %v367 = vadd.f32 %v366, %v240
  %v368 = vadd.f32 %v367, %v245
  %v369 = vadd.f32 %v368, %v248
  %v370 = vadd.f32 %v369, %v253
  %v371 = vadd.f32 %v370, %v256
  %v372 = vadd.f32 %v371, %v261
  %v373 = vadd.f32 %v372, %v264
  %v374 = vadd.f32 %v373, %v269
  %v375 = vadd.f32 %v374, %v272
  %v376 = vadd.f32 %v375, %v277
  %v377 = vadd.f32 %v376, %v280
  %v378 = vrot.slane %v377, 4
  %v379 = vadd.f32 %v377, %v378
  %v380 = vrot.slane %v379, 2
  %v381 = vadd.f32 %v379, %v380
  %v382 = vrot.slane %v381, 1
  %v383 = vadd.f32 %v381, %v382
  %v384 = vmul.f32 %v221, %v221
  %v385 = vmul.f32 %v224, %v224
  %v386 = vmul.f32 %v229, %v229
  %v387 = vmul.f32 %v232, %v232
  %v388 = vmul.f32 %v237, %v237
  %v389 = vmul.f32 %v240, %v240
  %v390 = vmul.f32 %v245, %v245
  %v391 = vmul.f32 %v248, %v248
  %v392 = vmul.f32 %v253, %v253
  %v393 = vmul.f32 %v256, %v256
  %v394 = vmul.f32 %v261, %v261
  %v395 = vmul.f32 %v264, %v264
  %v396 = vmul.f32 %v269, %v269
  %v397 = vmul.f32 %v272, %v272
  %v398 = vmul.f32 %v277, %v277
  %v399 = vmul.f32 %v280, %v280
  %v400 = vadd.f32 %v384, %v385
  %v401 = vadd.f32 %v400, %v386
  %v402 = vadd.f32 %v401, %v387
  %v403 = vadd.f32 %v402, %v388
  %v404 = vadd.f32 %v403, %v389
  %v405 = vadd.f32 %v404, %v390
  %v406 = vadd.f32 %v405, %v391
  %v407 = vadd.f32 %v406, %v392
  %v408 = vadd.f32 %v407, %v393
  %v409 = vadd.f32 %v408, %v394
  %v410 = vadd.f32 %v409, %v395
  %v411 = vadd.f32 %v410, %v396
  %v412 = vadd.f32 %v411, %v397
  %v413 = vadd.f32 %v412, %v398
  %v414 = vadd.f32 %v413, %v399
  %v415 = vrot.slane %v414, 4
  %v416 = vadd.f32 %v414, %v415
  %v417 = vrot.slane %v416, 2
  %v418 = vadd.f32 %v416, %v417
  %v419 = vrot.slane %v418, 1
  %v420 = vadd.f32 %v418, %v419
  %vm421 = vcmask 1040384
  %v422 = vsel %vm421, %v383, %v420
  %423 = vst [vmem:[%s5] sm:$0x3] %v422
  // Predicated region
  $region18: #{bottleneck_forward.6} parent=0 // pred_check
    _
  $region19: #{bottleneck_forward.6} parent=0 // pred_check_branch
    %425 = sbr.rel (0) target = $region21
  $region20: #{bottleneck_forward.6} parent=0 // pred_region
    _
  $region21: #{bottleneck_forward.6} parent=0 // pred_fallthru
    _
  // Predicated region
  $region22: #{bottleneck_forward.6} parent=0 // pred_check
    _
  $region23: #{bottleneck_forward.6} parent=0 // pred_check_branch
    %427 = sbr.rel (0) target = $region25
  $region24: #{bottleneck_forward.6} parent=0 // pred_region
    _
  $region25: #{bottleneck_forward.6} parent=0 // pred_fallthru
    _
  // Predicated region
  $region26: #{bottleneck_forward.6} parent=0 // pred_check
    _
  $region27: #{bottleneck_forward.6} parent=0 // pred_check_branch
    %429 = sbr.rel (0) target = $region29
  $region28: #{bottleneck_forward.6} parent=0 // pred_region
    _
  $region29: #{bottleneck_forward.6} parent=0 // pred_fallthru
    _
  // Predicated region
  $region30: #{bottleneck_forward.6} parent=0 // pred_check
    _
  $region31: #{bottleneck_forward.6} parent=0 // pred_check_branch
    %431 = sbr.rel (0) target = $region33
  $region32: #{bottleneck_forward.6} parent=0 // pred_region
    _
  $region33: #{bottleneck_forward.6} parent=0 // pred_fallthru
    _

// kernel: bottleneck_forward.5
$region0: #{bottleneck_forward.5}
  #allocation0 [shape = 'u32[]', space=smem, size = 0x4, offset = 0x4, fixed_abs, tag = 'smem constant byte address 0x4 - core index']
  #allocation1 [shape = 'u32[144,128]{1,0:T(1,128)}', space=vmem, size = 0x12000, scoped, tag = 'internal scratch']
  #allocation2 [shape = 'bf16[10,24,128]{2,1,0:T(8,128)(2,1)}', space=vmem, size = 0xf000, scoped, tag = 'scratch operand']
  #allocation3 [shape = 'f32[64,128]{1,0:T(8,128)}', space=vmem, size = 0x8000, scoped, tag = 'scratch operand']
  %s0 = inlined_call_operand.vmem [shape: bf16[2,8,8,128], index: 0, kind: input, shape index: {}]
  %s1 = inlined_call_operand.vmem [shape: f32[1,128], index: 1, kind: input, shape index: {}]
  %s2 = inlined_call_operand.vmem [shape: f32[1,128], index: 2, kind: input, shape index: {}]
  %s3 = inlined_call_operand.vmem [shape: bf16[1152,128], index: 3, kind: input, shape index: {}]
  %s4 = inlined_call_operand.vmem [shape: bf16[2,8,8,128], index: 4, kind: output, shape index: {0}]
  %s5 = inlined_call_operand.vmem [shape: f32[2,2,128], index: 5, kind: output, shape index: {1}]
  %6 = xla_tuple %s4, %s5
  %s7 = sld [smem:[#allocation0]]
  $region57: #{bottleneck_forward.5} parent=0
    _
  %s9 = ssub.s32 1, %s7
  %s10 = scalar_select 0, %s9, %s7
  loop: start=0, step=1, limit=4
  $region2: #{bottleneck_forward.5} parent=0 // loop_pre_header
    _
  $region3: #{bottleneck_forward.5} parent=0 // loop_header
    %s12 = sphi 0, %s16
    %p13 = scmp.ge.s32.totalorder %s12, 4
    %s22 = sphi 0, %s24
    %s25 = sphi 0, %s22
    %s26 = sphi 0, %s25
    %s42 = sphi 0, %s26
    %s46 = sphi 0, %s46
    %s48 = sphi 0, %s46
    %s49 = sphi 0, %s48
    %s63 = sphi 0, %s49
    %s67 = sphi 0, %s67
    %s69 = sphi 0, %s67
    %s70 = sphi 0, %s69
    %s84 = sphi 0, %s70
    %s88 = sphi 0, %s88
    %s90 = sphi 0, %s88
    %s91 = sphi 0, %s90
    %s105 = sphi 0, %s91
    %s111 = sphi 0, %s113
    %s114 = sphi 0, %s111
    %s115 = sphi 0, %s114
    %s131 = sphi 0, %s115
    %s137 = sphi 0, %s139
    %s140 = sphi 0, %s137
    %s141 = sphi 0, %s140
    %s157 = sphi 0, %s141
  $region4: #{bottleneck_forward.5} parent=0 // loop_header_branch
    %15 = sbr.rel (%p13) target = $region8
  $region5: #{bottleneck_forward.5} parent=0 // loop_body
    %s17 = ssub.s32 %s12, 1
    %s18 = ssub.s32 %s12, 2
    %s19 = sadd.s32 %s12, 1
    %s20 = ssub.s32 %s12, %s19
    %p21 = scmp.eq.s32.totalorder %s20, 0
    %s23 = sadd.s32 %s22, 1
    %s24 = scalar_select %p21, %s22, %s23
    %p27 = pneg %p21
    %p28 = scmp.eq.s32.totalorder %s12, 1
    %p29 = por %p27, %p28
    %p30 = scmp.ne.s32.totalorder %s22, %s25
    %p31 = scmp.eq.s32.totalorder %s12, 0
    %p32 = por %p30, %p31
    %p33 = scmp.ne.s32.totalorder %s22, %s25
    %p34 = scmp.eq.s32.totalorder %s17, 1
    %p35 = por %p33, %p34
    %p36 = scmp.ne.s32.totalorder %s25, %s26
    %p37 = scmp.eq.s32.totalorder %s17, 0
    %p38 = por %p36, %p37
    %p39 = scmp.ne.s32.totalorder %s25, %s26
    %p40 = scmp.eq.s32.totalorder %s18, 1
    %p41 = por %p39, %p40
    %p43 = scmp.ne.s32.totalorder %s26, %s42
    %p44 = scmp.eq.s32.totalorder %s18, 0
    %p45 = por %p43, %p44
    %s47 = sadd.s32 %s46, 1
    %p50 = scmp.eq.s32.totalorder %s12, 1
    %p51 = scmp.ne.s32.totalorder %s46, %s48
    %p52 = scmp.eq.s32.totalorder %s12, 0
    %p53 = por %p51, %p52
    %p54 = scmp.ne.s32.totalorder %s46, %s48
    %p55 = scmp.eq.s32.totalorder %s17, 1
    %p56 = por %p54, %p55
    %p57 = scmp.ne.s32.totalorder %s48, %s49
    %p58 = scmp.eq.s32.totalorder %s17, 0
    %p59 = por %p57, %p58
    %p60 = scmp.ne.s32.totalorder %s48, %s49
    %p61 = scmp.eq.s32.totalorder %s18, 1
    %p62 = por %p60, %p61
    %p64 = scmp.ne.s32.totalorder %s49, %s63
    %p65 = scmp.eq.s32.totalorder %s18, 0
    %p66 = por %p64, %p65
    %s68 = sadd.s32 %s67, 1
    %p71 = scmp.eq.s32.totalorder %s12, 1
    %p72 = scmp.ne.s32.totalorder %s67, %s69
    %p73 = scmp.eq.s32.totalorder %s12, 0
    %p74 = por %p72, %p73
    %p75 = scmp.ne.s32.totalorder %s67, %s69
    %p76 = scmp.eq.s32.totalorder %s17, 1
    %p77 = por %p75, %p76
    %p78 = scmp.ne.s32.totalorder %s69, %s70
    %p79 = scmp.eq.s32.totalorder %s17, 0
    %p80 = por %p78, %p79
    %p81 = scmp.ne.s32.totalorder %s69, %s70
    %p82 = scmp.eq.s32.totalorder %s18, 1
    %p83 = por %p81, %p82
    %p85 = scmp.ne.s32.totalorder %s70, %s84
    %p86 = scmp.eq.s32.totalorder %s18, 0
    %p87 = por %p85, %p86
    %s89 = sadd.s32 %s88, 1
    %p92 = scmp.eq.s32.totalorder %s12, 1
    %p93 = scmp.ne.s32.totalorder %s88, %s90
    %p94 = scmp.eq.s32.totalorder %s12, 0
    %p95 = por %p93, %p94
    %p96 = scmp.ne.s32.totalorder %s88, %s90
    %p97 = scmp.eq.s32.totalorder %s17, 1
    %p98 = por %p96, %p97
    %p99 = scmp.ne.s32.totalorder %s90, %s91
    %p100 = scmp.eq.s32.totalorder %s17, 0
    %p101 = por %p99, %p100
    %p102 = scmp.ne.s32.totalorder %s90, %s91
    %p103 = scmp.eq.s32.totalorder %s18, 1
    %p104 = por %p102, %p103
    %p106 = scmp.ne.s32.totalorder %s91, %s105
    %p107 = scmp.eq.s32.totalorder %s18, 0
    %p108 = por %p106, %p107
    %s109 = ssub.s32 %s12, %s19
    %p110 = scmp.eq.s32.totalorder %s109, 0
    %s112 = sadd.s32 %s111, 1
    %s113 = scalar_select %p110, %s111, %s112
    %p116 = pneg %p110
    %p117 = scmp.eq.s32.totalorder %s12, 1
    %p118 = por %p116, %p117
    %p119 = scmp.ne.s32.totalorder %s111, %s114
    %p120 = scmp.eq.s32.totalorder %s12, 0
    %p121 = por %p119, %p120
    %p122 = scmp.ne.s32.totalorder %s111, %s114
    %p123 = scmp.eq.s32.totalorder %s17, 1
    %p124 = por %p122, %p123
    %p125 = scmp.ne.s32.totalorder %s114, %s115
    %p126 = scmp.eq.s32.totalorder %s17, 0
    %p127 = por %p125, %p126
    %p128 = scmp.ne.s32.totalorder %s114, %s115
    %p129 = scmp.eq.s32.totalorder %s18, 1
    %p130 = por %p128, %p129
    %p132 = scmp.ne.s32.totalorder %s115, %s131
    %p133 = scmp.eq.s32.totalorder %s18, 0
    %p134 = por %p132, %p133
    %s135 = ssub.s32 %s12, %s19
    %p136 = scmp.eq.s32.totalorder %s135, 0
    %s138 = sadd.s32 %s137, 1
    %s139 = scalar_select %p136, %s137, %s138
    %p142 = pneg %p136
    %p143 = scmp.eq.s32.totalorder %s12, 1
    %p144 = por %p142, %p143
    %p145 = scmp.ne.s32.totalorder %s137, %s140
    %p146 = scmp.eq.s32.totalorder %s12, 0
    %p147 = por %p145, %p146
    %p148 = scmp.ne.s32.totalorder %s137, %s140
    %p149 = scmp.eq.s32.totalorder %s17, 1
    %p150 = por %p148, %p149
    %p151 = scmp.ne.s32.totalorder %s140, %s141
    %p152 = scmp.eq.s32.totalorder %s17, 0
    %p153 = por %p151, %p152
    %p154 = scmp.ne.s32.totalorder %s140, %s141
    %p155 = scmp.eq.s32.totalorder %s18, 1
    %p156 = por %p154, %p155
    %p158 = scmp.ne.s32.totalorder %s141, %s157
    %p159 = scmp.eq.s32.totalorder %s18, 0
    %p160 = por %p158, %p159
    %p161 = scmp.le.s32.totalorder 1, %s12
    %p162 = scmp.lt.s32.totalorder %s12, 3
    %p163 = pnand %p161, %p162
    %p164 = pneg %p163
    // Predicated region
    $region9: #{bottleneck_forward.5} parent=5 // pred_check
      _
    $region10: #{bottleneck_forward.5} parent=5 // pred_check_branch
      %166 = sbr.rel (%p163) target = $region12
    $region11: #{bottleneck_forward.5} parent=5 // pred_region
      %s167 = ssub.s32 %s12, 1
      // Predicated region
      $region13: #{bottleneck_forward.5} parent=11 // pred_check
        %p168 = pneg %p59
      $region14: #{bottleneck_forward.5} parent=11 // pred_check_branch
        %170 = sbr.rel (%p168) target = $region16
      $region15: #{bottleneck_forward.5} parent=11 // pred_region
        _
      $region16: #{bottleneck_forward.5} parent=11 // pred_fallthru
        _
      // Predicated region
      $region17: #{bottleneck_forward.5} parent=11 // pred_check
        %p171 = pneg %p80
      $region18: #{bottleneck_forward.5} parent=11 // pred_check_branch
        %173 = sbr.rel (%p171) target = $region20
      $region19: #{bottleneck_forward.5} parent=11 // pred_region
        _
      $region20: #{bottleneck_forward.5} parent=11 // pred_fallthru
        _
      // Predicated region
      $region21: #{bottleneck_forward.5} parent=11 // pred_check
        %p174 = pneg %p101
      $region22: #{bottleneck_forward.5} parent=11 // pred_check_branch
        %176 = sbr.rel (%p174) target = $region24
      $region23: #{bottleneck_forward.5} parent=11 // pred_region
        _
      $region24: #{bottleneck_forward.5} parent=11 // pred_fallthru
        _
    $region12: #{bottleneck_forward.5} parent=5 // pred_fallthru
      _
    %p177 = scmp.lt.s32.totalorder %s12, 2
    // Predicated region
    $region25: #{bottleneck_forward.5} parent=5 // pred_check
      %p178 = pneg %p177
    $region26: #{bottleneck_forward.5} parent=5 // pred_check_branch
      %180 = sbr.rel (%p178) target = $region28
    $region27: #{bottleneck_forward.5} parent=5 // pred_region
      // Predicated region
      $region29: #{bottleneck_forward.5} parent=27 // pred_check
        %p181 = pneg %p32
      $region30: #{bottleneck_forward.5} parent=27 // pred_check_branch
        %183 = sbr.rel (%p181) target = $region32
      $region31: #{bottleneck_forward.5} parent=27 // pred_region
        %p184 = scmp.lt.s32.totalorder %s12, 1
        %s185 = scalar_select %p184, %s12, 1
        %s186 = smul.addr %s185, 8
        %s187 = smul.addr %s186, 4
        %s188 = scalar_lea.vmem %s0, %s187
      $region32: #{bottleneck_forward.5} parent=27 // pred_fallthru
        _
    $region28: #{bottleneck_forward.5} parent=5 // pred_fallthru
      _
    %p189 = scmp.le.s32.totalorder 1, %s12
    %p190 = scmp.lt.s32.totalorder %s12, 3
    %p191 = pnand %p189, %p190
    %p192 = pneg %p191
    // Predicated region
    $region33: #{bottleneck_forward.5} parent=5 // pred_check
      _
    $region34: #{bottleneck_forward.5} parent=5 // pred_check_branch
      %194 = sbr.rel (%p191) target = $region36
    $region35: #{bottleneck_forward.5} parent=5 // pred_region
      %s195 = ssub.s32 %s12, 1
      %p196 = scmp.lt.s32.totalorder %s17, 1
      %s197 = scalar_select %p196, %s17, 1
      %s198 = smul.addr %s197, 8
      %s199 = smul.addr %s198, 4
      %s200 = scalar_lea.vmem %s0, %s199
      %p201 = pneg %p38
      %p202 = pneg %p35
      %p203 = pneg %p59
      %p204 = pneg %p56
      %p205 = pneg %p80
      %p206 = pneg %p77
      %p207 = pneg %p101
      %p208 = pneg %p98
      %p209 = pneg %p127
      %p210 = pneg %p124
      %p211 = scmp.lt.s32.totalorder %s17, 1
      %s212 = scalar_select %p211, %s17, 1
      %s213 = smul.addr %s212, 8
      %s214 = smul.addr %s213, 4
      %s215 = scalar_lea.vmem %s4, %s214
      %p216 = pneg %p153
      %p217 = pneg %p150
      %p218 = scmp.lt.s32.totalorder %s17, 1
      %s219 = scalar_select %p218, %s17, 1
      %s220 = smul.addr %s219, 2
      %s221 = scalar_lea.vmem %s5, %s220
      %p222 = scmp.lt.s32.totalorder %s17, 1
      %s223 = scalar_select %p222, %s17, 1
      %s224 = smul.addr %s223, 8
      %s225 = smul.addr %s224, 4
      %s226 = scalar_lea.vmem %s0, %s225
      %p227 = scmp.lt.s32.totalorder %s17, 1
      %s228 = scalar_select %p227, %s17, 1
      %s229 = smul.addr %s228, 8
      %s230 = smul.addr %s229, 4
      %s231 = scalar_lea.vmem %s4, %s230
      %p232 = scmp.lt.s32.totalorder %s17, 1
      %s233 = scalar_select %p232, %s17, 1
      %s234 = smul.addr %s233, 2
      %s235 = scalar_lea.vmem %s5, %s234
      %v237 = vld [vmem:[%s226] sm:$0xf]
      %v238 = vld [vmem:[%s226 + $0x4] sm:$0xf]
      %v239 = vld [vmem:[%s226 + $0x8] sm:$0xf]
      %v240 = vld [vmem:[%s226 + $0xc] sm:$0xf]
      %v241 = vld [vmem:[%s226 + $0x10] sm:$0xf]
      %v242 = vld [vmem:[%s226 + $0x14] sm:$0xf]
      %v243 = vld [vmem:[%s226 + $0x18] sm:$0xf]
      %v244 = vld [vmem:[%s226 + $0x1c] sm:$0xf]
      %v245 = vunpack.c.l.bf16 %v237
      %v246 = vunpack.c.l.bf16 %v238
      %v247 = vunpack.c.l.bf16 %v239
      %v248 = vunpack.c.l.bf16 %v240
      %v249 = vunpack.c.l.bf16 %v241
      %v250 = vunpack.c.l.bf16 %v242
      %v251 = vunpack.c.l.bf16 %v243
      %v252 = vunpack.c.l.bf16 %v244
      %v253 = vld [vmem:[%s1] sm:$0x1]
      %v255 = vlaneseq
      %v256 = vshrl.u32 %v255, 7
      %v257 = vsub.s32 0, %v256
      %v258 = vrot.slane %v253, %v257
      %v260 = vmul.f32 %v245, %v258
      %v261 = vmul.f32 %v246, %v258
      %v262 = vmul.f32 %v247, %v258
      %v263 = vmul.f32 %v248, %v258
      %v264 = vmul.f32 %v249, %v258
      %v265 = vmul.f32 %v250, %v258
      %v266 = vmul.f32 %v251, %v258
      %v267 = vmul.f32 %v252, %v258
      %v268 = vld [vmem:[%s2] sm:$0x1]
      %v270 = vlaneseq
      %v271 = vshrl.u32 %v270, 7
      %v272 = vsub.s32 0, %v271
      %v273 = vrot.slane %v268, %v272
      %v275 = vadd.f32 %v260, %v273
      %v276 = vadd.f32 %v261, %v273
      %v277 = vadd.f32 %v262, %v273
      %v278 = vadd.f32 %v263, %v273
      %v279 = vadd.f32 %v264, %v273
      %v280 = vadd.f32 %v265, %v273
      %v281 = vadd.f32 %v266, %v273
      %v282 = vadd.f32 %v267, %v273
      %v283 = vmax.f32 %v275, 0.0
      %v284 = vmax.f32 %v276, 0.0
      %v285 = vmax.f32 %v277, 0.0
      %v286 = vmax.f32 %v278, 0.0
      %v287 = vmax.f32 %v279, 0.0
      %v288 = vmax.f32 %v280, 0.0
      %v289 = vmax.f32 %v281, 0.0
      %v290 = vmax.f32 %v282, 0.0
      %291 = vst [vmem:[#allocation2] sm:$0xf] 0
      %292 = vst [vmem:[#allocation2 + $0x4] sm:$0xf] 0
      %293 = vst [vmem:[#allocation2 + $0x8] sm:$0xf] 0
      %s294 = scalar_lea.vmem [#allocation2], 108
      %295 = vst [vmem:[%s294] sm:$0xf] 0
      %296 = vst [vmem:[%s294 + $0x4] sm:$0xf] 0
      %297 = vst [vmem:[%s294 + $0x8] sm:$0xf] 0
      %s298 = scalar_lea.vmem [#allocation2], 12
      %299 = vst [vmem:[%s298] sm:$0xf] 0
      %300 = vst [vmem:[%s298 + $0xc] sm:$0xf] 0
      %301 = vst [vmem:[%s298 + $0x18] sm:$0xf] 0
      %302 = vst [vmem:[%s298 + $0x24] sm:$0xf] 0
      %303 = vst [vmem:[%s298 + $0x30] sm:$0xf] 0
      %304 = vst [vmem:[%s298 + $0x3c] sm:$0xf] 0
      %305 = vst [vmem:[%s298 + $0x48] sm:$0xf] 0
      %306 = vst [vmem:[%s298 + $0x54] sm:$0xf] 0
      %307 = vst [vmem:[%s298 + $0x8] sm:$0xf] 0
      %308 = vst [vmem:[%s298 + $0x14] sm:$0xf] 0
      %309 = vst [vmem:[%s298 + $0x20] sm:$0xf] 0
      %310 = vst [vmem:[%s298 + $0x2c] sm:$0xf] 0
      %311 = vst [vmem:[%s298 + $0x38] sm:$0xf] 0
      %312 = vst [vmem:[%s298 + $0x44] sm:$0xf] 0
      %313 = vst [vmem:[%s298 + $0x50] sm:$0xf] 0
      %314 = vst [vmem:[%s298 + $0x5c] sm:$0xf] 0
      %v315 = vpack.c.bf16 %v283, %v283
      %v316 = vpack.c.bf16 %v284, %v284
      %v317 = vpack.c.bf16 %v285, %v285
      %v318 = vpack.c.bf16 %v286, %v286
      %v319 = vpack.c.bf16 %v287, %v287
      %v320 = vpack.c.bf16 %v288, %v288
      %v321 = vpack.c.bf16 %v289, %v289
      %v322 = vpack.c.bf16 %v290, %v290
      %323 = vst [vmem:[%s298 + $0x4] sm:$0xf] %v315
      %324 = vst [vmem:[%s298 + $0x10] sm:$0xf] %v316
      %325 = vst [vmem:[%s298 + $0x1c] sm:$0xf] %v317
      %326 = vst [vmem:[%s298 + $0x28] sm:$0xf] %v318
      %327 = vst [vmem:[%s298 + $0x34] sm:$0xf] %v319
      %328 = vst [vmem:[%s298 + $0x40] sm:$0xf] %v320
      %329 = vst [vmem:[%s298 + $0x4c] sm:$0xf] %v321
      %330 = vst [vmem:[%s298 + $0x58] sm:$0xf] %v322
      %v331 = vld [vmem:[#allocation2] sm:$0x8]
      %v332 = vld [vmem:[#allocation2 + $0x4] sm:$0xf]
      %v333 = vld [vmem:[#allocation2 + $0xc] sm:$0x8]
      %v334 = vld [vmem:[#allocation2 + $0x10] sm:$0xf]
      %v335 = vld [vmem:[#allocation2 + $0x18] sm:$0x8]
      %v336 = vld [vmem:[#allocation2 + $0x1c] sm:$0xf]
      %v337 = vld [vmem:[#allocation2 + $0x24] sm:$0x8]
      %v338 = vld [vmem:[#allocation2 + $0x28] sm:$0xf]
      %v339 = vld [vmem:[#allocation2 + $0x30] sm:$0x8]
      %v340 = vld [vmem:[#allocation2 + $0x34] sm:$0xf]
      %v341 = vld [vmem:[#allocation2 + $0x3c] sm:$0x8]
      %v342 = vld [vmem:[#allocation2 + $0x40] sm:$0xf]
      %v343 = vld [vmem:[#allocation2 + $0x48] sm:$0x8]
      %v344 = vld [vmem:[#allocation2 + $0x4c] sm:$0xf]
      %v345 = vld [vmem:[#allocation2 + $0x54] sm:$0x8]
      %v346 = vld [vmem:[#allocation2 + $0x58] sm:$0xf]
      %vm347 = vsmask.f32 256
      %vm348 = vsmask.f32 4368
      %vm349 = vmor %vm347, %vm348
      %v351 = vshrl.u32 %v331, 16
      %v353 = vrot.slane %v351, 7
      %v354 = vrot.slane %v353, 4
      %v356 = vshrl.u32 %v332, 16
      %v358 = vrot.slane %v356, 7
      %v359 = vshll.u32 %v332, 16
      %v361 = vor.u32 %v358, %v359
      %v362 = vsel %vm349, %v354, %v361
      %v364 = vshrl.u32 %v333, 16
      %v366 = vrot.slane %v364, 7
      %v367 = vrot.slane %v366, 4
      %v369 = vshrl.u32 %v334, 16
      %v371 = vrot.slane %v369, 7
      %v372 = vshll.u32 %v334, 16
      %v374 = vor.u32 %v371, %v372
      %v375 = vsel %vm349, %v367, %v374
      %v377 = vshrl.u32 %v335, 16
      %v379 = vrot.slane %v377, 7
      %v380 = vrot.slane %v379, 4
      %v382 = vshrl.u32 %v336, 16
      %v384 = vrot.slane %v382, 7
      %v385 = vshll.u32 %v336, 16
      %v387 = vor.u32 %v384, %v385
      %v388 = vsel %vm349, %v380, %v387
      %v390 = vshrl.u32 %v337, 16
      %v392 = vrot.slane %v390, 7
      %v393 = vrot.slane %v392, 4
      %v395 = vshrl.u32 %v338, 16
      %v397 = vrot.slane %v395, 7
      %v398 = vshll.u32 %v338, 16
      %v400 = vor.u32 %v397, %v398
      %v401 = vsel %vm349, %v393, %v400
      %v403 = vshrl.u32 %v339, 16
      %v405 = vrot.slane %v403, 7
      %v406 = vrot.slane %v405, 4
      %v408 = vshrl.u32 %v340, 16
      %v410 = vrot.slane %v408, 7
      %v411 = vshll.u32 %v340, 16
      %v413 = vor.u32 %v410, %v411
      %v414 = vsel %vm349, %v406, %v413
      %v416 = vshrl.u32 %v341, 16
      %v418 = vrot.slane %v416, 7
      %v419 = vrot.slane %v418, 4
      %v421 = vshrl.u32 %v342, 16
      %v423 = vrot.slane %v421, 7
      %v424 = vshll.u32 %v342, 16
      %v426 = vor.u32 %v423, %v424
      %v427 = vsel %vm349, %v419, %v426
      %v429 = vshrl.u32 %v343, 16
      %v431 = vrot.slane %v429, 7
      %v432 = vrot.slane %v431, 4
      %v434 = vshrl.u32 %v344, 16
      %v436 = vrot.slane %v434, 7
      %v437 = vshll.u32 %v344, 16
      %v439 = vor.u32 %v436, %v437
      %v440 = vsel %vm349, %v432, %v439
      %v442 = vshrl.u32 %v345, 16
      %v444 = vrot.slane %v442, 7
      %v445 = vrot.slane %v444, 4
      %v447 = vshrl.u32 %v346, 16
      %v449 = vrot.slane %v447, 7
      %v450 = vshll.u32 %v346, 16
      %v452 = vor.u32 %v449, %v450
      %v453 = vsel %vm349, %v445, %v452
      %v454 = vld [vmem:[%s3] sm:$0xf]
      %v455 = vld [vmem:[%s3 + $0x4] sm:$0xf]
      %v456 = vld [vmem:[%s3 + $0x8] sm:$0xf]
      %v457 = vld [vmem:[%s3 + $0xc] sm:$0xf]
      %v458 = vld [vmem:[%s3 + $0x10] sm:$0xf]
      %v459 = vld [vmem:[%s3 + $0x14] sm:$0xf]
      %v460 = vld [vmem:[%s3 + $0x18] sm:$0xf]
      %v461 = vld [vmem:[%s3 + $0x1c] sm:$0xf]
      %v462 = vld [vmem:[%s3 + $0x20] sm:$0xf]
      %v463 = vld [vmem:[%s3 + $0x24] sm:$0xf]
      %v464 = vld [vmem:[%s3 + $0x28] sm:$0xf]
      %v465 = vld [vmem:[%s3 + $0x2c] sm:$0xf]
      %v466 = vld [vmem:[%s3 + $0x30] sm:$0xf]
      %v467 = vld [vmem:[%s3 + $0x34] sm:$0xf]
      %v468 = vld [vmem:[%s3 + $0x38] sm:$0xf]
      %v469 = vld [vmem:[%s3 + $0x3c] sm:$0xf]
      %v470 = vunpack.c.l.b16 %v362
      %v471 = vunpack.c.l.b16 %v375
      %v472 = vunpack.c.l.b16 %v388
      %v473 = vunpack.c.l.b16 %v401
      %v474 = vunpack.c.l.b16 %v414
      %v475 = vunpack.c.l.b16 %v427
      %v476 = vunpack.c.l.b16 %v440
      %v477 = vunpack.c.l.b16 %v453
      %v478 = vpack.c.b16 %v471, %v470
      %v479 = vpack.c.b16 %v473, %v472
      %v480 = vpack.c.b16 %v475, %v474
      %v481 = vpack.c.b16 %v477, %v476
      %v502 = vunpack.c.l.b16 %v454
      %v503 = vunpack.c.l.b16 %v455
      %v504 = vunpack.c.l.b16 %v456
      %v505 = vunpack.c.l.b16 %v457
      %v506 = vunpack.c.l.b16 %v458
      %v507 = vunpack.c.l.b16 %v459
      %v508 = vunpack.c.l.b16 %v460
      %v509 = vunpack.c.l.b16 %v461
      %v510 = vunpack.c.l.b16 %v462
      %v511 = vunpack.c.l.b16 %v463
      %v512 = vunpack.c.l.b16 %v464
      %v513 = vunpack.c.l.b16 %v465
      %v514 = vunpack.c.l.b16 %v466
      %v515 = vunpack.c.l.b16 %v467
      %v516 = vunpack.c.l.b16 %v468
      %v517 = vunpack.c.l.b16 %v469
      %v518 = vpack.c.b16 %v503, %v502
      %v519 = vpack.c.b16 %v505, %v504
      %v520 = vpack.c.b16 %v507, %v506
      %v521 = vpack.c.b16 %v509, %v508
      %v522 = vpack.c.b16 %v511, %v510
      %v523 = vpack.c.b16 %v513, %v512
      %v524 = vpack.c.b16 %v515, %v514
      %v525 = vpack.c.b16 %v517, %v516
      %534 = vmatprep.subr.bf16.mxu0 0
      %535 = vmatpush1.bf16.msra.mxu0 %v525
      %536 = vmatprep.subr.bf16.mxu0 0
      %537 = vmatpush1.bf16.msra.mxu0 %v524
      %538 = vmatprep.subr.bf16.mxu0 0
      %539 = vmatpush1.bf16.msra.mxu0 %v523
      %540 = vmatprep.subr.bf16.mxu0 0
      %541 = vmatpush1.bf16.msra.mxu0 %v522
      %542 = vmatprep.subr.bf16.mxu0 0
      %543 = vmatpush1.bf16.msra.mxu0 %v521
      %544 = vmatprep.subr.bf16.mxu0 0
      %545 = vmatpush1.bf16.msra.mxu0 %v520
      %546 = vmatprep.subr.bf16.mxu0 0
      %547 = vmatpush1.bf16.msra.mxu0 %v519
      %548 = vmatprep.subr.bf16.mxu0 0
      %549 = vmatpush1.bf16.msra.mxu0 %v518
      %550 = vmatprep.subr.bf16.mxu0 0
      %551 = vmatpush2.bf16.msra.mxu0 0
      %552 = vmatprep.subr.bf16.mxu0 0
      %553 = vmatpush2.bf16.msra.mxu0 0
      %554 = vmatprep.subr.bf16.mxu0 0
      %555 = vmatpush2.bf16.msra.mxu0 0
      %556 = vmatprep.subr.bf16.mxu0 0
      %557 = vmatpush2.bf16.msra.mxu0 0
      %558 = vmatprep.subr.bf16.mxu0 0
      %559 = vmatpush2.bf16.msra.mxu0 0
      %560 = vmatprep.subr.bf16.mxu0 0
      %561 = vmatpush2.bf16.msra.mxu0 0
      %562 = vmatprep.subr.bf16.mxu0 0
      %563 = vmatpush2.bf16.msra.mxu0 0
      %564 = vmatprep.subr.bf16.mxu0 0
      %565 = vmatpush2.bf16.msra.mxu0 0
      %566 = vmatprep.mubr.bf16.mxu0 0
      %567 = vmatmul.mubr.bf16.gmra.mxu0 %v478
      %v568 = vpop.f32.mrf.mxu0
      %v569 = vadd.f32 0.0, %v568
      %v570 = vpop.f32.mrf.mxu0
      %v571 = vpop.f32.mrf.mxu0
      %v572 = vadd.f32 0.0, %v571
      %v573 = vpop.f32.mrf.mxu0
      %574 = vmatprep.mubr.bf16.mxu0 0
      %575 = vmatmul.mubr.bf16.gmra.mxu0 %v479
      %v576 = vpop.f32.mrf.mxu0
      %v577 = vadd.f32 0.0, %v576
      %v578 = vpop.f32.mrf.mxu0
      %v579 = vpop.f32.mrf.mxu0
      %v580 = vadd.f32 0.0, %v579
      %v581 = vpop.f32.mrf.mxu0
      %582 = vmatprep.mubr.bf16.mxu0 0
      %583 = vmatmul.mubr.bf16.gmra.mxu0 %v480
      %v584 = vpop.f32.mrf.mxu0
      %v585 = vadd.f32 0.0, %v584
      %v586 = vpop.f32.mrf.mxu0
      %v587 = vpop.f32.mrf.mxu0
      %v588 = vadd.f32 0.0, %v587
      %v589 = vpop.f32.mrf.mxu0
      %590 = vmatprep.mubr.bf16.mxu0 0
      %591 = vmatmul.mubr.bf16.gmra.mxu0 %v481
      %v592 = vpop.f32.mrf.mxu0
      %v593 = vadd.f32 0.0, %v592
      %v594 = vpop.f32.mrf.mxu0
      %v595 = vpop.f32.mrf.mxu0
      %v596 = vadd.f32 0.0, %v595
      %v597 = vpop.f32.mrf.mxu0
      %598 = vdwg.mxu0
      %599 = vst [vmem:[#allocation3] sm:$0xff] %v569
      %600 = vst [vmem:[#allocation3 + $0x8] sm:$0xff] %v572
      %601 = vst [vmem:[#allocation3 + $0x10] sm:$0xff] %v577
      %602 = vst [vmem:[#allocation3 + $0x18] sm:$0xff] %v580
      %603 = vst [vmem:[#allocation3 + $0x20] sm:$0xff] %v585
      %604 = vst [vmem:[#allocation3 + $0x28] sm:$0xff] %v588
      %605 = vst [vmem:[#allocation3 + $0x30] sm:$0xff] %v593
      %606 = vst [vmem:[#allocation3 + $0x38] sm:$0xff] %v596
      %v607 = vld [vmem:[#allocation2 + $0x4] sm:$0xf]
      %v608 = vld [vmem:[#allocation2 + $0x10] sm:$0xf]
      %v609 = vld [vmem:[#allocation2 + $0x1c] sm:$0xf]
      %v610 = vld [vmem:[#allocation2 + $0x28] sm:$0xf]
      %v611 = vld [vmem:[#allocation2 + $0x34] sm:$0xf]
      %v612 = vld [vmem:[#allocation2 + $0x40] sm:$0xf]
      %v613 = vld [vmem:[#allocation2 + $0x4c] sm:$0xf]
      %v614 = vld [vmem:[#allocation2 + $0x58] sm:$0xf]
      %v615 = vld [vmem:[%s3 + $0x40] sm:$0xf]
      %v616 = vld [vmem:[%s3 + $0x44] sm:$0xf]
      %v617 = vld [vmem:[%s3 + $0x48] sm:$0xf]
      %v618 = vld [vmem:[%s3 + $0x4c] sm:$0xf]
      %v619 = vld [vmem:[%s3 + $0x50] sm:$0xf]
      %v620 = vld [vmem:[%s3 + $0x54] sm:$0xf]
      %v621 = vld [vmem:[%s3 + $0x58] sm:$0xf]
      %v622 = vld [vmem:[%s3 + $0x5c] sm:$0xf]
      %v623 = vld [vmem:[%s3 + $0x60] sm:$0xf]
      %v624 = vld [vmem:[%s3 + $0x64] sm:$0xf]
      %v625 = vld [vmem:[%s3 + $0x68] sm:$0xf]
      %v626 = vld [vmem:[%s3 + $0x6c] sm:$0xf]
      %v627 = vld [vmem:[%s3 + $0x70] sm:$0xf]
      %v628 = vld [vmem:[%s3 + $0x74] sm:$0xf]
      %v629 = vld [vmem:[%s3 + $0x78] sm:$0xf]
      %v630 = vld [vmem:[%s3 + $0x7c] sm:$0xf]
      %v639 = vunpack.c.l.b16 %v607
      %v640 = vunpack.c.l.b16 %v608
      %v641 = vunpack.c.l.b16 %v609
      %v642 = vunpack.c.l.b16 %v610
      %v643 = vunpack.c.l.b16 %v611
      %v644 = vunpack.c.l.b16 %v612
      %v645 = vunpack.c.l.b16 %v613
      %v646 = vunpack.c.l.b16 %v614
      %v647 = vpack.c.b16 %v640, %v639
      %v648 = vpack.c.b16 %v642, %v641
      %v649 = vpack.c.b16 %v644, %v643
      %v650 = vpack.c.b16 %v646, %v645
      %v671 = vunpack.c.l.b16 %v615
      %v672 = vunpack.c.l.b16 %v616
      %v673 = vunpack.c.l.b16 %v617
      %v674 = vunpack.c.l.b16 %v618
      %v675 = vunpack.c.l.b16 %v619
      %v676 = vunpack.c.l.b16 %v620
      %v677 = vunpack.c.l.b16 %v621
      %v678 = vunpack.c.l.b16 %v622
      %v679 = vunpack.c.l.b16 %v623
      %v680 = vunpack.c.l.b16 %v624
      %v681 = vunpack.c.l.b16 %v625
      %v682 = vunpack.c.l.b16 %v626
      %v683 = vunpack.c.l.b16 %v627
      %v684 = vunpack.c.l.b16 %v628
      %v685 = vunpack.c.l.b16 %v629
      %v686 = vunpack.c.l.b16 %v630
      %v687 = vpack.c.b16 %v672, %v671
      %v688 = vpack.c.b16 %v674, %v673
      %v689 = vpack.c.b16 %v676, %v675
      %v690 = vpack.c.b16 %v678, %v677
      %v691 = vpack.c.b16 %v680, %v679
      %v692 = vpack.c.b16 %v682, %v681
      %v693 = vpack.c.b16 %v684, %v683
      %v694 = vpack.c.b16 %v686, %v685
      %703 = vmatprep.subr.bf16.mxu0 0
      %704 = vmatpush1.bf16.msra.mxu0 %v694
      %705 = vmatprep.subr.bf16.mxu0 0
      %706 = vmatpush1.bf16.msra.mxu0 %v693
      %707 = vmatprep.subr.bf16.mxu0 0
      %708 = vmatpush1.bf16.msra.mxu0 %v692
      %709 = vmatprep.subr.bf16.mxu0 0
      %710 = vmatpush1.bf16.msra.mxu0 %v691
      %711 = vmatprep.subr.bf16.mxu0 0
      %712 = vmatpush1.bf16.msra.mxu0 %v690
      %713 = vmatprep.subr.bf16.mxu0 0
      %714 = vmatpush1.bf16.msra.mxu0 %v689
      %715 = vmatprep.subr.bf16.mxu0 0
      %716 = vmatpush1.bf16.msra.mxu0 %v688
      %717 = vmatprep.subr.bf16.mxu0 0
      %718 = vmatpush1.bf16.msra.mxu0 %v687
      %719 = vmatprep.subr.bf16.mxu0 0
      %720 = vmatpush2.bf16.msra.mxu0 0
      %721 = vmatprep.subr.bf16.mxu0 0
      %722 = vmatpush2.bf16.msra.mxu0 0
      %723 = vmatprep.subr.bf16.mxu0 0
      %724 = vmatpush2.bf16.msra.mxu0 0
      %725 = vmatprep.subr.bf16.mxu0 0
      %726 = vmatpush2.bf16.msra.mxu0 0
      %727 = vmatprep.subr.bf16.mxu0 0
      %728 = vmatpush2.bf16.msra.mxu0 0
      %729 = vmatprep.subr.bf16.mxu0 0
      %730 = vmatpush2.bf16.msra.mxu0 0
      %731 = vmatprep.subr.bf16.mxu0 0
      %732 = vmatpush2.bf16.msra.mxu0 0
      %733 = vmatprep.subr.bf16.mxu0 0
      %734 = vmatpush2.bf16.msra.mxu0 0
      %735 = vmatprep.mubr.bf16.mxu0 0
      %736 = vmatmul.mubr.bf16.gmra.mxu0 %v647
      %v737 = vpop.f32.mrf.mxu0
      %v738 = vadd.f32 0.0, %v737
      %v739 = vpop.f32.mrf.mxu0
      %v740 = vpop.f32.mrf.mxu0
      %v741 = vadd.f32 0.0, %v740
      %v742 = vpop.f32.mrf.mxu0
      %743 = vmatprep.mubr.bf16.mxu0 0
      %744 = vmatmul.mubr.bf16.gmra.mxu0 %v648
      %v745 = vpop.f32.mrf.mxu0
      %v746 = vadd.f32 0.0, %v745
      %v747 = vpop.f32.mrf.mxu0
      %v748 = vpop.f32.mrf.mxu0
      %v749 = vadd.f32 0.0, %v748
      %v750 = vpop.f32.mrf.mxu0
      %751 = vmatprep.mubr.bf16.mxu0 0
      %752 = vmatmul.mubr.bf16.gmra.mxu0 %v649
      %v753 = vpop.f32.mrf.mxu0
      %v754 = vadd.f32 0.0, %v753
      %v755 = vpop.f32.mrf.mxu0
      %v756 = vpop.f32.mrf.mxu0
      %v757 = vadd.f32 0.0, %v756
      %v758 = vpop.f32.mrf.mxu0
      %759 = vmatprep.mubr.bf16.mxu0 0
      %760 = vmatmul.mubr.bf16.gmra.mxu0 %v650
      %v761 = vpop.f32.mrf.mxu0
      %v762 = vadd.f32 0.0, %v761
      %v763 = vpop.f32.mrf.mxu0
      %v764 = vpop.f32.mrf.mxu0
      %v765 = vadd.f32 0.0, %v764
      %v766 = vpop.f32.mrf.mxu0
      %767 = vdwg.mxu0
      %v768 = vld [vmem:[#allocation3] sm:$0xff]
      %v769 = vld [vmem:[#allocation3 + $0x8] sm:$0xff]
      %v770 = vld [vmem:[#allocation3 + $0x10] sm:$0xff]
      %v771 = vld [vmem:[#allocation3 + $0x18] sm:$0xff]
      %v772 = vld [vmem:[#allocation3 + $0x20] sm:$0xff]
      %v773 = vld [vmem:[#allocation3 + $0x28] sm:$0xff]
      %v774 = vld [vmem:[#allocation3 + $0x30] sm:$0xff]
      %v775 = vld [vmem:[#allocation3 + $0x38] sm:$0xff]
      %v776 = vadd.f32 %v768, %v738
      %v777 = vadd.f32 %v769, %v741
      %v778 = vadd.f32 %v770, %v746
      %v779 = vadd.f32 %v771, %v749
      %v780 = vadd.f32 %v772, %v754
      %v781 = vadd.f32 %v773, %v757
      %v782 = vadd.f32 %v774, %v762
      %v783 = vadd.f32 %v775, %v765
      %784 = vst [vmem:[#allocation3] sm:$0xff] %v776
      %785 = vst [vmem:[#allocation3 + $0x8] sm:$0xff] %v777
      %786 = vst [vmem:[#allocation3 + $0x10] sm:$0xff] %v778
      %787 = vst [vmem:[#allocation3 + $0x18] sm:$0xff] %v779
      %788 = vst [vmem:[#allocation3 + $0x20] sm:$0xff] %v780
      %789 = vst [vmem:[#allocation3 + $0x28] sm:$0xff] %v781
      %790 = vst [vmem:[#allocation3 + $0x30] sm:$0xff] %v782
      %791 = vst [vmem:[#allocation3 + $0x38] sm:$0xff] %v783
      %v792 = vld [vmem:[#allocation2 + $0x4] sm:$0xf]
      %v793 = vld [vmem:[#allocation2 + $0x8] sm:$0x1]
      %v794 = vld [vmem:[#allocation2 + $0x10] sm:$0xf]
      %v795 = vld [vmem:[#allocation2 + $0x14] sm:$0x1]
      %v796 = vld [vmem:[#allocation2 + $0x1c] sm:$0xf]
      %v797 = vld [vmem:[#allocation2 + $0x20] sm:$0x1]
      %v798 = vld [vmem:[#allocation2 + $0x28] sm:$0xf]
      %v799 = vld [vmem:[#allocation2 + $0x2c] sm:$0x1]
      %v800 = vld [vmem:[#allocation2 + $0x34] sm:$0xf]
      %v801 = vld [vmem:[#allocation2 + $0x38] sm:$0x1]
      %v802 = vld [vmem:[#allocation2 + $0x40] sm:$0xf]
      %v803 = vld [vmem:[#allocation2 + $0x44] sm:$0x1]
      %v804 = vld [vmem:[#allocation2 + $0x4c] sm:$0xf]
      %v805 = vld [vmem:[#allocation2 + $0x50] sm:$0x1]
      %v806 = vld [vmem:[#allocation2 + $0x58] sm:$0xf]
      %v807 = vld [vmem:[#allocation2 + $0x5c] sm:$0x1]
      %vm808 = vsmask.f32 3328
      %vm809 = vsmask.f32 7440
      %vm810 = vmor %vm808, %vm809
      %v812 = vshrl.u32 %v792, 16
      %v814 = vrot.slane %v812, 4
      %v815 = vshll.u32 %v792, 16
      %v817 = vrot.slane %v815, 5
      %v818 = vor.u32 %v814, %v817
      %v819 = vrot.slane %v818, 4
      %v821 = vshll.u32 %v793, 16
      %v823 = vrot.slane %v821, 5
      %v824 = vsel %vm810, %v819, %v823
      %v826 = vshrl.u32 %v794, 16
      %v828 = vrot.slane %v826, 4
      %v829 = vshll.u32 %v794, 16
      %v831 = vrot.slane %v829, 5
      %v832 = vor.u32 %v828, %v831
      %v833 = vrot.slane %v832, 4
      %v835 = vshll.u32 %v795, 16
      %v837 = vrot.slane %v835, 5
      %v838 = vsel %vm810, %v833, %v837
      %v840 = vshrl.u32 %v796, 16
      %v842 = vrot.slane %v840, 4
      %v843 = vshll.u32 %v796, 16
      %v845 = vrot.slane %v843, 5
      %v846 = vor.u32 %v842, %v845
      %v847 = vrot.slane %v846, 4
      %v849 = vshll.u32 %v797, 16
      %v851 = vrot.slane %v849, 5
      %v852 = vsel %vm810, %v847, %v851
      %v854 = vshrl.u32 %v798, 16
      %v856 = vrot.slane %v854, 4
      %v857 = vshll.u32 %v798, 16
      %v859 = vrot.slane %v857, 5
      %v860 = vor.u32 %v856, %v859
      %v861 = vrot.slane %v860, 4
      %v863 = vshll.u32 %v799, 16
      %v865 = vrot.slane %v863, 5
      %v866 = vsel %vm810, %v861, %v865
      %v868 = vshrl.u32 %v800, 16
      %v870 = vrot.slane %v868, 4
      %v871 = vshll.u32 %v800, 16
      %v873 = vrot.slane %v871, 5
      %v874 = vor.u32 %v870, %v873
      %v875 = vrot.slane %v874, 4
      %v877 = vshll.u32 %v801, 16
      %v879 = vrot.slane %v877, 5
      %v880 = vsel %vm810, %v875, %v879
      %v882 = vshrl.u32 %v802, 16
      %v884 = vrot.slane %v882, 4
      %v885 = vshll.u32 %v802, 16
      %v887 = vrot.slane %v885, 5
      %v888 = vor.u32 %v884, %v887
      %v889 = vrot.slane %v888, 4
      %v891 = vshll.u32 %v803, 16
      %v893 = vrot.slane %v891, 5
      %v894 = vsel %vm810, %v889, %v893
      %v896 = vshrl.u32 %v804, 16
      %v898 = vrot.slane %v896, 4
      %v899 = vshll.u32 %v804, 16
      %v901 = vrot.slane %v899, 5
      %v902 = vor.u32 %v898, %v901
      %v903 = vrot.slane %v902, 4
      %v905 = vshll.u32 %v805, 16
      %v907 = vrot.slane %v905, 5
      %v908 = vsel %vm810, %v903, %v907
      %v910 = vshrl.u32 %v806, 16
      %v912 = vrot.slane %v910, 4
      %v913 = vshll.u32 %v806, 16
      %v915 = vrot.slane %v913, 5
      %v916 = vor.u32 %v912, %v915
      %v917 = vrot.slane %v916, 4
      %v919 = vshll.u32 %v807, 16
      %v921 = vrot.slane %v919, 5
      %v922 = vsel %vm810, %v917, %v921
      %v923 = vld [vmem:[%s3 + $0x80] sm:$0xf]
      %v924 = vld [vmem:[%s3 + $0x84] sm:$0xf]
      %v925 = vld [vmem:[%s3 + $0x88] sm:$0xf]
      %v926 = vld [vmem:[%s3 + $0x8c] sm:$0xf]
      %v927 = vld [vmem:[%s3 + $0x90] sm:$0xf]
      %v928 = vld [vmem:[%s3 + $0x94] sm:$0xf]
      %v929 = vld [vmem:[%s3 + $0x98] sm:$0xf]
      %v930 = vld [vmem:[%s3 + $0x9c] sm:$0xf]
      %v931 = vld [vmem:[%s3 + $0xa0] sm:$0xf]
      %v932 = vld [vmem:[%s3 + $0xa4] sm:$0xf]
      %v933 = vld [vmem:[%s3 + $0xa8] sm:$0xf]
      %v934 = vld [vmem:[%s3 + $0xac] sm:$0xf]
      %v935 = vld [vmem:[%s3 + $0xb0] sm:$0xf]
      %v936 = vld [vmem:[%s3 + $0xb4] sm:$0xf]
      %v937 = vld [vmem:[%s3 + $0xb8] sm:$0xf]
      %v938 = vld [vmem:[%s3 + $0xbc] sm:$0xf]
      %v939 = vunpack.c.l.b16 %v824
      %v940 = vunpack.c.l.b16 %v838
      %v941 = vunpack.c.l.b16 %v852
      %v942 = vunpack.c.l.b16 %v866
      %v943 = vunpack.c.l.b16 %v880
      %v944 = vunpack.c.l.b16 %v894
      %v945 = vunpack.c.l.b16 %v908
      %v946 = vunpack.c.l.b16 %v922
      %v947 = vpack.c.b16 %v940, %v939
      %v948 = vpack.c.b16 %v942, %v941
      %v949 = vpack.c.b16 %v944, %v943
      %v950 = vpack.c.b16 %v946, %v945
      %v971 = vunpack.c.l.b16 %v923
      %v972 = vunpack.c.l.b16 %v924
      %v973 = vunpack.c.l.b16 %v925
      %v974 = vunpack.c.l.b16 %v926
      %v975 = vunpack.c.l.b16 %v927
      %v976 = vunpack.c.l.b16 %v928
      %v977 = vunpack.c.l.b16 %v929
      %v978 = vunpack.c.l.b16 %v930
      %v979 = vunpack.c.l.b16 %v931
      %v980 = vunpack.c.l.b16 %v932
      %v981 = vunpack.c.l.b16 %v933
      %v982 = vunpack.c.l.b16 %v934
      %v983 = vunpack.c.l.b16 %v935
      %v984 = vunpack.c.l.b16 %v936
      %v985 = vunpack.c.l.b16 %v937
      %v986 = vunpack.c.l.b16 %v938
      %v987 = vpack.c.b16 %v972, %v971
      %v988 = vpack.c.b16 %v974, %v973
      %v989 = vpack.c.b16 %v976, %v975
      %v990 = vpack.c.b16 %v978, %v977
      %v991 = vpack.c.b16 %v980, %v979
      %v992 = vpack.c.b16 %v982, %v981
      %v993 = vpack.c.b16 %v984, %v983
      %v994 = vpack.c.b16 %v986, %v985
      %1003 = vmatprep.subr.bf16.mxu0 0
      %1004 = vmatpush1.bf16.msra.mxu0 %v994
      %1005 = vmatprep.subr.bf16.mxu0 0
      %1006 = vmatpush1.bf16.msra.mxu0 %v993
      %1007 = vmatprep.subr.bf16.mxu0 0
      %1008 = vmatpush1.bf16.msra.mxu0 %v992
      %1009 = vmatprep.subr.bf16.mxu0 0
      %1010 = vmatpush1.bf16.msra.mxu0 %v991
      %1011 = vmatprep.subr.bf16.mxu0 0
      %1012 = vmatpush1.bf16.msra.mxu0 %v990
      %1013 = vmatprep.subr.bf16.mxu0 0
      %1014 = vmatpush1.bf16.msra.mxu0 %v989
      %1015 = vmatprep.subr.bf16.mxu0 0
      %1016 = vmatpush1.bf16.msra.mxu0 %v988
      %1017 = vmatprep.subr.bf16.mxu0 0
      %1018 = vmatpush1.bf16.msra.mxu0 %v987
      %1019 = vmatprep.subr.bf16.mxu0 0
      %1020 = vmatpush2.bf16.msra.mxu0 0
      %1021 = vmatprep.subr.bf16.mxu0 0
      %1022 = vmatpush2.bf16.msra.mxu0 0
      %1023 = vmatprep.subr.bf16.mxu0 0
      %1024 = vmatpush2.bf16.msra.mxu0 0
      %1025 = vmatprep.subr.bf16.mxu0 0
      %1026 = vmatpush2.bf16.msra.mxu0 0
      %1027 = vmatprep.subr.bf16.mxu0 0
      %1028 = vmatpush2.bf16.msra.mxu0 0
      %1029 = vmatprep.subr.bf16.mxu0 0
      %1030 = vmatpush2.bf16.msra.mxu0 0
      %1031 = vmatprep.subr.bf16.mxu0 0
      %1032 = vmatpush2.bf16.msra.mxu0 0
      %1033 = vmatprep.subr.bf16.mxu0 0
      %1034 = vmatpush2.bf16.msra.mxu0 0
      %1035 = vmatprep.mubr.bf16.mxu0 0
      %1036 = vmatmul.mubr.bf16.gmra.mxu0 %v947
      %v1037 = vpop.f32.mrf.mxu0
      %v1038 = vadd.f32 0.0, %v1037
      %v1039 = vpop.f32.mrf.mxu0
      %v1040 = vpop.f32.mrf.mxu0
      %v1041 = vadd.f32 0.0, %v1040
      %v1042 = vpop.f32.mrf.mxu0
      %1043 = vmatprep.mubr.bf16.mxu0 0
      %1044 = vmatmul.mubr.bf16.gmra.mxu0 %v948
      %v1045 = vpop.f32.mrf.mxu0
      %v1046 = vadd.f32 0.0, %v1045
      %v1047 = vpop.f32.mrf.mxu0
      %v1048 = vpop.f32.mrf.mxu0
      %v1049 = vadd.f32 0.0, %v1048
      %v1050 = vpop.f32.mrf.mxu0
      %1051 = vmatprep.mubr.bf16.mxu0 0
      %1052 = vmatmul.mubr.bf16.gmra.mxu0 %v949
      %v1053 = vpop.f32.mrf.mxu0
      %v1054 = vadd.f32 0.0, %v1053
      %v1055 = vpop.f32.mrf.mxu0
      %v1056 = vpop.f32.mrf.mxu0
      %v1057 = vadd.f32 0.0, %v1056
      %v1058 = vpop.f32.mrf.mxu0
      %1059 = vmatprep.mubr.bf16.mxu0 0
      %1060 = vmatmul.mubr.bf16.gmra.mxu0 %v950
      %v1061 = vpop.f32.mrf.mxu0
      %v1062 = vadd.f32 0.0, %v1061
      %v1063 = vpop.f32.mrf.mxu0
      %v1064 = vpop.f32.mrf.mxu0
      %v1065 = vadd.f32 0.0, %v1064
      %v1066 = vpop.f32.mrf.mxu0
      %1067 = vdwg.mxu0
      %v1068 = vld [vmem:[#allocation3] sm:$0xff]
      %v1069 = vld [vmem:[#allocation3 + $0x8] sm:$0xff]
      %v1070 = vld [vmem:[#allocation3 + $0x10] sm:$0xff]
      %v1071 = vld [vmem:[#allocation3 + $0x18] sm:$0xff]
      %v1072 = vld [vmem:[#allocation3 + $0x20] sm:$0xff]
      %v1073 = vld [vmem:[#allocation3 + $0x28] sm:$0xff]
      %v1074 = vld [vmem:[#allocation3 + $0x30] sm:$0xff]
      %v1075 = vld [vmem:[#allocation3 + $0x38] sm:$0xff]
      %v1076 = vadd.f32 %v1068, %v1038
      %v1077 = vadd.f32 %v1069, %v1041
      %v1078 = vadd.f32 %v1070, %v1046
      %v1079 = vadd.f32 %v1071, %v1049
      %v1080 = vadd.f32 %v1072, %v1054
      %v1081 = vadd.f32 %v1073, %v1057
      %v1082 = vadd.f32 %v1074, %v1062
      %v1083 = vadd.f32 %v1075, %v1065
      %1084 = vst [vmem:[#allocation3] sm:$0xff] %v1076
      %1085 = vst [vmem:[#allocation3 + $0x8] sm:$0xff] %v1077
      %1086 = vst [vmem:[#allocation3 + $0x10] sm:$0xff] %v1078
      %1087 = vst [vmem:[#allocation3 + $0x18] sm:$0xff] %v1079
      %1088 = vst [vmem:[#allocation3 + $0x20] sm:$0xff] %v1080
      %1089 = vst [vmem:[#allocation3 + $0x28] sm:$0xff] %v1081
      %1090 = vst [vmem:[#allocation3 + $0x30] sm:$0xff] %v1082
      %1091 = vst [vmem:[#allocation3 + $0x38] sm:$0xff] %v1083
      %v1092 = vld [vmem:[%s298] sm:$0x8]
      %v1093 = vld [vmem:[%s298 + $0x4] sm:$0xf]
      %v1094 = vld [vmem:[%s298 + $0xc] sm:$0x8]
      %v1095 = vld [vmem:[%s298 + $0x10] sm:$0xf]
      %v1096 = vld [vmem:[%s298 + $0x18] sm:$0x8]
      %v1097 = vld [vmem:[%s298 + $0x1c] sm:$0xf]
      %v1098 = vld [vmem:[%s298 + $0x24] sm:$0x8]
      %v1099 = vld [vmem:[%s298 + $0x28] sm:$0xf]
      %v1100 = vld [vmem:[%s298 + $0x30] sm:$0x8]
      %v1101 = vld [vmem:[%s298 + $0x34] sm:$0xf]
      %v1102 = vld [vmem:[%s298 + $0x3c] sm:$0x8]
      %v1103 = vld [vmem:[%s298 + $0x40] sm:$0xf]
      %v1104 = vld [vmem:[%s298 + $0x48] sm:$0x8]
      %v1105 = vld [vmem:[%s298 + $0x4c] sm:$0xf]
      %v1106 = vld [vmem:[%s298 + $0x54] sm:$0x8]
      %v1107 = vld [vmem:[%s298 + $0x58] sm:$0xf]
      %v1109 = vshrl.u32 %v1092, 16
      %v1111 = vrot.slane %v1109, 7
      %v1112 = vrot.slane %v1111, 4
      %v1114 = vshrl.u32 %v1093, 16
      %v1116 = vrot.slane %v1114, 7
      %v1117 = vshll.u32 %v1093, 16
      %v1119 = vor.u32 %v1116, %v1117
      %v1120 = vsel %vm349, %v1112, %v1119
      %v1122 = vshrl.u32 %v1094, 16
      %v1124 = vrot.slane %v1122, 7
      %v1125 = vrot.slane %v1124, 4
      %v1127 = vshrl.u32 %v1095, 16
      %v1129 = vrot.slane %v1127, 7
      %v1130 = vshll.u32 %v1095, 16
      %v1132 = vor.u32 %v1129, %v1130
      %v1133 = vsel %vm349, %v1125, %v1132
      %v1135 = vshrl.u32 %v1096, 16
      %v1137 = vrot.slane %v1135, 7
      %v1138 = vrot.slane %v1137, 4
      %v1140 = vshrl.u32 %v1097, 16
      %v1142 = vrot.slane %v1140, 7
      %v1143 = vshll.u32 %v1097, 16
      %v1145 = vor.u32 %v1142, %v1143
      %v1146 = vsel %vm349, %v1138, %v1145
      %v1148 = vshrl.u32 %v1098, 16
      %v1150 = vrot.slane %v1148, 7
      %v1151 = vrot.slane %v1150, 4
      %v1153 = vshrl.u32 %v1099, 16
      %v1155 = vrot.slane %v1153, 7
      %v1156 = vshll.u32 %v1099, 16
      %v1158 = vor.u32 %v1155, %v1156
      %v1159 = vsel %vm349, %v1151, %v1158
      %v1161 = vshrl.u32 %v1100, 16
      %v1163 = vrot.slane %v1161, 7
      %v1164 = vrot.slane %v1163, 4
      %v1166 = vshrl.u32 %v1101, 16
      %v1168 = vrot.slane %v1166, 7
      %v1169 = vshll.u32 %v1101, 16
      %v1171 = vor.u32 %v1168, %v1169
      %v1172 = vsel %vm349, %v1164, %v1171
      %v1174 = vshrl.u32 %v1102, 16
      %v1176 = vrot.slane %v1174, 7
      %v1177 = vrot.slane %v1176, 4
      %v1179 = vshrl.u32 %v1103, 16
      %v1181 = vrot.slane %v1179, 7
      %v1182 = vshll.u32 %v1103, 16
      %v1184 = vor.u32 %v1181, %v1182
      %v1185 = vsel %vm349, %v1177, %v1184
      %v1187 = vshrl.u32 %v1104, 16
      %v1189 = vrot.slane %v1187, 7
      %v1190 = vrot.slane %v1189, 4
      %v1192 = vshrl.u32 %v1105, 16
      %v1194 = vrot.slane %v1192, 7
      %v1195 = vshll.u32 %v1105, 16
      %v1197 = vor.u32 %v1194, %v1195
      %v1198 = vsel %vm349, %v1190, %v1197
      %v1200 = vshrl.u32 %v1106, 16
      %v1202 = vrot.slane %v1200, 7
      %v1203 = vrot.slane %v1202, 4
      %v1205 = vshrl.u32 %v1107, 16
      %v1207 = vrot.slane %v1205, 7
      %v1208 = vshll.u32 %v1107, 16
      %v1210 = vor.u32 %v1207, %v1208
      %v1211 = vsel %vm349, %v1203, %v1210
      %v1212 = vld [vmem:[%s3 + $0xc0] sm:$0xf]
      %v1213 = vld [vmem:[%s3 + $0xc4] sm:$0xf]
      %v1214 = vld [vmem:[%s3 + $0xc8] sm:$0xf]
      %v1215 = vld [vmem:[%s3 + $0xcc] sm:$0xf]
      %v1216 = vld [vmem:[%s3 + $0xd0] sm:$0xf]
      %v1217 = vld [vmem:[%s3 + $0xd4] sm:$0xf]
      %v1218 = vld [vmem:[%s3 + $0xd8] sm:$0xf]
      %v1219 = vld [vmem:[%s3 + $0xdc] sm:$0xf]
      %v1220 = vld [vmem:[%s3 + $0xe0] sm:$0xf]
      %v1221 = vld [vmem:[%s3 + $0xe4] sm:$0xf]
      %v1222 = vld [vmem:[%s3 + $0xe8] sm:$0xf]
      %v1223 = vld [vmem:[%s3 + $0xec] sm:$0xf]
      %v1224 = vld [vmem:[%s3 + $0xf0] sm:$0xf]
      %v1225 = vld [vmem:[%s3 + $0xf4] sm:$0xf]
      %v1226 = vld [vmem:[%s3 + $0xf8] sm:$0xf]
      %v1227 = vld [vmem:[%s3 + $0xfc] sm:$0xf]
      %v1228 = vunpack.c.l.b16 %v1120
      %v1229 = vunpack.c.l.b16 %v1133
      %v1230 = vunpack.c.l.b16 %v1146
      %v1231 = vunpack.c.l.b16 %v1159
      %v1232 = vunpack.c.l.b16 %v1172
      %v1233 = vunpack.c.l.b16 %v1185
      %v1234 = vunpack.c.l.b16 %v1198
      %v1235 = vunpack.c.l.b16 %v1211
      %v1236 = vpack.c.b16 %v1229, %v1228
      %v1237 = vpack.c.b16 %v1231, %v1230
      %v1238 = vpack.c.b16 %v1233, %v1232
      %v1239 = vpack.c.b16 %v1235, %v1234
      %v1260 = vunpack.c.l.b16 %v1212
      %v1261 = vunpack.c.l.b16 %v1213
      %v1262 = vunpack.c.l.b16 %v1214
      %v1263 = vunpack.c.l.b16 %v1215
      %v1264 = vunpack.c.l.b16 %v1216
      %v1265 = vunpack.c.l.b16 %v1217
      %v1266 = vunpack.c.l.b16 %v1218
      %v1267 = vunpack.c.l.b16 %v1219
      %v1268 = vunpack.c.l.b16 %v1220
      %v1269 = vunpack.c.l.b16 %v1221
      %v1270 = vunpack.c.l.b16 %v1222
      %v1271 = vunpack.c.l.b16 %v1223
      %v1272 = vunpack.c.l.b16 %v1224
      %v1273 = vunpack.c.l.b16 %v1225
      %v1274 = vunpack.c.l.b16 %v1226
      %v1275 = vunpack.c.l.b16 %v1227
      %v1276 = vpack.c.b16 %v1261, %v1260
      %v1277 = vpack.c.b16 %v1263, %v1262
      %v1278 = vpack.c.b16 %v1265, %v1264
      %v1279 = vpack.c.b16 %v1267, %v1266
      %v1280 = vpack.c.b16 %v1269, %v1268
      %v1281 = vpack.c.b16 %v1271, %v1270
      %v1282 = vpack.c.b16 %v1273, %v1272
      %v1283 = vpack.c.b16 %v1275, %v1274
      %1292 = vmatprep.subr.bf16.mxu0 0
      %1293 = vmatpush1.bf16.msra.mxu0 %v1283
      %1294 = vmatprep.subr.bf16.mxu0 0
      %1295 = vmatpush1.bf16.msra.mxu0 %v1282
      %1296 = vmatprep.subr.bf16.mxu0 0
      %1297 = vmatpush1.bf16.msra.mxu0 %v1281
      %1298 = vmatprep.subr.bf16.mxu0 0
      %1299 = vmatpush1.bf16.msra.mxu0 %v1280
      %1300 = vmatprep.subr.bf16.mxu0 0
      %1301 = vmatpush1.bf16.msra.mxu0 %v1279
      %1302 = vmatprep.subr.bf16.mxu0 0
      %1303 = vmatpush1.bf16.msra.mxu0 %v1278
      %1304 = vmatprep.subr.bf16.mxu0 0
      %1305 = vmatpush1.bf16.msra.mxu0 %v1277
      %1306 = vmatprep.subr.bf16.mxu0 0
      %1307 = vmatpush1.bf16.msra.mxu0 %v1276
      %1308 = vmatprep.subr.bf16.mxu0 0
      %1309 = vmatpush2.bf16.msra.mxu0 0
      %1310 = vmatprep.subr.bf16.mxu0 0
      %1311 = vmatpush2.bf16.msra.mxu0 0
      %1312 = vmatprep.subr.bf16.mxu0 0
      %1313 = vmatpush2.bf16.msra.mxu0 0
      %1314 = vmatprep.subr.bf16.mxu0 0
      %1315 = vmatpush2.bf16.msra.mxu0 0
      %1316 = vmatprep.subr.bf16.mxu0 0
      %1317 = vmatpush2.bf16.msra.mxu0 0
      %1318 = vmatprep.subr.bf16.mxu0 0
      %1319 = vmatpush2.bf16.msra.mxu0 0
      %1320 = vmatprep.subr.bf16.mxu0 0
      %1321 = vmatpush2.bf16.msra.mxu0 0
      %1322 = vmatprep.subr.bf16.mxu0 0
      %1323 = vmatpush2.bf16.msra.mxu0 0
      %1324 = vmatprep.mubr.bf16.mxu0 0
      %1325 = vmatmul.mubr.bf16.gmra.mxu0 %v1236
      %v1326 = vpop.f32.mrf.mxu0
      %v1327 = vadd.f32 0.0, %v1326
      %v1328 = vpop.f32.mrf.mxu0
      %v1329 = vpop.f32.mrf.mxu0
      %v1330 = vadd.f32 0.0, %v1329
      %v1331 = vpop.f32.mrf.mxu0
      %1332 = vmatprep.mubr.bf16.mxu0 0
      %1333 = vmatmul.mubr.bf16.gmra.mxu0 %v1237
      %v1334 = vpop.f32.mrf.mxu0
      %v1335 = vadd.f32 0.0, %v1334
      %v1336 = vpop.f32.mrf.mxu0
      %v1337 = vpop.f32.mrf.mxu0
      %v1338 = vadd.f32 0.0, %v1337
      %v1339 = vpop.f32.mrf.mxu0
      %1340 = vmatprep.mubr.bf16.mxu0 0
      %1341 = vmatmul.mubr.bf16.gmra.mxu0 %v1238
      %v1342 = vpop.f32.mrf.mxu0
      %v1343 = vadd.f32 0.0, %v1342
      %v1344 = vpop.f32.mrf.mxu0
      %v1345 = vpop.f32.mrf.mxu0
      %v1346 = vadd.f32 0.0, %v1345
      %v1347 = vpop.f32.mrf.mxu0
      %1348 = vmatprep.mubr.bf16.mxu0 0
      %1349 = vmatmul.mubr.bf16.gmra.mxu0 %v1239
      %v1350 = vpop.f32.mrf.mxu0
      %v1351 = vadd.f32 0.0, %v1350
      %v1352 = vpop.f32.mrf.mxu0
      %v1353 = vpop.f32.mrf.mxu0
      %v1354 = vadd.f32 0.0, %v1353
      %v1355 = vpop.f32.mrf.mxu0
      %1356 = vdwg.mxu0
      %v1357 = vld [vmem:[#allocation3] sm:$0xff]
      %v1358 = vld [vmem:[#allocation3 + $0x8] sm:$0xff]
      %v1359 = vld [vmem:[#allocation3 + $0x10] sm:$0xff]
      %v1360 = vld [vmem:[#allocation3 + $0x18] sm:$0xff]
      %v1361 = vld [vmem:[#allocation3 + $0x20] sm:$0xff]
      %v1362 = vld [vmem:[#allocation3 + $0x28] sm:$0xff]
      %v1363 = vld [vmem:[#allocation3 + $0x30] sm:$0xff]
      %v1364 = vld [vmem:[#allocation3 + $0x38] sm:$0xff]
      %v1365 = vadd.f32 %v1357, %v1327
      %v1366 = vadd.f32 %v1358, %v1330
      %v1367 = vadd.f32 %v1359, %v1335
      %v1368 = vadd.f32 %v1360, %v1338
      %v1369 = vadd.f32 %v1361, %v1343
      %v1370 = vadd.f32 %v1362, %v1346
      %v1371 = vadd.f32 %v1363, %v1351
      %v1372 = vadd.f32 %v1364, %v1354
      %1373 = vst [vmem:[#allocation3] sm:$0xff] %v1365
      %1374 = vst [vmem:[#allocation3 + $0x8] sm:$0xff] %v1366
      %1375 = vst [vmem:[#allocation3 + $0x10] sm:$0xff] %v1367
      %1376 = vst [vmem:[#allocation3 + $0x18] sm:$0xff] %v1368
      %1377 = vst [vmem:[#allocation3 + $0x20] sm:$0xff] %v1369
      %1378 = vst [vmem:[#allocation3 + $0x28] sm:$0xff] %v1370
      %1379 = vst [vmem:[#allocation3 + $0x30] sm:$0xff] %v1371
      %1380 = vst [vmem:[#allocation3 + $0x38] sm:$0xff] %v1372
      %v1381 = vld [vmem:[%s298 + $0x4] sm:$0xf]
      %v1382 = vld [vmem:[%s298 + $0x10] sm:$0xf]
      %v1383 = vld [vmem:[%s298 + $0x1c] sm:$0xf]
      %v1384 = vld [vmem:[%s298 + $0x28] sm:$0xf]
      %v1385 = vld [vmem:[%s298 + $0x34] sm:$0xf]
      %v1386 = vld [vmem:[%s298 + $0x40] sm:$0xf]
      %v1387 = vld [vmem:[%s298 + $0x4c] sm:$0xf]
      %v1388 = vld [vmem:[%s298 + $0x58] sm:$0xf]
      %v1389 = vld [vmem:[%s3 + $0x100] sm:$0xf]
      %v1390 = vld [vmem:[%s3 + $0x104] sm:$0xf]
      %v1391 = vld [vmem:[%s3 + $0x108] sm:$0xf]
      %v1392 = vld [vmem:[%s3 + $0x10c] sm:$0xf]
      %v1393 = vld [vmem:[%s3 + $0x110] sm:$0xf]
      %v1394 = vld [vmem:[%s3 + $0x114] sm:$0xf]
      %v1395 = vld [vmem:[%s3 + $0x118] sm:$0xf]
      %v1396 = vld [vmem:[%s3 + $0x11c] sm:$0xf]
      %v1397 = vld [vmem:[%s3 + $0x120] sm:$0xf]
      %v1398 = vld [vmem:[%s3 + $0x124] sm:$0xf]
      %v1399 = vld [vmem:[%s3 + $0x128] sm:$0xf]
      %v1400 = vld [vmem:[%s3 + $0x12c] sm:$0xf]
      %v1401 = vld [vmem:[%s3 + $0x130] sm:$0xf]
      %v1402 = vld [vmem:[%s3 + $0x134] sm:$0xf]
      %v1403 = vld [vmem:[%s3 + $0x138] sm:$0xf]
      %v1404 = vld [vmem:[%s3 + $0x13c] sm:$0xf]
      %v1413 = vunpack.c.l.b16 %v1381
      %v1414 = vunpack.c.l.b16 %v1382
      %v1415 = vunpack.c.l.b16 %v1383
      %v1416 = vunpack.c.l.b16 %v1384
      %v1417 = vunpack.c.l.b16 %v1385
      %v1418 = vunpack.c.l.b16 %v1386
      %v1419 = vunpack.c.l.b16 %v1387
      %v1420 = vunpack.c.l.b16 %v1388
      %v1421 = vpack.c.b16 %v1414, %v1413
      %v1422 = vpack.c.b16 %v1416, %v1415
      %v1423 = vpack.c.b16 %v1418, %v1417
      %v1424 = vpack.c.b16 %v1420, %v1419
      %v1445 = vunpack.c.l.b16 %v1389
      %v1446 = vunpack.c.l.b16 %v1390
      %v1447 = vunpack.c.l.b16 %v1391
      %v1448 = vunpack.c.l.b16 %v1392
      %v1449 = vunpack.c.l.b16 %v1393
      %v1450 = vunpack.c.l.b16 %v1394
      %v1451 = vunpack.c.l.b16 %v1395
      %v1452 = vunpack.c.l.b16 %v1396
      %v1453 = vunpack.c.l.b16 %v1397
      %v1454 = vunpack.c.l.b16 %v1398
      %v1455 = vunpack.c.l.b16 %v1399
      %v1456 = vunpack.c.l.b16 %v1400
      %v1457 = vunpack.c.l.b16 %v1401
      %v1458 = vunpack.c.l.b16 %v1402
      %v1459 = vunpack.c.l.b16 %v1403
      %v1460 = vunpack.c.l.b16 %v1404
      %v1461 = vpack.c.b16 %v1446, %v1445
      %v1462 = vpack.c.b16 %v1448, %v1447
      %v1463 = vpack.c.b16 %v1450, %v1449
      %v1464 = vpack.c.b16 %v1452, %v1451
      %v1465 = vpack.c.b16 %v1454, %v1453
      %v1466 = vpack.c.b16 %v1456, %v1455
      %v1467 = vpack.c.b16 %v1458, %v1457
      %v1468 = vpack.c.b16 %v1460, %v1459
      %1477 = vmatprep.subr.bf16.mxu0 0
      %1478 = vmatpush1.bf16.msra.mxu0 %v1468
      %1479 = vmatprep.subr.bf16.mxu0 0
      %1480 = vmatpush1.bf16.msra.mxu0 %v1467
      %1481 = vmatprep.subr.bf16.mxu0 0
      %1482 = vmatpush1.bf16.msra.mxu0 %v1466
      %1483 = vmatprep.subr.bf16.mxu0 0
      %1484 = vmatpush1.bf16.msra.mxu0 %v1465
      %1485 = vmatprep.subr.bf16.mxu0 0
      %1486 = vmatpush1.bf16.msra.mxu0 %v1464
      %1487 = vmatprep.subr.bf16.mxu0 0
      %1488 = vmatpush1.bf16.msra.mxu0 %v1463
      %1489 = vmatprep.subr.bf16.mxu0 0
      %1490 = vmatpush1.bf16.msra.mxu0 %v1462
      %1491 = vmatprep.subr.bf16.mxu0 0
      %1492 = vmatpush1.bf16.msra.mxu0 %v1461
      %1493 = vmatprep.subr.bf16.mxu0 0
      %1494 = vmatpush2.bf16.msra.mxu0 0
      %1495 = vmatprep.subr.bf16.mxu0 0
      %1496 = vmatpush2.bf16.msra.mxu0 0
      %1497 = vmatprep.subr.bf16.mxu0 0
      %1498 = vmatpush2.bf16.msra.mxu0 0
      %1499 = vmatprep.subr.bf16.mxu0 0
      %1500 = vmatpush2.bf16.msra.mxu0 0
      %1501 = vmatprep.subr.bf16.mxu0 0
      %1502 = vmatpush2.bf16.msra.mxu0 0
      %1503 = vmatprep.subr.bf16.mxu0 0
      %1504 = vmatpush2.bf16.msra.mxu0 0
      %1505 = vmatprep.subr.bf16.mxu0 0
      %1506 = vmatpush2.bf16.msra.mxu0 0
      %1507 = vmatprep.subr.bf16.mxu0 0
      %1508 = vmatpush2.bf16.msra.mxu0 0
      %1509 = vmatprep.mubr.bf16.mxu0 0
      %1510 = vmatmul.mubr.bf16.gmra.mxu0 %v1421
      %v1511 = vpop.f32.mrf.mxu0
      %v1512 = vadd.f32 0.0, %v1511
      %v1513 = vpop.f32.mrf.mxu0
      %v1514 = vpop.f32.mrf.mxu0
      %v1515 = vadd.f32 0.0, %v1514
      %v1516 = vpop.f32.mrf.mxu0
      %1517 = vmatprep.mubr.bf16.mxu0 0
      %1518 = vmatmul.mubr.bf16.gmra.mxu0 %v1422
      %v1519 = vpop.f32.mrf.mxu0
      %v1520 = vadd.f32 0.0, %v1519
      %v1521 = vpop.f32.mrf.mxu0
      %v1522 = vpop.f32.mrf.mxu0
      %v1523 = vadd.f32 0.0, %v1522
      %v1524 = vpop.f32.mrf.mxu0
      %1525 = vmatprep.mubr.bf16.mxu0 0
      %1526 = vmatmul.mubr.bf16.gmra.mxu0 %v1423
      %v1527 = vpop.f32.mrf.mxu0
      %v1528 = vadd.f32 0.0, %v1527
      %v1529 = vpop.f32.mrf.mxu0
      %v1530 = vpop.f32.mrf.mxu0
      %v1531 = vadd.f32 0.0, %v1530
      %v1532 = vpop.f32.mrf.mxu0
      %1533 = vmatprep.mubr.bf16.mxu0 0
      %1534 = vmatmul.mubr.bf16.gmra.mxu0 %v1424
      %v1535 = vpop.f32.mrf.mxu0
      %v1536 = vadd.f32 0.0, %v1535
      %v1537 = vpop.f32.mrf.mxu0
      %v1538 = vpop.f32.mrf.mxu0
      %v1539 = vadd.f32 0.0, %v1538
      %v1540 = vpop.f32.mrf.mxu0
      %1541 = vdwg.mxu0
      %v1542 = vld [vmem:[#allocation3] sm:$0xff]
      %v1543 = vld [vmem:[#allocation3 + $0x8] sm:$0xff]
      %v1544 = vld [vmem:[#allocation3 + $0x10] sm:$0xff]
      %v1545 = vld [vmem:[#allocation3 + $0x18] sm:$0xff]
      %v1546 = vld [vmem:[#allocation3 + $0x20] sm:$0xff]
      %v1547 = vld [vmem:[#allocation3 + $0x28] sm:$0xff]
      %v1548 = vld [vmem:[#allocation3 + $0x30] sm:$0xff]
      %v1549 = vld [vmem:[#allocation3 + $0x38] sm:$0xff]
      %v1550 = vadd.f32 %v1542, %v1512
      %v1551 = vadd.f32 %v1543, %v1515
      %v1552 = vadd.f32 %v1544, %v1520
      %v1553 = vadd.f32 %v1545, %v1523
      %v1554 = vadd.f32 %v1546, %v1528
      %v1555 = vadd.f32 %v1547, %v1531
      %v1556 = vadd.f32 %v1548, %v1536
      %v1557 = vadd.f32 %v1549, %v1539
      %1558 = vst [vmem:[#allocation3] sm:$0xff] %v1550
      %1559 = vst [vmem:[#allocation3 + $0x8] sm:$0xff] %v1551
      %1560 = vst [vmem:[#allocation3 + $0x10] sm:$0xff] %v1552
      %1561 = vst [vmem:[#allocation3 + $0x18] sm:$0xff] %v1553
      %1562 = vst [vmem:[#allocation3 + $0x20] sm:$0xff] %v1554
      %1563 = vst [vmem:[#allocation3 + $0x28] sm:$0xff] %v1555
      %1564 = vst [vmem:[#allocation3 + $0x30] sm:$0xff] %v1556
      %1565 = vst [vmem:[#allocation3 + $0x38] sm:$0xff] %v1557
      %v1566 = vld [vmem:[%s298 + $0x4] sm:$0xf]
      %v1567 = vld [vmem:[%s298 + $0x8] sm:$0x1]
      %v1568 = vld [vmem:[%s298 + $0x10] sm:$0xf]
      %v1569 = vld [vmem:[%s298 + $0x14] sm:$0x1]
      %v1570 = vld [vmem:[%s298 + $0x1c] sm:$0xf]
      %v1571 = vld [vmem:[%s298 + $0x20] sm:$0x1]
      %v1572 = vld [vmem:[%s298 + $0x28] sm:$0xf]
      %v1573 = vld [vmem:[%s298 + $0x2c] sm:$0x1]
      %v1574 = vld [vmem:[%s298 + $0x34] sm:$0xf]
      %v1575 = vld [vmem:[%s298 + $0x38] sm:$0x1]
      %v1576 = vld [vmem:[%s298 + $0x40] sm:$0xf]
      %v1577 = vld [vmem:[%s298 + $0x44] sm:$0x1]
      %v1578 = vld [vmem:[%s298 + $0x4c] sm:$0xf]
      %v1579 = vld [vmem:[%s298 + $0x50] sm:$0x1]
      %v1580 = vld [vmem:[%s298 + $0x58] sm:$0xf]
      %v1581 = vld [vmem:[%s298 + $0x5c] sm:$0x1]
      %v1583 = vshrl.u32 %v1566, 16
      %v1585 = vrot.slane %v1583, 4
      %v1586 = vshll.u32 %v1566, 16
      %v1588 = vrot.slane %v1586, 5
      %v1589 = vor.u32 %v1585, %v1588
      %v1590 = vrot.slane %v1589, 4
      %v1592 = vshll.u32 %v1567, 16
      %v1594 = vrot.slane %v1592, 5
      %v1595 = vsel %vm810, %v1590, %v1594
      %v1597 = vshrl.u32 %v1568, 16
      %v1599 = vrot.slane %v1597, 4
      %v1600 = vshll.u32 %v1568, 16
      %v1602 = vrot.slane %v1600, 5
      %v1603 = vor.u32 %v1599, %v1602
      %v1604 = vrot.slane %v1603, 4
      %v1606 = vshll.u32 %v1569, 16
      %v1608 = vrot.slane %v1606, 5
      %v1609 = vsel %vm810, %v1604, %v1608
      %v1611 = vshrl.u32 %v1570, 16
      %v1613 = vrot.slane %v1611, 4
      %v1614 = vshll.u32 %v1570, 16
      %v1616 = vrot.slane %v1614, 5
      %v1617 = vor.u32 %v1613, %v1616
      %v1618 = vrot.slane %v1617, 4
      %v1620 = vshll.u32 %v1571, 16
      %v1622 = vrot.slane %v1620, 5
      %v1623 = vsel %vm810, %v1618, %v1622
      %v1625 = vshrl.u32 %v1572, 16
      %v1627 = vrot.slane %v1625, 4
      %v1628 = vshll.u32 %v1572, 16
      %v1630 = vrot.slane %v1628, 5
      %v1631 = vor.u32 %v1627, %v1630
      %v1632 = vrot.slane %v1631, 4
      %v1634 = vshll.u32 %v1573, 16
      %v1636 = vrot.slane %v1634, 5
      %v1637 = vsel %vm810, %v1632, %v1636
      %v1639 = vshrl.u32 %v1574, 16
      %v1641 = vrot.slane %v1639, 4
      %v1642 = vshll.u32 %v1574, 16
      %v1644 = vrot.slane %v1642, 5
      %v1645 = vor.u32 %v1641, %v1644
      %v1646 = vrot.slane %v1645, 4
      %v1648 = vshll.u32 %v1575, 16
      %v1650 = vrot.slane %v1648, 5
      %v1651 = vsel %vm810, %v1646, %v1650
      %v1653 = vshrl.u32 %v1576, 16
      %v1655 = vrot.slane %v1653, 4
      %v1656 = vshll.u32 %v1576, 16
      %v1658 = vrot.slane %v1656, 5
      %v1659 = vor.u32 %v1655, %v1658
      %v1660 = vrot.slane %v1659, 4
      %v1662 = vshll.u32 %v1577, 16
      %v1664 = vrot.slane %v1662, 5
      %v1665 = vsel %vm810, %v1660, %v1664
      %v1667 = vshrl.u32 %v1578, 16
      %v1669 = vrot.slane %v1667, 4
      %v1670 = vshll.u32 %v1578, 16
      %v1672 = vrot.slane %v1670, 5
      %v1673 = vor.u32 %v1669, %v1672
      %v1674 = vrot.slane %v1673, 4
      %v1676 = vshll.u32 %v1579, 16
      %v1678 = vrot.slane %v1676, 5
      %v1679 = vsel %vm810, %v1674, %v1678
      %v1681 = vshrl.u32 %v1580, 16
      %v1683 = vrot.slane %v1681, 4
      %v1684 = vshll.u32 %v1580, 16
      %v1686 = vrot.slane %v1684, 5
      %v1687 = vor.u32 %v1683, %v1686
      %v1688 = vrot.slane %v1687, 4
      %v1690 = vshll.u32 %v1581, 16
      %v1692 = vrot.slane %v1690, 5
      %v1693 = vsel %vm810, %v1688, %v1692
      %v1694 = vld [vmem:[%s3 + $0x140] sm:$0xf]
      %v1695 = vld [vmem:[%s3 + $0x144] sm:$0xf]
      %v1696 = vld [vmem:[%s3 + $0x148] sm:$0xf]
      %v1697 = vld [vmem:[%s3 + $0x14c] sm:$0xf]
      %v1698 = vld [vmem:[%s3 + $0x150] sm:$0xf]
      %v1699 = vld [vmem:[%s3 + $0x154] sm:$0xf]
      %v1700 = vld [vmem:[%s3 + $0x158] sm:$0xf]
      %v1701 = vld [vmem:[%s3 + $0x15c] sm:$0xf]
      %v1702 = vld [vmem:[%s3 + $0x160] sm:$0xf]
      %v1703 = vld [vmem:[%s3 + $0x164] sm:$0xf]
      %v1704 = vld [vmem:[%s3 + $0x168] sm:$0xf]
      %v1705 = vld [vmem:[%s3 + $0x16c] sm:$0xf]
      %v1706 = vld [vmem:[%s3 + $0x170] sm:$0xf]
      %v1707 = vld [vmem:[%s3 + $0x174] sm:$0xf]
      %v1708 = vld [vmem:[%s3 + $0x178] sm:$0xf]
      %v1709 = vld [vmem:[%s3 + $0x17c] sm:$0xf]
      %v1710 = vunpack.c.l.b16 %v1595
      %v1711 = vunpack.c.l.b16 %v1609
      %v1712 = vunpack.c.l.b16 %v1623
      %v1713 = vunpack.c.l.b16 %v1637
      %v1714 = vunpack.c.l.b16 %v1651
      %v1715 = vunpack.c.l.b16 %v1665
      %v1716 = vunpack.c.l.b16 %v1679
      %v1717 = vunpack.c.l.b16 %v1693
      %v1718 = vpack.c.b16 %v1711, %v1710
      %v1719 = vpack.c.b16 %v1713, %v1712
      %v1720 = vpack.c.b16 %v1715, %v1714
      %v1721 = vpack.c.b16 %v1717, %v1716
      %v1742 = vunpack.c.l.b16 %v1694
      %v1743 = vunpack.c.l.b16 %v1695
      %v1744 = vunpack.c.l.b16 %v1696
      %v1745 = vunpack.c.l.b16 %v1697
      %v1746 = vunpack.c.l.b16 %v1698
      %v1747 = vunpack.c.l.b16 %v1699
      %v1748 = vunpack.c.l.b16 %v1700
      %v1749 = vunpack.c.l.b16 %v1701
      %v1750 = vunpack.c.l.b16 %v1702
      %v1751 = vunpack.c.l.b16 %v1703
      %v1752 = vunpack.c.l.b16 %v1704
      %v1753 = vunpack.c.l.b16 %v1705
      %v1754 = vunpack.c.l.b16 %v1706
      %v1755 = vunpack.c.l.b16 %v1707
      %v1756 = vunpack.c.l.b16 %v1708
      %v1757 = vunpack.c.l.b16 %v1709
      %v1758 = vpack.c.b16 %v1743, %v1742
      %v1759 = vpack.c.b16 %v1745, %v1744
      %v1760 = vpack.c.b16 %v1747, %v1746
      %v1761 = vpack.c.b16 %v1749, %v1748
      %v1762 = vpack.c.b16 %v1751, %v1750
      %v1763 = vpack.c.b16 %v1753, %v1752
      %v1764 = vpack.c.b16 %v1755, %v1754
      %v1765 = vpack.c.b16 %v1757, %v1756
      %1774 = vmatprep.subr.bf16.mxu0 0
      %1775 = vmatpush1.bf16.msra.mxu0 %v1765
      %1776 = vmatprep.subr.bf16.mxu0 0
      %1777 = vmatpush1.bf16.msra.mxu0 %v1764
      %1778 = vmatprep.subr.bf16.mxu0 0
      %1779 = vmatpush1.bf16.msra.mxu0 %v1763
      %1780 = vmatprep.subr.bf16.mxu0 0
      %1781 = vmatpush1.bf16.msra.mxu0 %v1762
      %1782 = vmatprep.subr.bf16.mxu0 0
      %1783 = vmatpush1.bf16.msra.mxu0 %v1761
      %1784 = vmatprep.subr.bf16.mxu0 0
      %1785 = vmatpush1.bf16.msra.mxu0 %v1760
      %1786 = vmatprep.subr.bf16.mxu0 0
      %1787 = vmatpush1.bf16.msra.mxu0 %v1759
      %1788 = vmatprep.subr.bf16.mxu0 0
      %1789 = vmatpush1.bf16.msra.mxu0 %v1758
      %1790 = vmatprep.subr.bf16.mxu0 0
      %1791 = vmatpush2.bf16.msra.mxu0 0
      %1792 = vmatprep.subr.bf16.mxu0 0
      %1793 = vmatpush2.bf16.msra.mxu0 0
      %1794 = vmatprep.subr.bf16.mxu0 0
      %1795 = vmatpush2.bf16.msra.mxu0 0
      %1796 = vmatprep.subr.bf16.mxu0 0
      %1797 = vmatpush2.bf16.msra.mxu0 0
      %1798 = vmatprep.subr.bf16.mxu0 0
      %1799 = vmatpush2.bf16.msra.mxu0 0
      %1800 = vmatprep.subr.bf16.mxu0 0
      %1801 = vmatpush2.bf16.msra.mxu0 0
      %1802 = vmatprep.subr.bf16.mxu0 0
      %1803 = vmatpush2.bf16.msra.mxu0 0
      %1804 = vmatprep.subr.bf16.mxu0 0
      %1805 = vmatpush2.bf16.msra.mxu0 0
      %1806 = vmatprep.mubr.bf16.mxu0 0
      %1807 = vmatmul.mubr.bf16.gmra.mxu0 %v1718
      %v1808 = vpop.f32.mrf.mxu0
      %v1809 = vadd.f32 0.0, %v1808
      %v1810 = vpop.f32.mrf.mxu0
      %v1811 = vpop.f32.mrf.mxu0
      %v1812 = vadd.f32 0.0, %v1811
      %v1813 = vpop.f32.mrf.mxu0
      %1814 = vmatprep.mubr.bf16.mxu0 0
      %1815 = vmatmul.mubr.bf16.gmra.mxu0 %v1719
      %v1816 = vpop.f32.mrf.mxu0
      %v1817 = vadd.f32 0.0, %v1816
      %v1818 = vpop.f32.mrf.mxu0
      %v1819 = vpop.f32.mrf.mxu0
      %v1820 = vadd.f32 0.0, %v1819
      %v1821 = vpop.f32.mrf.mxu0
      %1822 = vmatprep.mubr.bf16.mxu0 0
      %1823 = vmatmul.mubr.bf16.gmra.mxu0 %v1720
      %v1824 = vpop.f32.mrf.mxu0
      %v1825 = vadd.f32 0.0, %v1824
      %v1826 = vpop.f32.mrf.mxu0
      %v1827 = vpop.f32.mrf.mxu0
      %v1828 = vadd.f32 0.0, %v1827
      %v1829 = vpop.f32.mrf.mxu0
      %1830 = vmatprep.mubr.bf16.mxu0 0
      %1831 = vmatmul.mubr.bf16.gmra.mxu0 %v1721
      %v1832 = vpop.f32.mrf.mxu0
      %v1833 = vadd.f32 0.0, %v1832
      %v1834 = vpop.f32.mrf.mxu0
      %v1835 = vpop.f32.mrf.mxu0
      %v1836 = vadd.f32 0.0, %v1835
      %v1837 = vpop.f32.mrf.mxu0
      %1838 = vdwg.mxu0
      %v1839 = vld [vmem:[#allocation3] sm:$0xff]
      %v1840 = vld [vmem:[#allocation3 + $0x8] sm:$0xff]
      %v1841 = vld [vmem:[#allocation3 + $0x10] sm:$0xff]
      %v1842 = vld [vmem:[#allocation3 + $0x18] sm:$0xff]
      %v1843 = vld [vmem:[#allocation3 + $0x20] sm:$0xff]
      %v1844 = vld [vmem:[#allocation3 + $0x28] sm:$0xff]
      %v1845 = vld [vmem:[#allocation3 + $0x30] sm:$0xff]
      %v1846 = vld [vmem:[#allocation3 + $0x38] sm:$0xff]
      %v1847 = vadd.f32 %v1839, %v1809
      %v1848 = vadd.f32 %v1840, %v1812
      %v1849 = vadd.f32 %v1841, %v1817
      %v1850 = vadd.f32 %v1842, %v1820
      %v1851 = vadd.f32 %v1843, %v1825
      %v1852 = vadd.f32 %v1844, %v1828
      %v1853 = vadd.f32 %v1845, %v1833
      %v1854 = vadd.f32 %v1846, %v1836
      %1855 = vst [vmem:[#allocation3] sm:$0xff] %v1847
      %1856 = vst [vmem:[#allocation3 + $0x8] sm:$0xff] %v1848
      %1857 = vst [vmem:[#allocation3 + $0x10] sm:$0xff] %v1849
      %1858 = vst [vmem:[#allocation3 + $0x18] sm:$0xff] %v1850
      %1859 = vst [vmem:[#allocation3 + $0x20] sm:$0xff] %v1851
      %1860 = vst [vmem:[#allocation3 + $0x28] sm:$0xff] %v1852
      %1861 = vst [vmem:[#allocation3 + $0x30] sm:$0xff] %v1853
      %1862 = vst [vmem:[#allocation3 + $0x38] sm:$0xff] %v1854
      %s1863 = scalar_lea.vmem [#allocation2], 24
      %v1864 = vld [vmem:[%s1863] sm:$0x8]
      %v1865 = vld [vmem:[%s1863 + $0x4] sm:$0xf]
      %v1866 = vld [vmem:[%s1863 + $0xc] sm:$0x8]
      %v1867 = vld [vmem:[%s1863 + $0x10] sm:$0xf]
      %v1868 = vld [vmem:[%s1863 + $0x18] sm:$0x8]
      %v1869 = vld [vmem:[%s1863 + $0x1c] sm:$0xf]
      %v1870 = vld [vmem:[%s1863 + $0x24] sm:$0x8]
      %v1871 = vld [vmem:[%s1863 + $0x28] sm:$0xf]
      %v1872 = vld [vmem:[%s1863 + $0x30] sm:$0x8]
      %v1873 = vld [vmem:[%s1863 + $0x34] sm:$0xf]
      %v1874 = vld [vmem:[%s1863 + $0x3c] sm:$0x8]
      %v1875 = vld [vmem:[%s1863 + $0x40] sm:$0xf]
      %v1876 = vld [vmem:[%s1863 + $0x48] sm:$0x8]
      %v1877 = vld [vmem:[%s1863 + $0x4c] sm:$0xf]
      %v1878 = vld [vmem:[%s1863 + $0x54] sm:$0x8]
      %v1879 = vld [vmem:[%s1863 + $0x58] sm:$0xf]
      %v1881 = vshrl.u32 %v1864, 16
      %v1883 = vrot.slane %v1881, 7
      %v1884 = vrot.slane %v1883, 4
      %v1886 = vshrl.u32 %v1865, 16
      %v1888 = vrot.slane %v1886, 7
      %v1889 = vshll.u32 %v1865, 16
      %v1891 = vor.u32 %v1888, %v1889
      %v1892 = vsel %vm349, %v1884, %v1891
      %v1894 = vshrl.u32 %v1866, 16
      %v1896 = vrot.slane %v1894, 7
      %v1897 = vrot.slane %v1896, 4
      %v1899 = vshrl.u32 %v1867, 16
      %v1901 = vrot.slane %v1899, 7
      %v1902 = vshll.u32 %v1867, 16
      %v1904 = vor.u32 %v1901, %v1902
      %v1905 = vsel %vm349, %v1897, %v1904
      %v1907 = vshrl.u32 %v1868, 16
      %v1909 = vrot.slane %v1907, 7
      %v1910 = vrot.slane %v1909, 4
      %v1912 = vshrl.u32 %v1869, 16
      %v1914 = vrot.slane %v1912, 7
      %v1915 = vshll.u32 %v1869, 16
      %v1917 = vor.u32 %v1914, %v1915
      %v1918 = vsel %vm349, %v1910, %v1917
      %v1920 = vshrl.u32 %v1870, 16
      %v1922 = vrot.slane %v1920, 7
      %v1923 = vrot.slane %v1922, 4
      %v1925 = vshrl.u32 %v1871, 16
      %v1927 = vrot.slane %v1925, 7
      %v1928 = vshll.u32 %v1871, 16
      %v1930 = vor.u32 %v1927, %v1928
      %v1931 = vsel %vm349, %v1923, %v1930
      %v1933 = vshrl.u32 %v1872, 16
      %v1935 = vrot.slane %v1933, 7
      %v1936 = vrot.slane %v1935, 4
      %v1938 = vshrl.u32 %v1873, 16
      %v1940 = vrot.slane %v1938, 7
      %v1941 = vshll.u32 %v1873, 16
      %v1943 = vor.u32 %v1940, %v1941
      %v1944 = vsel %vm349, %v1936, %v1943
      %v1946 = vshrl.u32 %v1874, 16
      %v1948 = vrot.slane %v1946, 7
      %v1949 = vrot.slane %v1948, 4
      %v1951 = vshrl.u32 %v1875, 16
      %v1953 = vrot.slane %v1951, 7
      %v1954 = vshll.u32 %v1875, 16
      %v1956 = vor.u32 %v1953, %v1954
      %v1957 = vsel %vm349, %v1949, %v1956
      %v1959 = vshrl.u32 %v1876, 16
      %v1961 = vrot.slane %v1959, 7
      %v1962 = vrot.slane %v1961, 4
      %v1964 = vshrl.u32 %v1877, 16
      %v1966 = vrot.slane %v1964, 7
      %v1967 = vshll.u32 %v1877, 16
      %v1969 = vor.u32 %v1966, %v1967
      %v1970 = vsel %vm349, %v1962, %v1969
      %v1972 = vshrl.u32 %v1878, 16
      %v1974 = vrot.slane %v1972, 7
      %v1975 = vrot.slane %v1974, 4
      %v1977 = vshrl.u32 %v1879, 16
      %v1979 = vrot.slane %v1977, 7
      %v1980 = vshll.u32 %v1879, 16
      %v1982 = vor.u32 %v1979, %v1980
      %v1983 = vsel %vm349, %v1975, %v1982
      %v1984 = vld [vmem:[%s3 + $0x180] sm:$0xf]
      %v1985 = vld [vmem:[%s3 + $0x184] sm:$0xf]
      %v1986 = vld [vmem:[%s3 + $0x188] sm:$0xf]
      %v1987 = vld [vmem:[%s3 + $0x18c] sm:$0xf]
      %v1988 = vld [vmem:[%s3 + $0x190] sm:$0xf]
      %v1989 = vld [vmem:[%s3 + $0x194] sm:$0xf]
      %v1990 = vld [vmem:[%s3 + $0x198] sm:$0xf]
      %v1991 = vld [vmem:[%s3 + $0x19c] sm:$0xf]
      %v1992 = vld [vmem:[%s3 + $0x1a0] sm:$0xf]
      %v1993 = vld [vmem:[%s3 + $0x1a4] sm:$0xf]
      %v1994 = vld [vmem:[%s3 + $0x1a8] sm:$0xf]
      %v1995 = vld [vmem:[%s3 + $0x1ac] sm:$0xf]
      %v1996 = vld [vmem:[%s3 + $0x1b0] sm:$0xf]
      %v1997 = vld [vmem:[%s3 + $0x1b4] sm:$0xf]
      %v1998 = vld [vmem:[%s3 + $0x1b8] sm:$0xf]
      %v1999 = vld [vmem:[%s3 + $0x1bc] sm:$0xf]
      %v2000 = vunpack.c.l.b16 %v1892
      %v2001 = vunpack.c.l.b16 %v1905
      %v2002 = vunpack.c.l.b16 %v1918
      %v2003 = vunpack.c.l.b16 %v1931
      %v2004 = vunpack.c.l.b16 %v1944
      %v2005 = vunpack.c.l.b16 %v1957
      %v2006 = vunpack.c.l.b16 %v1970
      %v2007 = vunpack.c.l.b16 %v1983
      %v2008 = vpack.c.b16 %v2001, %v2000
      %v2009 = vpack.c.b16 %v2003, %v2002
      %v2010 = vpack.c.b16 %v2005, %v2004
      %v2011 = vpack.c.b16 %v2007, %v2006
      %v2032 = vunpack.c.l.b16 %v1984
      %v2033 = vunpack.c.l.b16 %v1985
      %v2034 = vunpack.c.l.b16 %v1986
      %v2035 = vunpack.c.l.b16 %v1987
      %v2036 = vunpack.c.l.b16 %v1988
      %v2037 = vunpack.c.l.b16 %v1989
      %v2038 = vunpack.c.l.b16 %v1990
      %v2039 = vunpack.c.l.b16 %v1991
      %v2040 = vunpack.c.l.b16 %v1992
      %v2041 = vunpack.c.l.b16 %v1993
      %v2042 = vunpack.c.l.b16 %v1994
      %v2043 = vunpack.c.l.b16 %v1995
      %v2044 = vunpack.c.l.b16 %v1996
      %v2045 = vunpack.c.l.b16 %v1997
      %v2046 = vunpack.c.l.b16 %v1998
      %v2047 = vunpack.c.l.b16 %v1999
      %v2048 = vpack.c.b16 %v2033, %v2032
      %v2049 = vpack.c.b16 %v2035, %v2034
      %v2050 = vpack.c.b16 %v2037, %v2036
      %v2051 = vpack.c.b16 %v2039, %v2038
      %v2052 = vpack.c.b16 %v2041, %v2040
      %v2053 = vpack.c.b16 %v2043, %v2042
      %v2054 = vpack.c.b16 %v2045, %v2044
      %v2055 = vpack.c.b16 %v2047, %v2046
      %2064 = vmatprep.subr.bf16.mxu0 0
      %2065 = vmatpush1.bf16.msra.mxu0 %v2055
      %2066 = vmatprep.subr.bf16.mxu0 0
      %2067 = vmatpush1.bf16.msra.mxu0 %v2054
      %2068 = vmatprep.subr.bf16.mxu0 0
      %2069 = vmatpush1.bf16.msra.mxu0 %v2053
      %2070 = vmatprep.subr.bf16.mxu0 0
      %2071 = vmatpush1.bf16.msra.mxu0 %v2052
      %2072 = vmatprep.subr.bf16.mxu0 0
      %2073 = vmatpush1.bf16.msra.mxu0 %v2051
      %2074 = vmatprep.subr.bf16.mxu0 0
      %2075 = vmatpush1.bf16.msra.mxu0 %v2050
      %2076 = vmatprep.subr.bf16.mxu0 0
      %2077 = vmatpush1.bf16.msra.mxu0 %v2049
      %2078 = vmatprep.subr.bf16.mxu0 0
      %2079 = vmatpush1.bf16.msra.mxu0 %v2048
      %2080 = vmatprep.subr.bf16.mxu0 0
      %2081 = vmatpush2.bf16.msra.mxu0 0
      %2082 = vmatprep.subr.bf16.mxu0 0
      %2083 = vmatpush2.bf16.msra.mxu0 0
      %2084 = vmatprep.subr.bf16.mxu0 0
      %2085 = vmatpush2.bf16.msra.mxu0 0
      %2086 = vmatprep.subr.bf16.mxu0 0
      %2087 = vmatpush2.bf16.msra.mxu0 0
      %2088 = vmatprep.subr.bf16.mxu0 0
      %2089 = vmatpush2.bf16.msra.mxu0 0
      %2090 = vmatprep.subr.bf16.mxu0 0
      %2091 = vmatpush2.bf16.msra.mxu0 0
      %2092 = vmatprep.subr.bf16.mxu0 0
      %2093 = vmatpush2.bf16.msra.mxu0 0
      %2094 = vmatprep.subr.bf16.mxu0 0
      %2095 = vmatpush2.bf16.msra.mxu0 0
      %2096 = vmatprep.mubr.bf16.mxu0 0
      %2097 = vmatmul.mubr.bf16.gmra.mxu0 %v2008
      %v2098 = vpop.f32.mrf.mxu0
      %v2099 = vadd.f32 0.0, %v2098
      %v2100 = vpop.f32.mrf.mxu0
      %v2101 = vpop.f32.mrf.mxu0
      %v2102 = vadd.f32 0.0, %v2101
      %v2103 = vpop.f32.mrf.mxu0
      %2104 = vmatprep.mubr.bf16.mxu0 0
      %2105 = vmatmul.mubr.bf16.gmra.mxu0 %v2009
      %v2106 = vpop.f32.mrf.mxu0
      %v2107 = vadd.f32 0.0, %v2106
      %v2108 = vpop.f32.mrf.mxu0
      %v2109 = vpop.f32.mrf.mxu0
      %v2110 = vadd.f32 0.0, %v2109
      %v2111 = vpop.f32.mrf.mxu0
      %2112 = vmatprep.mubr.bf16.mxu0 0
      %2113 = vmatmul.mubr.bf16.gmra.mxu0 %v2010
      %v2114 = vpop.f32.mrf.mxu0
      %v2115 = vadd.f32 0.0, %v2114
      %v2116 = vpop.f32.mrf.mxu0
      %v2117 = vpop.f32.mrf.mxu0
      %v2118 = vadd.f32 0.0, %v2117
      %v2119 = vpop.f32.mrf.mxu0
      %2120 = vmatprep.mubr.bf16.mxu0 0
      %2121 = vmatmul.mubr.bf16.gmra.mxu0 %v2011
      %v2122 = vpop.f32.mrf.mxu0
      %v2123 = vadd.f32 0.0, %v2122
      %v2124 = vpop.f32.mrf.mxu0
      %v2125 = vpop.f32.mrf.mxu0
      %v2126 = vadd.f32 0.0, %v2125
      %v2127 = vpop.f32.mrf.mxu0
      %2128 = vdwg.mxu0
      %v2129 = vld [vmem:[#allocation3] sm:$0xff]
      %v2130 = vld [vmem:[#allocation3 + $0x8] sm:$0xff]
      %v2131 = vld [vmem:[#allocation3 + $0x10] sm:$0xff]
      %v2132 = vld [vmem:[#allocation3 + $0x18] sm:$0xff]
      %v2133 = vld [vmem:[#allocation3 + $0x20] sm:$0xff]
      %v2134 = vld [vmem:[#allocation3 + $0x28] sm:$0xff]
      %v2135 = vld [vmem:[#allocation3 + $0x30] sm:$0xff]
      %v2136 = vld [vmem:[#allocation3 + $0x38] sm:$0xff]
      %v2137 = vadd.f32 %v2129, %v2099
      %v2138 = vadd.f32 %v2130, %v2102
      %v2139 = vadd.f32 %v2131, %v2107
      %v2140 = vadd.f32 %v2132, %v2110
      %v2141 = vadd.f32 %v2133, %v2115
      %v2142 = vadd.f32 %v2134, %v2118
      %v2143 = vadd.f32 %v2135, %v2123
      %v2144 = vadd.f32 %v2136, %v2126
      %2145 = vst [vmem:[#allocation3] sm:$0xff] %v2137
      %2146 = vst [vmem:[#allocation3 + $0x8] sm:$0xff] %v2138
      %2147 = vst [vmem:[#allocation3 + $0x10] sm:$0xff] %v2139
      %2148 = vst [vmem:[#allocation3 + $0x18] sm:$0xff] %v2140
      %2149 = vst [vmem:[#allocation3 + $0x20] sm:$0xff] %v2141
      %2150 = vst [vmem:[#allocation3 + $0x28] sm:$0xff] %v2142
      %2151 = vst [vmem:[#allocation3 + $0x30] sm:$0xff] %v2143
      %2152 = vst [vmem:[#allocation3 + $0x38] sm:$0xff] %v2144
      %v2153 = vld [vmem:[%s1863 + $0x4] sm:$0xf]
      %v2154 = vld [vmem:[%s1863 + $0x10] sm:$0xf]
      %v2155 = vld [vmem:[%s1863 + $0x1c] sm:$0xf]
      %v2156 = vld [vmem:[%s1863 + $0x28] sm:$0xf]
      %v2157 = vld [vmem:[%s1863 + $0x34] sm:$0xf]
      %v2158 = vld [vmem:[%s1863 + $0x40] sm:$0xf]
      %v2159 = vld [vmem:[%s1863 + $0x4c] sm:$0xf]
      %v2160 = vld [vmem:[%s1863 + $0x58] sm:$0xf]
      %v2161 = vld [vmem:[%s3 + $0x1c0] sm:$0xf]
      %v2162 = vld [vmem:[%s3 + $0x1c4] sm:$0xf]
      %v2163 = vld [vmem:[%s3 + $0x1c8] sm:$0xf]
      %v2164 = vld [vmem:[%s3 + $0x1cc] sm:$0xf]
      %v2165 = vld [vmem:[%s3 + $0x1d0] sm:$0xf]
      %v2166 = vld [vmem:[%s3 + $0x1d4] sm:$0xf]
      %v2167 = vld [vmem:[%s3 + $0x1d8] sm:$0xf]
      %v2168 = vld [vmem:[%s3 + $0x1dc] sm:$0xf]
      %v2169 = vld [vmem:[%s3 + $0x1e0] sm:$0xf]
      %v2170 = vld [vmem:[%s3 + $0x1e4] sm:$0xf]
      %v2171 = vld [vmem:[%s3 + $0x1e8] sm:$0xf]
      %v2172 = vld [vmem:[%s3 + $0x1ec] sm:$0xf]
      %v2173 = vld [vmem:[%s3 + $0x1f0] sm:$0xf]
      %v2174 = vld [vmem:[%s3 + $0x1f4] sm:$0xf]
      %v2175 = vld [vmem:[%s3 + $0x1f8] sm:$0xf]
      %v2176 = vld [vmem:[%s3 + $0x1fc] sm:$0xf]
      %v2185 = vunpack.c.l.b16 %v2153
      %v2186 = vunpack.c.l.b16 %v2154
      %v2187 = vunpack.c.l.b16 %v2155
      %v2188 = vunpack.c.l.b16 %v2156
      %v2189 = vunpack.c.l.b16 %v2157
      %v2190 = vunpack.c.l.b16 %v2158
      %v2191 = vunpack.c.l.b16 %v2159
      %v2192 = vunpack.c.l.b16 %v2160
      %v2193 = vpack.c.b16 %v2186, %v2185
      %v2194 = vpack.c.b16 %v2188, %v2187
      %v2195 = vpack.c.b16 %v2190, %v2189
      %v2196 = vpack.c.b16 %v2192, %v2191
      %v2217 = vunpack.c.l.b16 %v2161
      %v2218 = vunpack.c.l.b16 %v2162
      %v2219 = vunpack.c.l.b16 %v2163
      %v2220 = vunpack.c.l.b16 %v2164
      %v2221 = vunpack.c.l.b16 %v2165
      %v2222 = vunpack.c.l.b16 %v2166
      %v2223 = vunpack.c.l.b16 %v2167
      %v2224 = vunpack.c.l.b16 %v2168
      %v2225 = vunpack.c.l.b16 %v2169
      %v2226 = vunpack.c.l.b16 %v2170
      %v2227 = vunpack.c.l.b16 %v2171
      %v2228 = vunpack.c.l.b16 %v2172
      %v2229 = vunpack.c.l.b16 %v2173
      %v2230 = vunpack.c.l.b16 %v2174
      %v2231 = vunpack.c.l.b16 %v2175
      %v2232 = vunpack.c.l.b16 %v2176
      %v2233 = vpack.c.b16 %v2218, %v2217
      %v2234 = vpack.c.b16 %v2220, %v2219
      %v2235 = vpack.c.b16 %v2222, %v2221
      %v2236 = vpack.c.b16 %v2224, %v2223
      %v2237 = vpack.c.b16 %v2226, %v2225
      %v2238 = vpack.c.b16 %v2228, %v2227
      %v2239 = vpack.c.b16 %v2230, %v2229
      %v2240 = vpack.c.b16 %v2232, %v2231
      %2249 = vmatprep.subr.bf16.mxu0 0
      %2250 = vmatpush1.bf16.msra.mxu0 %v2240
      %2251 = vmatprep.subr.bf16.mxu0 0
      %2252 = vmatpush1.bf16.msra.mxu0 %v2239
      %2253 = vmatprep.subr.bf16.mxu0 0
      %2254 = vmatpush1.bf16.msra.mxu0 %v2238
      %2255 = vmatprep.subr.bf16.mxu0 0
      %2256 = vmatpush1.bf16.msra.mxu0 %v2237
      %2257 = vmatprep.subr.bf16.mxu0 0
      %2258 = vmatpush1.bf16.msra.mxu0 %v2236
      %2259 = vmatprep.subr.bf16.mxu0 0
      %2260 = vmatpush1.bf16.msra.mxu0 %v2235
      %2261 = vmatprep.subr.bf16.mxu0 0
      %2262 = vmatpush1.bf16.msra.mxu0 %v2234
      %2263 = vmatprep.subr.bf16.mxu0 0
      %2264 = vmatpush1.bf16.msra.mxu0 %v2233
      %2265 = vmatprep.subr.bf16.mxu0 0
      %2266 = vmatpush2.bf16.msra.mxu0 0
      %2267 = vmatprep.subr.bf16.mxu0 0
      %2268 = vmatpush2.bf16.msra.mxu0 0
      %2269 = vmatprep.subr.bf16.mxu0 0
      %2270 = vmatpush2.bf16.msra.mxu0 0
      %2271 = vmatprep.subr.bf16.mxu0 0
      %2272 = vmatpush2.bf16.msra.mxu0 0
      %2273 = vmatprep.subr.bf16.mxu0 0
      %2274 = vmatpush2.bf16.msra.mxu0 0
      %2275 = vmatprep.subr.bf16.mxu0 0
      %2276 = vmatpush2.bf16.msra.mxu0 0
      %2277 = vmatprep.subr.bf16.mxu0 0
      %2278 = vmatpush2.bf16.msra.mxu0 0
      %2279 = vmatprep.subr.bf16.mxu0 0
      %2280 = vmatpush2.bf16.msra.mxu0 0
      %2281 = vmatprep.mubr.bf16.mxu0 0
      %2282 = vmatmul.mubr.bf16.gmra.mxu0 %v2193
      %v2283 = vpop.f32.mrf.mxu0
      %v2284 = vadd.f32 0.0, %v2283
      %v2285 = vpop.f32.mrf.mxu0
      %v2286 = vpop.f32.mrf.mxu0
      %v2287 = vadd.f32 0.0, %v2286
      %v2288 = vpop.f32.mrf.mxu0
      %2289 = vmatprep.mubr.bf16.mxu0 0
      %2290 = vmatmul.mubr.bf16.gmra.mxu0 %v2194
      %v2291 = vpop.f32.mrf.mxu0
      %v2292 = vadd.f32 0.0, %v2291
      %v2293 = vpop.f32.mrf.mxu0
      %v2294 = vpop.f32.mrf.mxu0
      %v2295 = vadd.f32 0.0, %v2294
      %v2296 = vpop.f32.mrf.mxu0
      %2297 = vmatprep.mubr.bf16.mxu0 0
      %2298 = vmatmul.mubr.bf16.gmra.mxu0 %v2195
      %v2299 = vpop.f32.mrf.mxu0
      %v2300 = vadd.f32 0.0, %v2299
      %v2301 = vpop.f32.mrf.mxu0
      %v2302 = vpop.f32.mrf.mxu0
      %v2303 = vadd.f32 0.0, %v2302
      %v2304 = vpop.f32.mrf.mxu0
      %2305 = vmatprep.mubr.bf16.mxu0 0
      %2306 = vmatmul.mubr.bf16.gmra.mxu0 %v2196
      %v2307 = vpop.f32.mrf.mxu0
      %v2308 = vadd.f32 0.0, %v2307
      %v2309 = vpop.f32.mrf.mxu0
      %v2310 = vpop.f32.mrf.mxu0
      %v2311 = vadd.f32 0.0, %v2310
      %v2312 = vpop.f32.mrf.mxu0
      %2313 = vdwg.mxu0
      %v2314 = vld [vmem:[#allocation3] sm:$0xff]
      %v2315 = vld [vmem:[#allocation3 + $0x8] sm:$0xff]
      %v2316 = vld [vmem:[#allocation3 + $0x10] sm:$0xff]
      %v2317 = vld [vmem:[#allocation3 + $0x18] sm:$0xff]
      %v2318 = vld [vmem:[#allocation3 + $0x20] sm:$0xff]
      %v2319 = vld [vmem:[#allocation3 + $0x28] sm:$0xff]
      %v2320 = vld [vmem:[#allocation3 + $0x30] sm:$0xff]
      %v2321 = vld [vmem:[#allocation3 + $0x38] sm:$0xff]
      %v2322 = vadd.f32 %v2314, %v2284
      %v2323 = vadd.f32 %v2315, %v2287
      %v2324 = vadd.f32 %v2316, %v2292
      %v2325 = vadd.f32 %v2317, %v2295
      %v2326 = vadd.f32 %v2318, %v2300
      %v2327 = vadd.f32 %v2319, %v2303
      %v2328 = vadd.f32 %v2320, %v2308
      %v2329 = vadd.f32 %v2321, %v2311
      %2330 = vst [vmem:[#allocation3] sm:$0xff] %v2322
      %2331 = vst [vmem:[#allocation3 + $0x8] sm:$0xff] %v2323
      %2332 = vst [vmem:[#allocation3 + $0x10] sm:$0xff] %v2324
      %2333 = vst [vmem:[#allocation3 + $0x18] sm:$0xff] %v2325
      %2334 = vst [vmem:[#allocation3 + $0x20] sm:$0xff] %v2326
      %2335 = vst [vmem:[#allocation3 + $0x28] sm:$0xff] %v2327
      %2336 = vst [vmem:[#allocation3 + $0x30] sm:$0xff] %v2328
      %2337 = vst [vmem:[#allocation3 + $0x38] sm:$0xff] %v2329
      %v2338 = vld [vmem:[%s1863 + $0x4] sm:$0xf]
      %v2339 = vld [vmem:[%s1863 + $0x8] sm:$0x1]
      %v2340 = vld [vmem:[%s1863 + $0x10] sm:$0xf]
      %v2341 = vld [vmem:[%s1863 + $0x14] sm:$0x1]
      %v2342 = vld [vmem:[%s1863 + $0x1c] sm:$0xf]
      %v2343 = vld [vmem:[%s1863 + $0x20] sm:$0x1]
      %v2344 = vld [vmem:[%s1863 + $0x28] sm:$0xf]
      %v2345 = vld [vmem:[%s1863 + $0x2c] sm:$0x1]
      %v2346 = vld [vmem:[%s1863 + $0x34] sm:$0xf]
      %v2347 = vld [vmem:[%s1863 + $0x38] sm:$0x1]
      %v2348 = vld [vmem:[%s1863 + $0x40] sm:$0xf]
      %v2349 = vld [vmem:[%s1863 + $0x44] sm:$0x1]
      %v2350 = vld [vmem:[%s1863 + $0x4c] sm:$0xf]
      %v2351 = vld [vmem:[%s1863 + $0x50] sm:$0x1]
      %v2352 = vld [vmem:[%s1863 + $0x58] sm:$0xf]
      %v2353 = vld [vmem:[%s1863 + $0x5c] sm:$0x1]
      %v2355 = vshrl.u32 %v2338, 16
      %v2357 = vrot.slane %v2355, 4
      %v2358 = vshll.u32 %v2338, 16
      %v2360 = vrot.slane %v2358, 5
      %v2361 = vor.u32 %v2357, %v2360
      %v2362 = vrot.slane %v2361, 4
      %v2364 = vshll.u32 %v2339, 16
      %v2366 = vrot.slane %v2364, 5
      %v2367 = vsel %vm810, %v2362, %v2366
      %v2369 = vshrl.u32 %v2340, 16
      %v2371 = vrot.slane %v2369, 4
      %v2372 = vshll.u32 %v2340, 16
      %v2374 = vrot.slane %v2372, 5
      %v2375 = vor.u32 %v2371, %v2374
      %v2376 = vrot.slane %v2375, 4
      %v2378 = vshll.u32 %v2341, 16
      %v2380 = vrot.slane %v2378, 5
      %v2381 = vsel %vm810, %v2376, %v2380
      %v2383 = vshrl.u32 %v2342, 16
      %v2385 = vrot.slane %v2383, 4
      %v2386 = vshll.u32 %v2342, 16
      %v2388 = vrot.slane %v2386, 5
      %v2389 = vor.u32 %v2385, %v2388
      %v2390 = vrot.slane %v2389, 4
      %v2392 = vshll.u32 %v2343, 16
      %v2394 = vrot.slane %v2392, 5
      %v2395 = vsel %vm810, %v2390, %v2394
      %v2397 = vshrl.u32 %v2344, 16
      %v2399 = vrot.slane %v2397, 4
      %v2400 = vshll.u32 %v2344, 16
      %v2402 = vrot.slane %v2400, 5
      %v2403 = vor.u32 %v2399, %v2402
      %v2404 = vrot.slane %v2403, 4
      %v2406 = vshll.u32 %v2345, 16
      %v2408 = vrot.slane %v2406, 5
      %v2409 = vsel %vm810, %v2404, %v2408
      %v2411 = vshrl.u32 %v2346, 16
      %v2413 = vrot.slane %v2411, 4
      %v2414 = vshll.u32 %v2346, 16
      %v2416 = vrot.slane %v2414, 5
      %v2417 = vor.u32 %v2413, %v2416
      %v2418 = vrot.slane %v2417, 4
      %v2420 = vshll.u32 %v2347, 16
      %v2422 = vrot.slane %v2420, 5
      %v2423 = vsel %vm810, %v2418, %v2422
      %v2425 = vshrl.u32 %v2348, 16
      %v2427 = vrot.slane %v2425, 4
      %v2428 = vshll.u32 %v2348, 16
      %v2430 = vrot.slane %v2428, 5
      %v2431 = vor.u32 %v2427, %v2430
      %v2432 = vrot.slane %v2431, 4
      %v2434 = vshll.u32 %v2349, 16
      %v2436 = vrot.slane %v2434, 5
      %v2437 = vsel %vm810, %v2432, %v2436
      %v2439 = vshrl.u32 %v2350, 16
      %v2441 = vrot.slane %v2439, 4
      %v2442 = vshll.u32 %v2350, 16
      %v2444 = vrot.slane %v2442, 5
      %v2445 = vor.u32 %v2441, %v2444
      %v2446 = vrot.slane %v2445, 4
      %v2448 = vshll.u32 %v2351, 16
      %v2450 = vrot.slane %v2448, 5
      %v2451 = vsel %vm810, %v2446, %v2450
      %v2453 = vshrl.u32 %v2352, 16
      %v2455 = vrot.slane %v2453, 4
      %v2456 = vshll.u32 %v2352, 16
      %v2458 = vrot.slane %v2456, 5
      %v2459 = vor.u32 %v2455, %v2458
      %v2460 = vrot.slane %v2459, 4
      %v2462 = vshll.u32 %v2353, 16
      %v2464 = vrot.slane %v2462, 5
      %v2465 = vsel %vm810, %v2460, %v2464
      %v2466 = vld [vmem:[%s3 + $0x200] sm:$0xf]
      %v2467 = vld [vmem:[%s3 + $0x204] sm:$0xf]
      %v2468 = vld [vmem:[%s3 + $0x208] sm:$0xf]
      %v2469 = vld [vmem:[%s3 + $0x20c] sm:$0xf]
      %v2470 = vld [vmem:[%s3 + $0x210] sm:$0xf]
      %v2471 = vld [vmem:[%s3 + $0x214] sm:$0xf]
      %v2472 = vld [vmem:[%s3 + $0x218] sm:$0xf]
      %v2473 = vld [vmem:[%s3 + $0x21c] sm:$0xf]
      %v2474 = vld [vmem:[%s3 + $0x220] sm:$0xf]
      %v2475 = vld [vmem:[%s3 + $0x224] sm:$0xf]
      %v2476 = vld [vmem:[%s3 + $0x228] sm:$0xf]
      %v2477 = vld [vmem:[%s3 + $0x22c] sm:$0xf]
      %v2478 = vld [vmem:[%s3 + $0x230] sm:$0xf]
      %v2479 = vld [vmem:[%s3 + $0x234] sm:$0xf]
      %v2480 = vld [vmem:[%s3 + $0x238] sm:$0xf]
      %v2481 = vld [vmem:[%s3 + $0x23c] sm:$0xf]
      %v2482 = vunpack.c.l.b16 %v2367
      %v2483 = vunpack.c.l.b16 %v2381
      %v2484 = vunpack.c.l.b16 %v2395
      %v2485 = vunpack.c.l.b16 %v2409
      %v2486 = vunpack.c.l.b16 %v2423
      %v2487 = vunpack.c.l.b16 %v2437
      %v2488 = vunpack.c.l.b16 %v2451
      %v2489 = vunpack.c.l.b16 %v2465
      %v2490 = vpack.c.b16 %v2483, %v2482
      %v2491 = vpack.c.b16 %v2485, %v2484
      %v2492 = vpack.c.b16 %v2487, %v2486
      %v2493 = vpack.c.b16 %v2489, %v2488
      %v2514 = vunpack.c.l.b16 %v2466
      %v2515 = vunpack.c.l.b16 %v2467
      %v2516 = vunpack.c.l.b16 %v2468
      %v2517 = vunpack.c.l.b16 %v2469
      %v2518 = vunpack.c.l.b16 %v2470
      %v2519 = vunpack.c.l.b16 %v2471
      %v2520 = vunpack.c.l.b16 %v2472
      %v2521 = vunpack.c.l.b16 %v2473
      %v2522 = vunpack.c.l.b16 %v2474
      %v2523 = vunpack.c.l.b16 %v2475
      %v2524 = vunpack.c.l.b16 %v2476
      %v2525 = vunpack.c.l.b16 %v2477
      %v2526 = vunpack.c.l.b16 %v2478
      %v2527 = vunpack.c.l.b16 %v2479
      %v2528 = vunpack.c.l.b16 %v2480
      %v2529 = vunpack.c.l.b16 %v2481
      %v2530 = vpack.c.b16 %v2515, %v2514
      %v2531 = vpack.c.b16 %v2517, %v2516
      %v2532 = vpack.c.b16 %v2519, %v2518
      %v2533 = vpack.c.b16 %v2521, %v2520
      %v2534 = vpack.c.b16 %v2523, %v2522
      %v2535 = vpack.c.b16 %v2525, %v2524
      %v2536 = vpack.c.b16 %v2527, %v2526
      %v2537 = vpack.c.b16 %v2529, %v2528
      %2546 = vmatprep.subr.bf16.mxu0 0
      %2547 = vmatpush1.bf16.msra.mxu0 %v2537
      %2548 = vmatprep.subr.bf16.mxu0 0
      %2549 = vmatpush1.bf16.msra.mxu0 %v2536
      %2550 = vmatprep.subr.bf16.mxu0 0
      %2551 = vmatpush1.bf16.msra.mxu0 %v2535
      %2552 = vmatprep.subr.bf16.mxu0 0
      %2553 = vmatpush1.bf16.msra.mxu0 %v2534
      %2554 = vmatprep.subr.bf16.mxu0 0
      %2555 = vmatpush1.bf16.msra.mxu0 %v2533
      %2556 = vmatprep.subr.bf16.mxu0 0
      %2557 = vmatpush1.bf16.msra.mxu0 %v2532
      %2558 = vmatprep.subr.bf16.mxu0 0
      %2559 = vmatpush1.bf16.msra.mxu0 %v2531
      %2560 = vmatprep.subr.bf16.mxu0 0
      %2561 = vmatpush1.bf16.msra.mxu0 %v2530
      %2562 = vmatprep.subr.bf16.mxu0 0
      %2563 = vmatpush2.bf16.msra.mxu0 0
      %2564 = vmatprep.subr.bf16.mxu0 0
      %2565 = vmatpush2.bf16.msra.mxu0 0
      %2566 = vmatprep.subr.bf16.mxu0 0
      %2567 = vmatpush2.bf16.msra.mxu0 0
      %2568 = vmatprep.subr.bf16.mxu0 0
      %2569 = vmatpush2.bf16.msra.mxu0 0
      %2570 = vmatprep.subr.bf16.mxu0 0
      %2571 = vmatpush2.bf16.msra.mxu0 0
      %2572 = vmatprep.subr.bf16.mxu0 0
      %2573 = vmatpush2.bf16.msra.mxu0 0
      %2574 = vmatprep.subr.bf16.mxu0 0
      %2575 = vmatpush2.bf16.msra.mxu0 0
      %2576 = vmatprep.subr.bf16.mxu0 0
      %2577 = vmatpush2.bf16.msra.mxu0 0
      %2578 = vmatprep.mubr.bf16.mxu0 0
      %2579 = vmatmul.mubr.bf16.gmra.mxu0 %v2490
      %v2580 = vpop.f32.mrf.mxu0
      %v2581 = vadd.f32 0.0, %v2580
      %v2582 = vpop.f32.mrf.mxu0
      %v2583 = vpop.f32.mrf.mxu0
      %v2584 = vadd.f32 0.0, %v2583
      %v2585 = vpop.f32.mrf.mxu0
      %2586 = vmatprep.mubr.bf16.mxu0 0
      %2587 = vmatmul.mubr.bf16.gmra.mxu0 %v2491
      %v2588 = vpop.f32.mrf.mxu0
      %v2589 = vadd.f32 0.0, %v2588
      %v2590 = vpop.f32.mrf.mxu0
      %v2591 = vpop.f32.mrf.mxu0
      %v2592 = vadd.f32 0.0, %v2591
      %v2593 = vpop.f32.mrf.mxu0
      %2594 = vmatprep.mubr.bf16.mxu0 0
      %2595 = vmatmul.mubr.bf16.gmra.mxu0 %v2492
      %v2596 = vpop.f32.mrf.mxu0
      %v2597 = vadd.f32 0.0, %v2596
      %v2598 = vpop.f32.mrf.mxu0
      %v2599 = vpop.f32.mrf.mxu0
      %v2600 = vadd.f32 0.0, %v2599
      %v2601 = vpop.f32.mrf.mxu0
      %2602 = vmatprep.mubr.bf16.mxu0 0
      %2603 = vmatmul.mubr.bf16.gmra.mxu0 %v2493
      %v2604 = vpop.f32.mrf.mxu0
      %v2605 = vadd.f32 0.0, %v2604
      %v2606 = vpop.f32.mrf.mxu0
      %v2607 = vpop.f32.mrf.mxu0
      %v2608 = vadd.f32 0.0, %v2607
      %v2609 = vpop.f32.mrf.mxu0
      %2610 = vdwg.mxu0
      %v2611 = vld [vmem:[#allocation3] sm:$0xff]
      %v2612 = vld [vmem:[#allocation3 + $0x8] sm:$0xff]
      %v2613 = vld [vmem:[#allocation3 + $0x10] sm:$0xff]
      %v2614 = vld [vmem:[#allocation3 + $0x18] sm:$0xff]
      %v2615 = vld [vmem:[#allocation3 + $0x20] sm:$0xff]
      %v2616 = vld [vmem:[#allocation3 + $0x28] sm:$0xff]
      %v2617 = vld [vmem:[#allocation3 + $0x30] sm:$0xff]
      %v2618 = vld [vmem:[#allocation3 + $0x38] sm:$0xff]
      %v2619 = vadd.f32 %v2611, %v2581
      %v2620 = vadd.f32 %v2612, %v2584
      %v2621 = vadd.f32 %v2613, %v2589
      %v2622 = vadd.f32 %v2614, %v2592
      %v2623 = vadd.f32 %v2615, %v2597
      %v2624 = vadd.f32 %v2616, %v2600
      %v2625 = vadd.f32 %v2617, %v2605
      %v2626 = vadd.f32 %v2618, %v2608
      %2627 = vst [vmem:[#allocation3] sm:$0xff] %v2619
      %2628 = vst [vmem:[#allocation3 + $0x8] sm:$0xff] %v2620
      %2629 = vst [vmem:[#allocation3 + $0x10] sm:$0xff] %v2621
      %2630 = vst [vmem:[#allocation3 + $0x18] sm:$0xff] %v2622
      %2631 = vst [vmem:[#allocation3 + $0x20] sm:$0xff] %v2623
      %2632 = vst [vmem:[#allocation3 + $0x28] sm:$0xff] %v2624
      %2633 = vst [vmem:[#allocation3 + $0x30] sm:$0xff] %v2625
      %2634 = vst [vmem:[#allocation3 + $0x38] sm:$0xff] %v2626
      %v2635 = vld [vmem:[#allocation3] sm:$0xff]
      %v2636 = vld [vmem:[#allocation3 + $0x8] sm:$0xff]
      %v2637 = vld [vmem:[#allocation3 + $0x10] sm:$0xff]
      %v2638 = vld [vmem:[#allocation3 + $0x18] sm:$0xff]
      %v2639 = vld [vmem:[#allocation3 + $0x20] sm:$0xff]
      %v2640 = vld [vmem:[#allocation3 + $0x28] sm:$0xff]
      %v2641 = vld [vmem:[#allocation3 + $0x30] sm:$0xff]
      %v2642 = vld [vmem:[#allocation3 + $0x38] sm:$0xff]
      %v2643 = vpack.c.bf16 %v2635, %v2635
      %v2644 = vpack.c.bf16 %v2636, %v2636
      %v2645 = vpack.c.bf16 %v2637, %v2637
      %v2646 = vpack.c.bf16 %v2638, %v2638
      %v2647 = vpack.c.bf16 %v2639, %v2639
      %v2648 = vpack.c.bf16 %v2640, %v2640
      %v2649 = vpack.c.bf16 %v2641, %v2641
      %v2650 = vpack.c.bf16 %v2642, %v2642
      %2651 = vst [vmem:[%s231] sm:$0xf] %v2643
      %2652 = vst [vmem:[%s231 + $0x4] sm:$0xf] %v2644
      %2653 = vst [vmem:[%s231 + $0x8] sm:$0xf] %v2645
      %2654 = vst [vmem:[%s231 + $0xc] sm:$0xf] %v2646
      %2655 = vst [vmem:[%s231 + $0x10] sm:$0xf] %v2647
      %2656 = vst [vmem:[%s231 + $0x14] sm:$0xf] %v2648
      %2657 = vst [vmem:[%s231 + $0x18] sm:$0xf] %v2649
      %2658 = vst [vmem:[%s231 + $0x1c] sm:$0xf] %v2650
      %v2659 = vadd.f32 %v2635, %v2636
      %v2660 = vadd.f32 %v2659, %v2637
      %v2661 = vadd.f32 %v2660, %v2638
      %v2662 = vadd.f32 %v2661, %v2639
      %v2663 = vadd.f32 %v2662, %v2640
      %v2664 = vadd.f32 %v2663, %v2641
      %v2665 = vadd.f32 %v2664, %v2642
      %v2666 = vrot.slane %v2665, 4
      %v2667 = vadd.f32 %v2665, %v2666
      %v2668 = vrot.slane %v2667, 2
      %v2669 = vadd.f32 %v2667, %v2668
      %v2670 = vrot.slane %v2669, 1
      %v2671 = vadd.f32 %v2669, %v2670
      %v2672 = vmul.f32 %v2635, %v2635
      %v2673 = vmul.f32 %v2636, %v2636
      %v2674 = vmul.f32 %v2637, %v2637
      %v2675 = vmul.f32 %v2638, %v2638
      %v2676 = vmul.f32 %v2639, %v2639
      %v2677 = vmul.f32 %v2640, %v2640
      %v2678 = vmul.f32 %v2641, %v2641
      %v2679 = vmul.f32 %v2642, %v2642
      %v2680 = vadd.f32 %v2672, %v2673
      %v2681 = vadd.f32 %v2680, %v2674
      %v2682 = vadd.f32 %v2681, %v2675
      %v2683 = vadd.f32 %v2682, %v2676
      %v2684 = vadd.f32 %v2683, %v2677
      %v2685 = vadd.f32 %v2684, %v2678
      %v2686 = vadd.f32 %v2685, %v2679
      %v2687 = vrot.slane %v2686, 4
      %v2688 = vadd.f32 %v2686, %v2687
      %v2689 = vrot.slane %v2688, 2
      %v2690 = vadd.f32 %v2688, %v2689
      %v2691 = vrot.slane %v2690, 1
      %v2692 = vadd.f32 %v2690, %v2691
      %vm2693 = vcmask 1040384
      %v2694 = vsel %vm2693, %v2671, %v2692
      %2695 = vst [vmem:[%s235] sm:$0x3] %v2694
      %p2696 = scmp.lt.s32.totalorder %s17, 1
      %s2697 = scalar_select %p2696, %s17, 1
      %s2698 = smul.addr %s2697, 8
      %s2699 = smul.addr %s2698, 4
      %s2700 = scalar_lea.vmem %s4, %s2699
      %p2701 = scmp.lt.s32.totalorder %s17, 1
      %s2702 = scalar_select %p2701, %s17, 1
      %s2703 = smul.addr %s2702, 2
      %s2704 = scalar_lea.vmem %s5, %s2703
      // Predicated region
      $region37: #{bottleneck_forward.5} parent=35 // pred_check
        %p2705 = pneg %p124
      $region38: #{bottleneck_forward.5} parent=35 // pred_check_branch
        %2707 = sbr.rel (%p2705) target = $region40
      $region39: #{bottleneck_forward.5} parent=35 // pred_region
        _
      $region40: #{bottleneck_forward.5} parent=35 // pred_fallthru
        _
      // Predicated region
      $region41: #{bottleneck_forward.5} parent=35 // pred_check
        %p2708 = pneg %p150
      $region42: #{bottleneck_forward.5} parent=35 // pred_check_branch
        %2710 = sbr.rel (%p2708) target = $region44
      $region43: #{bottleneck_forward.5} parent=35 // pred_region
        _
      $region44: #{bottleneck_forward.5} parent=35 // pred_fallthru
        _
    $region36: #{bottleneck_forward.5} parent=5 // pred_fallthru
      _
    %p2711 = scmp.le.s32.totalorder 2, %s12
    // Predicated region
    $region45: #{bottleneck_forward.5} parent=5 // pred_check
      %p2712 = pneg %p2711
    $region46: #{bottleneck_forward.5} parent=5 // pred_check_branch
      %2714 = sbr.rel (%p2712) target = $region48
    $region47: #{bottleneck_forward.5} parent=5 // pred_region
      %s2715 = ssub.s32 %s12, 2
      // Predicated region
      $region49: #{bottleneck_forward.5} parent=47 // pred_check
        %p2716 = pneg %p130
      $region50: #{bottleneck_forward.5} parent=47 // pred_check_branch
        %2718 = sbr.rel (%p2716) target = $region52
      $region51: #{bottleneck_forward.5} parent=47 // pred_region
        %p2719 = scmp.lt.s32.totalorder %s18, 1
        %s2720 = scalar_select %p2719, %s18, 1
        %s2721 = smul.addr %s2720, 8
        %s2722 = smul.addr %s2721, 4
        %s2723 = scalar_lea.vmem %s4, %s2722
      $region52: #{bottleneck_forward.5} parent=47 // pred_fallthru
        _
      // Predicated region
      $region53: #{bottleneck_forward.5} parent=47 // pred_check
        %p2724 = pneg %p156
      $region54: #{bottleneck_forward.5} parent=47 // pred_check_branch
        %2726 = sbr.rel (%p2724) target = $region56
      $region55: #{bottleneck_forward.5} parent=47 // pred_region
        %p2727 = scmp.lt.s32.totalorder %s18, 1
        %s2728 = scalar_select %p2727, %s18, 1
        %s2729 = smul.addr %s2728, 2
        %s2730 = scalar_lea.vmem %s5, %s2729
      $region56: #{bottleneck_forward.5} parent=47 // pred_fallthru
        _
    $region48: #{bottleneck_forward.5} parent=5 // pred_fallthru
      _
  $region6: #{bottleneck_forward.5} parent=0 // loop_footer
    %s16 = sadd.s32 1, %s12
  $region7: #{bottleneck_forward.5} parent=0 // loop_footer_branch
    %11 = sbr.rel target = $region3
  $region8: #{bottleneck_forward.5} parent=0 // loop_exit
    _

</llo_original>
